<compile_context>
chip_gen: v7x
topology: tpu7x:2x2x1
jax: 0.10.0
libtpu: 0.0.40
codegen_flags: <defaults>
</compile_context>

<pallas_src>
import jax
import jax.numpy as jnp
from jax.experimental import pallas as pl
from jax.experimental.pallas import tpu as pltpu

LANE = 128
SUBLANE = 8
_HI = jax.lax.Precision.HIGHEST


def _round_up(x, m):
    return ((x + m - 1) // m) * m


# ---------------------------------------------------------------------------
# Fused kernel: node phase (once, step 0) + per-edge-tile gather phase
# ---------------------------------------------------------------------------
def nri_fused_kernel(ids_ref,       # (te, 2) int32: [src_id, dst_id + N_pad]
                     feat_ref,      # (Np, Dp)  resident
                     adj_t_ref,     # (Np, Np)  resident   adj^T[v, u]
                     indeg_ref,     # (Np, 1)   resident   in-degree
                     w_cat_ref,     # (Dp, 2Dp) resident   [w_src | w_dst]
                     b_cat_ref,     # (1, 2Dp)  resident   [  0   | b_dst]
                     w_res_ref,     # (Dp, Dp)  resident
                     b_res_ref,     # (1, Dp)   resident
                     out_ref,       # (te, D)
                     sd2_ref):      # VMEM scratch (2Np, Dp): [src2 ; dst2]
    np_, dp = feat_ref.shape

    # ---- node phase: run once, result persists in VMEM scratch -----------
    @pl.when(pl.program_id(0) == 0)
    def _():
        w_cat = w_cat_ref[...]
        b_cat = b_cat_ref[...]
        # fused src/dst transform: one MXU pass instead of two
        h = jnp.dot(feat_ref[...], w_cat,
                    preferred_element_type=jnp.float32, precision=_HI) + b_cat
        src_feat = h[:, :dp]
        dst_feat = h[:, dp:]
        # sum_{u in N(v)} (src[u] + dst[v]) = (A^T @ src)[v] + indeg[v]*dst[v]
        agg = (jnp.dot(adj_t_ref[...], src_feat,
                       preferred_element_type=jnp.float32, precision=_HI)
               + indeg_ref[...] * dst_feat)
        out_feat = (jnp.dot(agg, w_res_ref[...],
                            preferred_element_type=jnp.float32, precision=_HI)
                    + b_res_ref[...])
        h2 = jnp.dot(out_feat, w_cat,
                     preferred_element_type=jnp.float32, precision=_HI) + b_cat
        sd2_ref[0:np_, :] = h2[:, :dp]          # src2
        sd2_ref[np_:2 * np_, :] = h2[:, dp:]    # dst2

    # ---- edge phase: out[e] = src2[src[e]] + dst2[dst[e]] -----------------
    te = ids_ref.shape[0]
    two_n = sd2_ref.shape[0]
    ids = ids_ref[...]                                  # (te, 2)
    col = jax.lax.broadcasted_iota(jnp.int32, (te, two_n), 1)
    # one fused one-hot over both halves (src ids < Np <= dst ids, disjoint)
    sel = jnp.logical_or(col == ids[:, 0:1], col == ids[:, 1:2])
    sel_f = sel.astype(jnp.float32)
    res = jnp.dot(sel_f, sd2_ref[...],
                  preferred_element_type=jnp.float32, precision=_HI)
    out_ref[...] = res[:, :out_ref.shape[1]]


# ---------------------------------------------------------------------------
# One-time prep (hoisted out of the hot path for static graphs/params)
# ---------------------------------------------------------------------------
def prepare_nri(src_ids, dst_ids, num_nodes, feat_dim,
                w_src, w_dst, b_dst, w_res, b_res, *, edge_tile=256):
    f32 = jnp.float32
    n, d = int(num_nodes), int(feat_dim)
    e = int(src_ids.shape[0])

    dp = _round_up(d, LANE)                       # lane-dense feature dim
    np_ = _round_up(max(n, 1), SUBLANE)           # sublane-aligned node count
    if e > 0:
        te = _round_up(max(min(edge_tile, e), 1), SUBLANE)
        ep = _round_up(e, te)
    else:                                         # degenerate: no edges
        te, ep = SUBLANE, SUBLANE

    # padded parameters (zero padding keeps padded lanes exactly 0)
    w_src_p = jnp.zeros((dp, dp), f32).at[:d, :d].set(jnp.asarray(w_src, f32))
    w_dst_p = jnp.zeros((dp, dp), f32).at[:d, :d].set(jnp.asarray(w_dst, f32))
    w_res_p = jnp.zeros((dp, dp), f32).at[:d, :d].set(jnp.asarray(w_res, f32))
    b_dst_p = jnp.zeros((1, dp), f32).at[:, :d].set(jnp.reshape(jnp.asarray(b_dst, f32), (1, d)))
    b_res_p = jnp.zeros((1, dp), f32).at[:, :d].set(jnp.reshape(jnp.asarray(b_res, f32), (1, d)))
    w_cat = jnp.concatenate([w_src_p, w_dst_p], axis=1)                   # (Dp, 2Dp)
    b_cat = jnp.concatenate([jnp.zeros((1, dp), f32), b_dst_p], axis=1)   # (1, 2Dp)

    src_i = src_ids.astype(jnp.int32)
    dst_i = dst_ids.astype(jnp.int32)
    # dense graph operators for the node-side reduction (O(E) build)
    adj_t = jnp.zeros((np_, np_), f32).at[dst_i, src_i].add(1.0)
    indeg = jnp.zeros((np_, 1), f32).at[dst_i, 0].add(1.0)

    # merged edge-id table; dst column pre-offset into the dst2 half of sd2.
    # Pad edges select (src2[0] + dst2[0]) and are sliced off after the call.
    ids = (jnp.zeros((ep, 2), jnp.int32)
           .at[:, 1].set(np_)
           .at[:e, 0].set(src_i)
           .at[:e, 1].set(dst_i + np_))

    return dict(w_cat=w_cat, b_cat=b_cat, w_res_p=w_res_p, b_res_p=b_res_p,
                adj_t=adj_t, indeg=indeg, ids=ids,
                dims=dict(n=n, d=d, e=e, dp=dp, np_=np_, te=te, ep=ep))


def nri_message_passing_prepared(prep, feat):
    f32 = jnp.float32
    dims = prep["dims"]
    n, d, e = dims["n"], dims["d"], dims["e"]
    dp, np_, te, ep = dims["dp"], dims["np_"], dims["te"], dims["ep"]

    if e == 0:
        return jnp.zeros((0, d), f32)

    feat_p = jnp.zeros((np_, dp), f32).at[:n, :d].set(feat.astype(f32))

    const = lambda i: (0, 0)
    out = pl.pallas_call(
        nri_fused_kernel,
        out_shape=jax.ShapeDtypeStruct((ep, d), f32),
        grid=(ep // te,),
        in_specs=[
            pl.BlockSpec((te, 2), lambda i: (i, 0)),      # edge ids (pipelined)
            pl.BlockSpec((np_, dp), const),               # feat      (resident)
            pl.BlockSpec((np_, np_), const),              # adj^T     (resident)
            pl.BlockSpec((np_, 1), const),                # in-degree (resident)
            pl.BlockSpec((dp, 2 * dp), const),            # [w_src | w_dst]
            pl.BlockSpec((1, 2 * dp), const),             # [0 | b_dst]
            pl.BlockSpec((dp, dp), const),                # w_res
            pl.BlockSpec((1, dp), const),                 # b_res
        ],
        out_specs=pl.BlockSpec((te, d), lambda i: (i, 0)),
        scratch_shapes=[pltpu.VMEM((2 * np_, dp), f32)],  # [src2 ; dst2]
        compiler_params=pltpu.CompilerParams(
            dimension_semantics=("arbitrary",)),          # step 0 fills scratch
    )(prep["ids"], feat_p, prep["adj_t"], prep["indeg"],
      prep["w_cat"], prep["b_cat"], prep["w_res_p"], prep["b_res_p"])

    return out[:e, :]


def nri_message_passing(feat, src_ids, dst_ids,
                        w_src, w_dst, b_dst, w_res, b_res, *, edge_tile=256):
    """feat: (N, D); src_ids/dst_ids: (E,) int; weights stored (D_in, D_out)."""
    n, d = feat.shape
    prep = prepare_nri(src_ids, dst_ids, n, d,
                       w_src, w_dst, b_dst, w_res, b_res, edge_tile=edge_tile)
    return nri_message_passing_prepared(prep, feat)


# ---------------------------------------------------------------------------
# Pure-JAX reference matching the DGL semantics exactly
# ---------------------------------------------------------------------------
def reference(feat, src_ids, dst_ids, w_src, w_dst, b_dst, w_res, b_res):
    src_feat = jnp.dot(feat, w_src, precision=_HI)
    dst_feat = jnp.dot(feat, w_dst, precision=_HI) + b_dst
    msg = src_feat[src_ids] + dst_feat[dst_ids]          # u_add_v
    agg = jnp.zeros_like(feat).at[dst_ids].add(msg)      # sum reduce at dst
    out_feat = jnp.dot(agg, w_res, precision=_HI) + b_res
    src2 = jnp.dot(out_feat, w_src, precision=_HI)
    dst2 = jnp.dot(out_feat, w_dst, precision=_HI) + b_dst
    return src2[src_ids] + dst2[dst_ids]                 # apply_edges u_add_v


if __name__ == "__main__":
    N = 16      # number of nodes
    D = 32      # feat_dim
    E = 48      # number of edges

    key = jax.random.PRNGKey(0)
    k_feat, k_src, k_dst, kw1, kw2, kb2, kw3, kb3 = jax.random.split(key, 8)

    feat = jax.random.normal(k_feat, (N, D), dtype=jnp.float32)
    src_ids = jax.random.randint(k_src, (E,), 0, N)
    dst_ids = jax.random.randint(k_dst, (E,), 0, N)

    # parameters (PyTorch nn.Linear weight is (out, in); stored transposed)
    scale = 1.0 / jnp.sqrt(jnp.float32(D))
    w_src = jax.random.uniform(kw1, (D, D), jnp.float32, -scale, scale)   # src_trans (no bias)
    w_dst = jax.random.uniform(kw2, (D, D), jnp.float32, -scale, scale)   # dst_trans
    b_dst = jax.random.uniform(kb2, (1, D), jnp.float32, -scale, scale)
    w_res = jax.random.uniform(kw3, (D, D), jnp.float32, -scale, scale)   # res_trans
    b_res = jax.random.uniform(kb3, (1, D), jnp.float32, -scale, scale)

    out = nri_message_passing(feat, src_ids, dst_ids,
                              w_src, w_dst, b_dst, w_res, b_res)
    out = jax.block_until_ready(out)

    ref = reference(feat, src_ids, dst_ids, w_src, w_dst, b_dst, w_res, b_res)
    assert out.shape == (E, D)
    assert jnp.allclose(out, ref, atol=1e-4, rtol=1e-4), "mismatch vs reference"

    print("KERNEL_OK")
</pallas_src>

<mosaic_0001>
module attributes {stable_mosaic.version = 11 : i64} {
  func.func @nri_fused_kernel(%arg0: i32, %arg1: memref<48x2xi32, #tpu.memory_space<vmem>>, %arg2: memref<16x128xf32, #tpu.memory_space<vmem>>, %arg3: memref<16x16xf32, #tpu.memory_space<vmem>>, %arg4: memref<16x1xf32, #tpu.memory_space<vmem>>, %arg5: memref<128x256xf32, #tpu.memory_space<vmem>>, %arg6: memref<1x256xf32, #tpu.memory_space<vmem>>, %arg7: memref<128x128xf32, #tpu.memory_space<vmem>>, %arg8: memref<1x128xf32, #tpu.memory_space<vmem>>, %arg9: memref<48x32xf32, #tpu.memory_space<vmem>>, %arg10: memref<32x128xf32, #tpu.memory_space<vmem>>) attributes {dimension_semantics = [#tpu.dimension_semantics<arbitrary>], iteration_bounds = array<i64: 1>, scalar_prefetch = 0 : i64, scratch_operands = 1 : i64, tpu.core_type = #tpu.core_type<tc>, window_params = [{transform_indices = @transform_0, window_bounds = array<i64: 48, 2>}, {pipeline_mode = #tpu.pipeline_mode<synchronous>, transform_indices = @transform_1, window_bounds = array<i64: 16, 128>}, {pipeline_mode = #tpu.pipeline_mode<synchronous>, transform_indices = @transform_2, window_bounds = array<i64: 16, 16>}, {pipeline_mode = #tpu.pipeline_mode<synchronous>, transform_indices = @transform_3, window_bounds = array<i64: 16, 1>}, {pipeline_mode = #tpu.pipeline_mode<synchronous>, transform_indices = @transform_4, window_bounds = array<i64: 128, 256>}, {pipeline_mode = #tpu.pipeline_mode<synchronous>, transform_indices = @transform_5, window_bounds = array<i64: 1, 256>}, {pipeline_mode = #tpu.pipeline_mode<synchronous>, transform_indices = @transform_6, window_bounds = array<i64: 128, 128>}, {pipeline_mode = #tpu.pipeline_mode<synchronous>, transform_indices = @transform_7, window_bounds = array<i64: 1, 128>}, {transform_indices = @transform_8, window_bounds = array<i64: 48, 32>}]} {
    %c0_i32 = arith.constant 0 : i32
    %0 = arith.cmpi eq, %arg0, %c0_i32 : i32
    %1 = arith.extui %0 : i1 to i32
    %c0_i32_0 = arith.constant 0 : i32
    %2 = arith.cmpi ne, %1, %c0_i32_0 : i32
    scf.if %2 {
      %c0_6 = arith.constant 0 : index
      %c0_7 = arith.constant 0 : index
      %18 = vector.load %arg5[%c0_6, %c0_7] : memref<128x256xf32, #tpu.memory_space<vmem>>, vector<128x256xf32>
      %c0_8 = arith.constant 0 : index
      %c0_9 = arith.constant 0 : index
      %19 = vector.load %arg6[%c0_8, %c0_9] : memref<1x256xf32, #tpu.memory_space<vmem>>, vector<1x256xf32>
      %c0_10 = arith.constant 0 : index
      %c0_11 = arith.constant 0 : index
      %20 = vector.load %arg2[%c0_10, %c0_11] : memref<16x128xf32, #tpu.memory_space<vmem>>, vector<16x128xf32>
      %cst_12 = arith.constant dense<0.000000e+00> : vector<16x256xf32>
      %21 = tpu.matmul %20, %18, %cst_12 {dimension_numbers = #tpu.dot_dimension_numbers<[1], [0], [0], [1], [0, 0, 1, 1], [], []>, precision = #tpu.contract_precision<fp32>} : vector<16x128xf32>, vector<128x256xf32>, vector<16x256xf32> -> vector<16x256xf32>
      %22 = vector.broadcast %19 : vector<1x256xf32> to vector<16x256xf32>
      %23 = arith.addf %21, %22 : vector<16x256xf32>
      %24 = vector.extract_strided_slice %23 {offsets = [0, 0], sizes = [16, 128], strides = [1, 1]} : vector<16x256xf32> to vector<16x128xf32>
      %25 = vector.extract_strided_slice %23 {offsets = [0, 128], sizes = [16, 128], strides = [1, 1]} : vector<16x256xf32> to vector<16x128xf32>
      %c0_13 = arith.constant 0 : index
      %c0_14 = arith.constant 0 : index
      %26 = vector.load %arg3[%c0_13, %c0_14] : memref<16x16xf32, #tpu.memory_space<vmem>>, vector<16x16xf32>
      %cst_15 = arith.constant dense<0.000000e+00> : vector<16x128xf32>
      %27 = tpu.matmul %26, %24, %cst_15 {dimension_numbers = #tpu.dot_dimension_numbers<[1], [0], [0], [1], [0, 0, 1, 1], [], []>, precision = #tpu.contract_precision<fp32>} : vector<16x16xf32>, vector<16x128xf32>, vector<16x128xf32> -> vector<16x128xf32>
      %c0_16 = arith.constant 0 : index
      %c0_17 = arith.constant 0 : index
      %28 = vector.load %arg4[%c0_16, %c0_17] : memref<16x1xf32, #tpu.memory_space<vmem>>, vector<16x1xf32>
      %29 = vector.broadcast %28 : vector<16x1xf32> to vector<16x128xf32>
      %30 = arith.mulf %29, %25 : vector<16x128xf32>
      %31 = arith.addf %27, %30 : vector<16x128xf32>
      %c0_18 = arith.constant 0 : index
      %c0_19 = arith.constant 0 : index
      %32 = vector.load %arg7[%c0_18, %c0_19] : memref<128x128xf32, #tpu.memory_space<vmem>>, vector<128x128xf32>
      %cst_20 = arith.constant dense<0.000000e+00> : vector<16x128xf32>
      %33 = tpu.matmul %31, %32, %cst_20 {dimension_numbers = #tpu.dot_dimension_numbers<[1], [0], [0], [1], [0, 0, 1, 1], [], []>, precision = #tpu.contract_precision<fp32>} : vector<16x128xf32>, vector<128x128xf32>, vector<16x128xf32> -> vector<16x128xf32>
      %c0_21 = arith.constant 0 : index
      %c0_22 = arith.constant 0 : index
      %34 = vector.load %arg8[%c0_21, %c0_22] : memref<1x128xf32, #tpu.memory_space<vmem>>, vector<1x128xf32>
      %35 = vector.broadcast %34 : vector<1x128xf32> to vector<16x128xf32>
      %36 = arith.addf %33, %35 : vector<16x128xf32>
      %cst_23 = arith.constant dense<0.000000e+00> : vector<16x256xf32>
      %37 = tpu.matmul %36, %18, %cst_23 {dimension_numbers = #tpu.dot_dimension_numbers<[1], [0], [0], [1], [0, 0, 1, 1], [], []>, precision = #tpu.contract_precision<fp32>} : vector<16x128xf32>, vector<128x256xf32>, vector<16x256xf32> -> vector<16x256xf32>
      %38 = vector.broadcast %19 : vector<1x256xf32> to vector<16x256xf32>
      %39 = arith.addf %37, %38 : vector<16x256xf32>
      %40 = vector.extract_strided_slice %39 {offsets = [0, 0], sizes = [16, 128], strides = [1, 1]} : vector<16x256xf32> to vector<16x128xf32>
      %c0_24 = arith.constant 0 : index
      %c0_25 = arith.constant 0 : index
      %41 = vector.load %arg10[%c0_24, %c0_25] : memref<32x128xf32, #tpu.memory_space<vmem>>, vector<16x128xf32>
      tpu.vector_store %arg10[%c0_24, %c0_25], %40 {strides = array<i32>} : memref<32x128xf32, #tpu.memory_space<vmem>>, vector<16x128xf32>,
      %42 = vector.extract_strided_slice %39 {offsets = [0, 128], sizes = [16, 128], strides = [1, 1]} : vector<16x256xf32> to vector<16x128xf32>
      %c16 = arith.constant 16 : index
      %c0_26 = arith.constant 0 : index
      %43 = vector.load %arg10[%c16, %c0_26] : memref<32x128xf32, #tpu.memory_space<vmem>>, vector<16x128xf32>
      tpu.vector_store %arg10[%c16, %c0_26], %42 {strides = array<i32>} : memref<32x128xf32, #tpu.memory_space<vmem>>, vector<16x128xf32>,
    } else {
    }
    %c0 = arith.constant 0 : index
    %c0_1 = arith.constant 0 : index
    %3 = vector.load %arg1[%c0, %c0_1] : memref<48x2xi32, #tpu.memory_space<vmem>>, vector<48x2xi32>
    %4 = tpu.iota {dimensions = array<i32: 1>} : vector<48x32xi32>
    %5 = vector.extract_strided_slice %3 {offsets = [0, 0], sizes = [48, 1], strides = [1, 1]} : vector<48x2xi32> to vector<48x1xi32>
    %6 = vector.broadcast %5 : vector<48x1xi32> to vector<48x32xi32>
    %7 = arith.cmpi eq, %4, %6 : vector<48x32xi32>
    %8 = vector.extract_strided_slice %3 {offsets = [0, 1], sizes = [48, 1], strides = [1, 1]} : vector<48x2xi32> to vector<48x1xi32>
    %9 = vector.broadcast %8 : vector<48x1xi32> to vector<48x32xi32>
    %10 = arith.cmpi eq, %4, %9 : vector<48x32xi32>
    %11 = arith.ori %7, %10 : vector<48x32xi1>
    %12 = arith.extui %11 : vector<48x32xi1> to vector<48x32xi32>
    %13 = arith.sitofp %12 : vector<48x32xi32> to vector<48x32xf32>
    %c0_2 = arith.constant 0 : index
    %c0_3 = arith.constant 0 : index
    %14 = vector.load %arg10[%c0_2, %c0_3] : memref<32x128xf32, #tpu.memory_space<vmem>>, vector<32x128xf32>
    %cst = arith.constant dense<0.000000e+00> : vector<48x128xf32>
    %15 = tpu.matmul %13, %14, %cst {dimension_numbers = #tpu.dot_dimension_numbers<[1], [0], [0], [1], [0, 0, 1, 1], [], []>, precision = #tpu.contract_precision<fp32>} : vector<48x32xf32>, vector<32x128xf32>, vector<48x128xf32> -> vector<48x128xf32>
    %16 = vector.extract_strided_slice %15 {offsets = [0, 0], sizes = [48, 32], strides = [1, 1]} : vector<48x128xf32> to vector<48x32xf32>
    %c0_4 = arith.constant 0 : index
    %c0_5 = arith.constant 0 : index
    %17 = vector.load %arg9[%c0_4, %c0_5] : memref<48x32xf32, #tpu.memory_space<vmem>>, vector<48x32xf32>
    tpu.vector_store %arg9[%c0_4, %c0_5], %16 {strides = array<i32>} : memref<48x32xf32, #tpu.memory_space<vmem>>, vector<48x32xf32>,
    return
  }
  func.func @transform_0(%arg0: i32) -> (i32, i32) {
    %c0_i32 = arith.constant 0 : i32
    %c0_i32_0 = arith.constant 0 : i32
    return %arg0, %c0_i32 : i32, i32
  }
  func.func @transform_1(%arg0: i32) -> (i32, i32) {
    %c0_i32 = arith.constant 0 : i32
    %c0_i32_0 = arith.constant 0 : i32
    %c0_i32_1 = arith.constant 0 : i32
    return %c0_i32, %c0_i32_0 : i32, i32
  }
  func.func @transform_2(%arg0: i32) -> (i32, i32) {
    %c0_i32 = arith.constant 0 : i32
    %c0_i32_0 = arith.constant 0 : i32
    %c0_i32_1 = arith.constant 0 : i32
    return %c0_i32, %c0_i32_0 : i32, i32
  }
  func.func @transform_3(%arg0: i32) -> (i32, i32) {
    %c0_i32 = arith.constant 0 : i32
    %c0_i32_0 = arith.constant 0 : i32
    %c0_i32_1 = arith.constant 0 : i32
    return %c0_i32, %c0_i32_0 : i32, i32
  }
  func.func @transform_4(%arg0: i32) -> (i32, i32) {
    %c0_i32 = arith.constant 0 : i32
    %c0_i32_0 = arith.constant 0 : i32
    %c0_i32_1 = arith.constant 0 : i32
    return %c0_i32, %c0_i32_0 : i32, i32
  }
  func.func @transform_5(%arg0: i32) -> (i32, i32) {
    %c0_i32 = arith.constant 0 : i32
    %c0_i32_0 = arith.constant 0 : i32
    %c0_i32_1 = arith.constant 0 : i32
    return %c0_i32, %c0_i32_0 : i32, i32
  }
  func.func @transform_6(%arg0: i32) -> (i32, i32) {
    %c0_i32 = arith.constant 0 : i32
    %c0_i32_0 = arith.constant 0 : i32
    %c0_i32_1 = arith.constant 0 : i32
    return %c0_i32, %c0_i32_0 : i32, i32
  }
  func.func @transform_7(%arg0: i32) -> (i32, i32) {
    %c0_i32 = arith.constant 0 : i32
    %c0_i32_0 = arith.constant 0 : i32
    %c0_i32_1 = arith.constant 0 : i32
    return %c0_i32, %c0_i32_0 : i32, i32
  }
  func.func @transform_8(%arg0: i32) -> (i32, i32) {
    %c0_i32 = arith.constant 0 : i32
    %c0_i32_0 = arith.constant 0 : i32
    return %arg0, %c0_i32 : i32, i32
  }
}

</mosaic_0001>

<llo_original>
// kernel: tpu_custom_call.1
$region0: #{tpu_custom_call.1}
  #allocation0 [shape = 'u32[]', space=smem, size = 0x4, offset = 0x4, fixed_abs, tag = 'smem constant byte address 0x4 - core index']
  #allocation1 [shape = 'u32[144,128]{1,0:T(1,128)}', space=vmem, size = 0x12000, scoped, tag = 'internal scratch']
  #allocation2 [shape = 'f32[32,128]{1,0:T(8,128)}', space=vmem, size = 0x4000, scoped, tag = 'scratch operand']
  %s0 = inlined_call_operand.vmem [shape: s32[48,2], index: 0, kind: input, shape index: {}]
  %s1 = inlined_call_operand.vmem [shape: f32[16,128], index: 1, kind: input, shape index: {}]
  %s2 = inlined_call_operand.vmem [shape: f32[16,16], index: 2, kind: input, shape index: {}]
  %s3 = inlined_call_operand.vmem [shape: f32[16,1], index: 3, kind: input, shape index: {}]
  %s4 = inlined_call_operand.hbm [shape: f32[128,256], index: 4, kind: input, shape index: {}]
  %s5 = inlined_call_operand.vmem [shape: f32[1,256], index: 5, kind: input, shape index: {}]
  %s6 = inlined_call_operand.hbm [shape: f32[128,128], index: 6, kind: input, shape index: {}]
  %s7 = inlined_call_operand.vmem [shape: f32[1,128], index: 7, kind: input, shape index: {}]
  %s8 = inlined_call_operand.vmem [shape: f32[48,32], index: 8, kind: output, shape index: {}]
  %s9 = sld [smem:[#allocation0]]
  $region54: #{tpu_custom_call.1} parent=0
    _
  %s11 = ssub.s32 1, %s9
  %s12 = scalar_select 0, %s11, %s9
  $region1: #{tpu_custom_call.1} parent=0
    #allocation3 [shape = 'u8[131072]{0}', space=vmem, size = 0x20000, scoped, tag = 'input window, operand 4, single buffered']
    #allocation4 [shape = 's32[1]{0}', space=sflag, size = 0x4, scoped, tag = 'scoped memory for tpu_custom_call.1']
    #allocation5 [shape = 'u8[65536]{0}', space=vmem, size = 0x10000, scoped, tag = 'input window, operand 6, single buffered']
    #allocation6 [shape = 's32[1]{0}', space=sflag, size = 0x4, scoped, tag = 'scoped memory for tpu_custom_call.1']
    %13 = vsyncpa [#allocation4], 0
    %14 = vsyncpa [#allocation6], 0
    // Predicated region
    $region2: #{tpu_custom_call.1} parent=1 // pred_check
      _
    $region3: #{tpu_custom_call.1} parent=1 // pred_check_branch
      %16 = sbr.rel (0) target = $region5
    $region4: #{tpu_custom_call.1} parent=1 // pred_region
      _
    $region5: #{tpu_custom_call.1} parent=1 // pred_fallthru
      _
    // Predicated region
    $region6: #{tpu_custom_call.1} parent=1 // pred_check
      _
    $region7: #{tpu_custom_call.1} parent=1 // pred_check_branch
      %18 = sbr.rel (0) target = $region9
    $region8: #{tpu_custom_call.1} parent=1 // pred_region
      _
    $region9: #{tpu_custom_call.1} parent=1 // pred_fallthru
      _
    // Predicated region
    $region10: #{tpu_custom_call.1} parent=1 // pred_check
      _
    $region11: #{tpu_custom_call.1} parent=1 // pred_check_branch
      %20 = sbr.rel (0) target = $region13
    $region12: #{tpu_custom_call.1} parent=1 // pred_region
      _
    $region13: #{tpu_custom_call.1} parent=1 // pred_fallthru
      _
    // Predicated region
    $region14: #{tpu_custom_call.1} parent=1 // pred_check
      _
    $region15: #{tpu_custom_call.1} parent=1 // pred_check_branch
      %22 = sbr.rel (0) target = $region17
    $region16: #{tpu_custom_call.1} parent=1 // pred_region
      _
    $region17: #{tpu_custom_call.1} parent=1 // pred_fallthru
      _
    // Predicated region
    $region18: #{tpu_custom_call.1} parent=1 // pred_check
      _
    $region19: #{tpu_custom_call.1} parent=1 // pred_check_branch
      %24 = sbr.rel (0) target = $region21
    $region20: #{tpu_custom_call.1} parent=1 // pred_region
      %s26 = ssub.s32 4096, 4096
      %27 = vsyncadd [#allocation4], %s26
      %s28 = sshll.u32 [#allocation3], 4
      %s29 = int_to_ptr.vmem [resolvable:$true] %s28
      %34 = dma.hbm_to_vmem [thread:$0]  %s4, 4096, %s29, [#allocation4], 256, 256, 16
    $region21: #{tpu_custom_call.1} parent=1 // pred_fallthru
      _
    // Predicated region
    $region22: #{tpu_custom_call.1} parent=1 // pred_check
      _
    $region23: #{tpu_custom_call.1} parent=1 // pred_check_branch
      %36 = sbr.rel (0) target = $region25
    $region24: #{tpu_custom_call.1} parent=1 // pred_region
      _
    $region25: #{tpu_custom_call.1} parent=1 // pred_fallthru
      _
    // Predicated region
    $region26: #{tpu_custom_call.1} parent=1 // pred_check
      _
    $region27: #{tpu_custom_call.1} parent=1 // pred_check_branch
      %38 = sbr.rel (0) target = $region29
    $region28: #{tpu_custom_call.1} parent=1 // pred_region
      %s40 = ssub.s32 2048, 2048
      %41 = vsyncadd [#allocation6], %s40
      %s42 = sshll.u32 [#allocation5], 4
      %s43 = int_to_ptr.vmem [resolvable:$true] %s42
      %48 = dma.hbm_to_vmem [thread:$0]  %s6, 2048, %s43, [#allocation6], 128, 128, 8
    $region29: #{tpu_custom_call.1} parent=1 // pred_fallthru
      _
    // Predicated region
    $region30: #{tpu_custom_call.1} parent=1 // pred_check
      _
    $region31: #{tpu_custom_call.1} parent=1 // pred_check_branch
      %50 = sbr.rel (0) target = $region33
    $region32: #{tpu_custom_call.1} parent=1 // pred_region
      _
    $region33: #{tpu_custom_call.1} parent=1 // pred_fallthru
      _
    // Predicated region
    $region34: #{tpu_custom_call.1} parent=1 // pred_check
      _
    $region35: #{tpu_custom_call.1} parent=1 // pred_check_branch
      %52 = sbr.rel (0) target = $region37
    $region36: #{tpu_custom_call.1} parent=1 // pred_region
      %53 = dma.done [#allocation4], 4096
    $region37: #{tpu_custom_call.1} parent=1 // pred_fallthru
      _
    // Predicated region
    $region38: #{tpu_custom_call.1} parent=1 // pred_check
      _
    $region39: #{tpu_custom_call.1} parent=1 // pred_check_branch
      %55 = sbr.rel (0) target = $region41
    $region40: #{tpu_custom_call.1} parent=1 // pred_region
      %56 = dma.done [#allocation6], 2048
    $region41: #{tpu_custom_call.1} parent=1 // pred_fallthru
      _
    %p57 = scmp.eq.s32.totalorder 0, 0
    // Predicated region
    $region42: #{tpu_custom_call.1} parent=1 // pred_check
      %p58 = pneg %p57
    $region43: #{tpu_custom_call.1} parent=1 // pred_check_branch
      %60 = sbr.rel (%p58) target = $region45
    $region44: #{tpu_custom_call.1} parent=1 // pred_region
      %v61 = vld [vmem:[#allocation3] sm:$0xff]
      %v62 = vld [vmem:[#allocation3 + $0x8] sm:$0xff]
      %v63 = vld [vmem:[#allocation3 + $0x10] sm:$0xff]
      %v64 = vld [vmem:[#allocation3 + $0x18] sm:$0xff]
      %v65 = vld [vmem:[#allocation3 + $0x20] sm:$0xff]
      %v66 = vld [vmem:[#allocation3 + $0x28] sm:$0xff]
      %v67 = vld [vmem:[#allocation3 + $0x30] sm:$0xff]
      %v68 = vld [vmem:[#allocation3 + $0x38] sm:$0xff]
      %v69 = vld [vmem:[#allocation3 + $0x40] sm:$0xff]
      %v70 = vld [vmem:[#allocation3 + $0x48] sm:$0xff]
      %v71 = vld [vmem:[#allocation3 + $0x50] sm:$0xff]
      %v72 = vld [vmem:[#allocation3 + $0x58] sm:$0xff]
      %v73 = vld [vmem:[#allocation3 + $0x60] sm:$0xff]
      %v74 = vld [vmem:[#allocation3 + $0x68] sm:$0xff]
      %v75 = vld [vmem:[#allocation3 + $0x70] sm:$0xff]
      %v76 = vld [vmem:[#allocation3 + $0x78] sm:$0xff]
      %v77 = vld [vmem:[#allocation3 + $0x80] sm:$0xff]
      %v78 = vld [vmem:[#allocation3 + $0x88] sm:$0xff]
      %v79 = vld [vmem:[#allocation3 + $0x90] sm:$0xff]
      %v80 = vld [vmem:[#allocation3 + $0x98] sm:$0xff]
      %v81 = vld [vmem:[#allocation3 + $0xa0] sm:$0xff]
      %v82 = vld [vmem:[#allocation3 + $0xa8] sm:$0xff]
      %v83 = vld [vmem:[#allocation3 + $0xb0] sm:$0xff]
      %v84 = vld [vmem:[#allocation3 + $0xb8] sm:$0xff]
      %v85 = vld [vmem:[#allocation3 + $0xc0] sm:$0xff]
      %v86 = vld [vmem:[#allocation3 + $0xc8] sm:$0xff]
      %v87 = vld [vmem:[#allocation3 + $0xd0] sm:$0xff]
      %v88 = vld [vmem:[#allocation3 + $0xd8] sm:$0xff]
      %v89 = vld [vmem:[#allocation3 + $0xe0] sm:$0xff]
      %v90 = vld [vmem:[#allocation3 + $0xe8] sm:$0xff]
      %v91 = vld [vmem:[#allocation3 + $0xf0] sm:$0xff]
      %v92 = vld [vmem:[#allocation3 + $0xf8] sm:$0xff]
      %v93 = vld [vmem:[%s5] sm:$0x3]
      %v94 = vld [vmem:[%s1] sm:$0xff]
      %v95 = vld [vmem:[%s1 + $0x8] sm:$0xff]
      %v97 = vlaneseq
      %v98 = vshrl.u32 %v97, 7
      %v99 = vsub.s32 0, %v98
      %v100 = vrot.slane %v93, %v99
      %v101 = vlaneseq
      %v102 = vshrl.u32 %v101, 7
      %v103 = vsub.s32 1, %v102
      %v104 = vrot.slane %v93, %v103
      %v107 = vand.u32 %v62, 4294901760
      %108 = vmatprep.subr.mxu0 %v107
      %v109 = vand.u32 %v61, 4294901760
      %110 = vmatpush1.msra.mxu0 %v109
      %v111 = vand.u32 %v64, 4294901760
      %112 = vmatprep.subr.mxu0 %v111
      %v113 = vand.u32 %v63, 4294901760
      %114 = vmatpush1.msra.mxu0 %v113
      %v115 = vand.u32 %v66, 4294901760
      %116 = vmatprep.subr.mxu0 %v115
      %v117 = vand.u32 %v65, 4294901760
      %118 = vmatpush1.msra.mxu0 %v117
      %v119 = vand.u32 %v68, 4294901760
      %120 = vmatprep.subr.mxu0 %v119
      %v121 = vand.u32 %v67, 4294901760
      %122 = vmatpush1.msra.mxu0 %v121
      %v123 = vand.u32 %v70, 4294901760
      %124 = vmatprep.subr.mxu0 %v123
      %v125 = vand.u32 %v69, 4294901760
      %126 = vmatpush1.msra.mxu0 %v125
      %v127 = vand.u32 %v72, 4294901760
      %128 = vmatprep.subr.mxu0 %v127
      %v129 = vand.u32 %v71, 4294901760
      %130 = vmatpush1.msra.mxu0 %v129
      %v131 = vand.u32 %v74, 4294901760
      %132 = vmatprep.subr.mxu0 %v131
      %v133 = vand.u32 %v73, 4294901760
      %134 = vmatpush1.msra.mxu0 %v133
      %v135 = vand.u32 %v76, 4294901760
      %136 = vmatprep.subr.mxu0 %v135
      %v137 = vand.u32 %v75, 4294901760
      %138 = vmatpush1.msra.mxu0 %v137
      %v139 = vand.u32 %v78, 4294901760
      %140 = vmatprep.subr.mxu0 %v139
      %v141 = vand.u32 %v77, 4294901760
      %142 = vmatpush1.msra.mxu0 %v141
      %v143 = vand.u32 %v80, 4294901760
      %144 = vmatprep.subr.mxu0 %v143
      %v145 = vand.u32 %v79, 4294901760
      %146 = vmatpush1.msra.mxu0 %v145
      %v147 = vand.u32 %v82, 4294901760
      %148 = vmatprep.subr.mxu0 %v147
      %v149 = vand.u32 %v81, 4294901760
      %150 = vmatpush1.msra.mxu0 %v149
      %v151 = vand.u32 %v84, 4294901760
      %152 = vmatprep.subr.mxu0 %v151
      %v153 = vand.u32 %v83, 4294901760
      %154 = vmatpush1.msra.mxu0 %v153
      %v155 = vand.u32 %v86, 4294901760
      %156 = vmatprep.subr.mxu0 %v155
      %v157 = vand.u32 %v85, 4294901760
      %158 = vmatpush1.msra.mxu0 %v157
      %v159 = vand.u32 %v88, 4294901760
      %160 = vmatprep.subr.mxu0 %v159
      %v161 = vand.u32 %v87, 4294901760
      %162 = vmatpush1.msra.mxu0 %v161
      %v163 = vand.u32 %v90, 4294901760
      %164 = vmatprep.subr.mxu0 %v163
      %v165 = vand.u32 %v89, 4294901760
      %166 = vmatpush1.msra.mxu0 %v165
      %v167 = vand.u32 %v92, 4294901760
      %168 = vmatprep.subr.mxu0 %v167
      %v169 = vand.u32 %v91, 4294901760
      %170 = vmatpush1.msra.mxu0 %v169
      %171 = vmatprep.subr.mxu0 0.0
      %172 = vmatpush1.msra.mxu0 0.0
      %173 = vmatprep.subr.mxu0 0.0
      %174 = vmatpush1.msra.mxu0 0.0
      %175 = vmatprep.subr.mxu0 0.0
      %176 = vmatpush1.msra.mxu0 0.0
      %177 = vmatprep.subr.mxu0 0.0
      %178 = vmatpush1.msra.mxu0 0.0
      %179 = vmatprep.subr.mxu0 0.0
      %180 = vmatpush1.msra.mxu0 0.0
      %181 = vmatprep.subr.mxu0 0.0
      %182 = vmatpush1.msra.mxu0 0.0
      %183 = vmatprep.subr.mxu0 0.0
      %184 = vmatpush1.msra.mxu0 0.0
      %185 = vmatprep.subr.mxu0 0.0
      %186 = vmatpush1.msra.mxu0 0.0
      %187 = vmatprep.subr.mxu0 0.0
      %188 = vmatpush1.msra.mxu0 0.0
      %189 = vmatprep.subr.mxu0 0.0
      %190 = vmatpush1.msra.mxu0 0.0
      %191 = vmatprep.subr.mxu0 0.0
      %192 = vmatpush1.msra.mxu0 0.0
      %193 = vmatprep.subr.mxu0 0.0
      %194 = vmatpush1.msra.mxu0 0.0
      %195 = vmatprep.subr.mxu0 0.0
      %196 = vmatpush1.msra.mxu0 0.0
      %197 = vmatprep.subr.mxu0 0.0
      %198 = vmatpush1.msra.mxu0 0.0
      %199 = vmatprep.subr.mxu0 0.0
      %200 = vmatpush1.msra.mxu0 0.0
      %201 = vmatprep.subr.mxu0 0.0
      %202 = vmatpush1.msra.mxu0 0.0
      %203 = vmatprep.mubr.f32.mxu0 0.0
      %v204 = vand.u32 %v94, 4294901760
      %v205 = vsub.f32 %v94, %v204
      %v206 = vand.u32 %v205, 4294901760
      %v207 = vsub.f32 %v205, %v206
      %v208 = vand.u32 %v207, 4294901760
      %209 = vmatmul.mubr.f32.gmra.mrb[0].mxu0 %v208
      %v210 = vpop.f32.mrb[0].mxu0
      %v211 = vadd.f32 %v100, %v210
      %v212 = vpop.f32.mrb[0].mxu0
      %v213 = vadd.f32 %v104, %v212
      %214 = vmatprep.mubr.f32.mxu0 0.0
      %v215 = vand.u32 %v95, 4294901760
      %v216 = vsub.f32 %v95, %v215
      %v217 = vand.u32 %v216, 4294901760
      %v218 = vsub.f32 %v216, %v217
      %v219 = vand.u32 %v218, 4294901760
      %220 = vmatmul.mubr.f32.gmra.mrb[0].mxu0 %v219
      %v221 = vpop.f32.mrb[0].mxu0
      %v222 = vadd.f32 %v100, %v221
      %v223 = vpop.f32.mrb[0].mxu0
      %v224 = vadd.f32 %v104, %v223
      %225 = vdwg.mxu0
      %v226 = vand.u32 %v62, 4294901760
      %v227 = vsub.f32 %v62, %v226
      %v228 = vand.u32 %v227, 4294901760
      %v229 = vsub.f32 %v227, %v228
      %v230 = vand.u32 %v229, 4294901760
      %231 = vmatprep.subr.mxu0 %v230
      %v232 = vand.u32 %v61, 4294901760
      %v233 = vsub.f32 %v61, %v232
      %v234 = vand.u32 %v233, 4294901760
      %v235 = vsub.f32 %v233, %v234
      %v236 = vand.u32 %v235, 4294901760
      %237 = vmatpush1.msra.mxu0 %v236
      %v238 = vand.u32 %v64, 4294901760
      %v239 = vsub.f32 %v64, %v238
      %v240 = vand.u32 %v239, 4294901760
      %v241 = vsub.f32 %v239, %v240
      %v242 = vand.u32 %v241, 4294901760
      %243 = vmatprep.subr.mxu0 %v242
      %v244 = vand.u32 %v63, 4294901760
      %v245 = vsub.f32 %v63, %v244
      %v246 = vand.u32 %v245, 4294901760
      %v247 = vsub.f32 %v245, %v246
      %v248 = vand.u32 %v247, 4294901760
      %249 = vmatpush1.msra.mxu0 %v248
      %v250 = vand.u32 %v66, 4294901760
      %v251 = vsub.f32 %v66, %v250
      %v252 = vand.u32 %v251, 4294901760
      %v253 = vsub.f32 %v251, %v252
      %v254 = vand.u32 %v253, 4294901760
      %255 = vmatprep.subr.mxu0 %v254
      %v256 = vand.u32 %v65, 4294901760
      %v257 = vsub.f32 %v65, %v256
      %v258 = vand.u32 %v257, 4294901760
      %v259 = vsub.f32 %v257, %v258
      %v260 = vand.u32 %v259, 4294901760
      %261 = vmatpush1.msra.mxu0 %v260
      %v262 = vand.u32 %v68, 4294901760
      %v263 = vsub.f32 %v68, %v262
      %v264 = vand.u32 %v263, 4294901760
      %v265 = vsub.f32 %v263, %v264
      %v266 = vand.u32 %v265, 4294901760
      %267 = vmatprep.subr.mxu0 %v266
      %v268 = vand.u32 %v67, 4294901760
      %v269 = vsub.f32 %v67, %v268
      %v270 = vand.u32 %v269, 4294901760
      %v271 = vsub.f32 %v269, %v270
      %v272 = vand.u32 %v271, 4294901760
      %273 = vmatpush1.msra.mxu0 %v272
      %v274 = vand.u32 %v70, 4294901760
      %v275 = vsub.f32 %v70, %v274
      %v276 = vand.u32 %v275, 4294901760
      %v277 = vsub.f32 %v275, %v276
      %v278 = vand.u32 %v277, 4294901760
      %279 = vmatprep.subr.mxu0 %v278
      %v280 = vand.u32 %v69, 4294901760
      %v281 = vsub.f32 %v69, %v280
      %v282 = vand.u32 %v281, 4294901760
      %v283 = vsub.f32 %v281, %v282
      %v284 = vand.u32 %v283, 4294901760
      %285 = vmatpush1.msra.mxu0 %v284
      %v286 = vand.u32 %v72, 4294901760
      %v287 = vsub.f32 %v72, %v286
      %v288 = vand.u32 %v287, 4294901760
      %v289 = vsub.f32 %v287, %v288
      %v290 = vand.u32 %v289, 4294901760
      %291 = vmatprep.subr.mxu0 %v290
      %v292 = vand.u32 %v71, 4294901760
      %v293 = vsub.f32 %v71, %v292
      %v294 = vand.u32 %v293, 4294901760
      %v295 = vsub.f32 %v293, %v294
      %v296 = vand.u32 %v295, 4294901760
      %297 = vmatpush1.msra.mxu0 %v296
      %v298 = vand.u32 %v74, 4294901760
      %v299 = vsub.f32 %v74, %v298
      %v300 = vand.u32 %v299, 4294901760
      %v301 = vsub.f32 %v299, %v300
      %v302 = vand.u32 %v301, 4294901760
      %303 = vmatprep.subr.mxu0 %v302
      %v304 = vand.u32 %v73, 4294901760
      %v305 = vsub.f32 %v73, %v304
      %v306 = vand.u32 %v305, 4294901760
      %v307 = vsub.f32 %v305, %v306
      %v308 = vand.u32 %v307, 4294901760
      %309 = vmatpush1.msra.mxu0 %v308
      %v310 = vand.u32 %v76, 4294901760
      %v311 = vsub.f32 %v76, %v310
      %v312 = vand.u32 %v311, 4294901760
      %v313 = vsub.f32 %v311, %v312
      %v314 = vand.u32 %v313, 4294901760
      %315 = vmatprep.subr.mxu0 %v314
      %v316 = vand.u32 %v75, 4294901760
      %v317 = vsub.f32 %v75, %v316
      %v318 = vand.u32 %v317, 4294901760
      %v319 = vsub.f32 %v317, %v318
      %v320 = vand.u32 %v319, 4294901760
      %321 = vmatpush1.msra.mxu0 %v320
      %v322 = vand.u32 %v78, 4294901760
      %v323 = vsub.f32 %v78, %v322
      %v324 = vand.u32 %v323, 4294901760
      %v325 = vsub.f32 %v323, %v324
      %v326 = vand.u32 %v325, 4294901760
      %327 = vmatprep.subr.mxu0 %v326
      %v328 = vand.u32 %v77, 4294901760
      %v329 = vsub.f32 %v77, %v328
      %v330 = vand.u32 %v329, 4294901760
      %v331 = vsub.f32 %v329, %v330
      %v332 = vand.u32 %v331, 4294901760
      %333 = vmatpush1.msra.mxu0 %v332
      %v334 = vand.u32 %v80, 4294901760
      %v335 = vsub.f32 %v80, %v334
      %v336 = vand.u32 %v335, 4294901760
      %v337 = vsub.f32 %v335, %v336
      %v338 = vand.u32 %v337, 4294901760
      %339 = vmatprep.subr.mxu0 %v338
      %v340 = vand.u32 %v79, 4294901760
      %v341 = vsub.f32 %v79, %v340
      %v342 = vand.u32 %v341, 4294901760
      %v343 = vsub.f32 %v341, %v342
      %v344 = vand.u32 %v343, 4294901760
      %345 = vmatpush1.msra.mxu0 %v344
      %v346 = vand.u32 %v82, 4294901760
      %v347 = vsub.f32 %v82, %v346
      %v348 = vand.u32 %v347, 4294901760
      %v349 = vsub.f32 %v347, %v348
      %v350 = vand.u32 %v349, 4294901760
      %351 = vmatprep.subr.mxu0 %v350
      %v352 = vand.u32 %v81, 4294901760
      %v353 = vsub.f32 %v81, %v352
      %v354 = vand.u32 %v353, 4294901760
      %v355 = vsub.f32 %v353, %v354
      %v356 = vand.u32 %v355, 4294901760
      %357 = vmatpush1.msra.mxu0 %v356
      %v358 = vand.u32 %v84, 4294901760
      %v359 = vsub.f32 %v84, %v358
      %v360 = vand.u32 %v359, 4294901760
      %v361 = vsub.f32 %v359, %v360
      %v362 = vand.u32 %v361, 4294901760
      %363 = vmatprep.subr.mxu0 %v362
      %v364 = vand.u32 %v83, 4294901760
      %v365 = vsub.f32 %v83, %v364
      %v366 = vand.u32 %v365, 4294901760
      %v367 = vsub.f32 %v365, %v366
      %v368 = vand.u32 %v367, 4294901760
      %369 = vmatpush1.msra.mxu0 %v368
      %v370 = vand.u32 %v86, 4294901760
      %v371 = vsub.f32 %v86, %v370
      %v372 = vand.u32 %v371, 4294901760
      %v373 = vsub.f32 %v371, %v372
      %v374 = vand.u32 %v373, 4294901760
      %375 = vmatprep.subr.mxu0 %v374
      %v376 = vand.u32 %v85, 4294901760
      %v377 = vsub.f32 %v85, %v376
      %v378 = vand.u32 %v377, 4294901760
      %v379 = vsub.f32 %v377, %v378
      %v380 = vand.u32 %v379, 4294901760
      %381 = vmatpush1.msra.mxu0 %v380
      %v382 = vand.u32 %v88, 4294901760
      %v383 = vsub.f32 %v88, %v382
      %v384 = vand.u32 %v383, 4294901760
      %v385 = vsub.f32 %v383, %v384
      %v386 = vand.u32 %v385, 4294901760
      %387 = vmatprep.subr.mxu0 %v386
      %v388 = vand.u32 %v87, 4294901760
      %v389 = vsub.f32 %v87, %v388
      %v390 = vand.u32 %v389, 4294901760
      %v391 = vsub.f32 %v389, %v390
      %v392 = vand.u32 %v391, 4294901760
      %393 = vmatpush1.msra.mxu0 %v392
      %v394 = vand.u32 %v90, 4294901760
      %v395 = vsub.f32 %v90, %v394
      %v396 = vand.u32 %v395, 4294901760
      %v397 = vsub.f32 %v395, %v396
      %v398 = vand.u32 %v397, 4294901760
      %399 = vmatprep.subr.mxu0 %v398
      %v400 = vand.u32 %v89, 4294901760
      %v401 = vsub.f32 %v89, %v400
      %v402 = vand.u32 %v401, 4294901760
      %v403 = vsub.f32 %v401, %v402
      %v404 = vand.u32 %v403, 4294901760
      %405 = vmatpush1.msra.mxu0 %v404
      %v406 = vand.u32 %v92, 4294901760
      %v407 = vsub.f32 %v92, %v406
      %v408 = vand.u32 %v407, 4294901760
      %v409 = vsub.f32 %v407, %v408
      %v410 = vand.u32 %v409, 4294901760
      %411 = vmatprep.subr.mxu0 %v410
      %v412 = vand.u32 %v91, 4294901760
      %v413 = vsub.f32 %v91, %v412
      %v414 = vand.u32 %v413, 4294901760
      %v415 = vsub.f32 %v413, %v414
      %v416 = vand.u32 %v415, 4294901760
      %417 = vmatpush1.msra.mxu0 %v416
      %418 = vmatprep.subr.mxu0 0.0
      %419 = vmatpush1.msra.mxu0 0.0
      %420 = vmatprep.subr.mxu0 0.0
      %421 = vmatpush1.msra.mxu0 0.0
      %422 = vmatprep.subr.mxu0 0.0
      %423 = vmatpush1.msra.mxu0 0.0
      %424 = vmatprep.subr.mxu0 0.0
      %425 = vmatpush1.msra.mxu0 0.0
      %426 = vmatprep.subr.mxu0 0.0
      %427 = vmatpush1.msra.mxu0 0.0
      %428 = vmatprep.subr.mxu0 0.0
      %429 = vmatpush1.msra.mxu0 0.0
      %430 = vmatprep.subr.mxu0 0.0
      %431 = vmatpush1.msra.mxu0 0.0
      %432 = vmatprep.subr.mxu0 0.0
      %433 = vmatpush1.msra.mxu0 0.0
      %434 = vmatprep.subr.mxu0 0.0
      %435 = vmatpush1.msra.mxu0 0.0
      %436 = vmatprep.subr.mxu0 0.0
      %437 = vmatpush1.msra.mxu0 0.0
      %438 = vmatprep.subr.mxu0 0.0
      %439 = vmatpush1.msra.mxu0 0.0
      %440 = vmatprep.subr.mxu0 0.0
      %441 = vmatpush1.msra.mxu0 0.0
      %442 = vmatprep.subr.mxu0 0.0
      %443 = vmatpush1.msra.mxu0 0.0
      %444 = vmatprep.subr.mxu0 0.0
      %445 = vmatpush1.msra.mxu0 0.0
      %446 = vmatprep.subr.mxu0 0.0
      %447 = vmatpush1.msra.mxu0 0.0
      %448 = vmatprep.subr.mxu0 0.0
      %449 = vmatpush1.msra.mxu0 0.0
      %450 = vmatprep.mubr.f32.mxu0 0.0
      %v451 = vand.u32 %v94, 4294901760
      %452 = vmatmul.mubr.f32.gmra.mrb[0].mxu0 %v451
      %v453 = vpop.f32.mrb[0].mxu0
      %v454 = vadd.f32 %v211, %v453
      %v455 = vpop.f32.mrb[0].mxu0
      %v456 = vadd.f32 %v213, %v455
      %457 = vmatprep.mubr.f32.mxu0 0.0
      %v458 = vand.u32 %v95, 4294901760
      %459 = vmatmul.mubr.f32.gmra.mrb[0].mxu0 %v458
      %v460 = vpop.f32.mrb[0].mxu0
      %v461 = vadd.f32 %v222, %v460
      %v462 = vpop.f32.mrb[0].mxu0
      %v463 = vadd.f32 %v224, %v462
      %464 = vdwg.mxu0
      %v465 = vand.u32 %v62, 4294901760
      %v466 = vsub.f32 %v62, %v465
      %467 = vmatprep.subr.mxu0 %v466
      %v468 = vand.u32 %v61, 4294901760
      %v469 = vsub.f32 %v61, %v468
      %470 = vmatpush1.msra.mxu0 %v469
      %v471 = vand.u32 %v64, 4294901760
      %v472 = vsub.f32 %v64, %v471
      %473 = vmatprep.subr.mxu0 %v472
      %v474 = vand.u32 %v63, 4294901760
      %v475 = vsub.f32 %v63, %v474
      %476 = vmatpush1.msra.mxu0 %v475
      %v477 = vand.u32 %v66, 4294901760
      %v478 = vsub.f32 %v66, %v477
      %479 = vmatprep.subr.mxu0 %v478
      %v480 = vand.u32 %v65, 4294901760
      %v481 = vsub.f32 %v65, %v480
      %482 = vmatpush1.msra.mxu0 %v481
      %v483 = vand.u32 %v68, 4294901760
      %v484 = vsub.f32 %v68, %v483
      %485 = vmatprep.subr.mxu0 %v484
      %v486 = vand.u32 %v67, 4294901760
      %v487 = vsub.f32 %v67, %v486
      %488 = vmatpush1.msra.mxu0 %v487
      %v489 = vand.u32 %v70, 4294901760
      %v490 = vsub.f32 %v70, %v489
      %491 = vmatprep.subr.mxu0 %v490
      %v492 = vand.u32 %v69, 4294901760
      %v493 = vsub.f32 %v69, %v492
      %494 = vmatpush1.msra.mxu0 %v493
      %v495 = vand.u32 %v72, 4294901760
      %v496 = vsub.f32 %v72, %v495
      %497 = vmatprep.subr.mxu0 %v496
      %v498 = vand.u32 %v71, 4294901760
      %v499 = vsub.f32 %v71, %v498
      %500 = vmatpush1.msra.mxu0 %v499
      %v501 = vand.u32 %v74, 4294901760
      %v502 = vsub.f32 %v74, %v501
      %503 = vmatprep.subr.mxu0 %v502
      %v504 = vand.u32 %v73, 4294901760
      %v505 = vsub.f32 %v73, %v504
      %506 = vmatpush1.msra.mxu0 %v505
      %v507 = vand.u32 %v76, 4294901760
      %v508 = vsub.f32 %v76, %v507
      %509 = vmatprep.subr.mxu0 %v508
      %v510 = vand.u32 %v75, 4294901760
      %v511 = vsub.f32 %v75, %v510
      %512 = vmatpush1.msra.mxu0 %v511
      %v513 = vand.u32 %v78, 4294901760
      %v514 = vsub.f32 %v78, %v513
      %515 = vmatprep.subr.mxu0 %v514
      %v516 = vand.u32 %v77, 4294901760
      %v517 = vsub.f32 %v77, %v516
      %518 = vmatpush1.msra.mxu0 %v517
      %v519 = vand.u32 %v80, 4294901760
      %v520 = vsub.f32 %v80, %v519
      %521 = vmatprep.subr.mxu0 %v520
      %v522 = vand.u32 %v79, 4294901760
      %v523 = vsub.f32 %v79, %v522
      %524 = vmatpush1.msra.mxu0 %v523
      %v525 = vand.u32 %v82, 4294901760
      %v526 = vsub.f32 %v82, %v525
      %527 = vmatprep.subr.mxu0 %v526
      %v528 = vand.u32 %v81, 4294901760
      %v529 = vsub.f32 %v81, %v528
      %530 = vmatpush1.msra.mxu0 %v529
      %v531 = vand.u32 %v84, 4294901760
      %v532 = vsub.f32 %v84, %v531
      %533 = vmatprep.subr.mxu0 %v532
      %v534 = vand.u32 %v83, 4294901760
      %v535 = vsub.f32 %v83, %v534
      %536 = vmatpush1.msra.mxu0 %v535
      %v537 = vand.u32 %v86, 4294901760
      %v538 = vsub.f32 %v86, %v537
      %539 = vmatprep.subr.mxu0 %v538
      %v540 = vand.u32 %v85, 4294901760
      %v541 = vsub.f32 %v85, %v540
      %542 = vmatpush1.msra.mxu0 %v541
      %v543 = vand.u32 %v88, 4294901760
      %v544 = vsub.f32 %v88, %v543
      %545 = vmatprep.subr.mxu0 %v544
      %v546 = vand.u32 %v87, 4294901760
      %v547 = vsub.f32 %v87, %v546
      %548 = vmatpush1.msra.mxu0 %v547
      %v549 = vand.u32 %v90, 4294901760
      %v550 = vsub.f32 %v90, %v549
      %551 = vmatprep.subr.mxu0 %v550
      %v552 = vand.u32 %v89, 4294901760
      %v553 = vsub.f32 %v89, %v552
      %554 = vmatpush1.msra.mxu0 %v553
      %v555 = vand.u32 %v92, 4294901760
      %v556 = vsub.f32 %v92, %v555
      %557 = vmatprep.subr.mxu0 %v556
      %v558 = vand.u32 %v91, 4294901760
      %v559 = vsub.f32 %v91, %v558
      %560 = vmatpush1.msra.mxu0 %v559
      %561 = vmatprep.subr.mxu0 0.0
      %562 = vmatpush1.msra.mxu0 0.0
      %563 = vmatprep.subr.mxu0 0.0
      %564 = vmatpush1.msra.mxu0 0.0
      %565 = vmatprep.subr.mxu0 0.0
      %566 = vmatpush1.msra.mxu0 0.0
      %567 = vmatprep.subr.mxu0 0.0
      %568 = vmatpush1.msra.mxu0 0.0
      %569 = vmatprep.subr.mxu0 0.0
      %570 = vmatpush1.msra.mxu0 0.0
      %571 = vmatprep.subr.mxu0 0.0
      %572 = vmatpush1.msra.mxu0 0.0
      %573 = vmatprep.subr.mxu0 0.0
      %574 = vmatpush1.msra.mxu0 0.0
      %575 = vmatprep.subr.mxu0 0.0
      %576 = vmatpush1.msra.mxu0 0.0
      %577 = vmatprep.subr.mxu0 0.0
      %578 = vmatpush1.msra.mxu0 0.0
      %579 = vmatprep.subr.mxu0 0.0
      %580 = vmatpush1.msra.mxu0 0.0
      %581 = vmatprep.subr.mxu0 0.0
      %582 = vmatpush1.msra.mxu0 0.0
      %583 = vmatprep.subr.mxu0 0.0
      %584 = vmatpush1.msra.mxu0 0.0
      %585 = vmatprep.subr.mxu0 0.0
      %586 = vmatpush1.msra.mxu0 0.0
      %587 = vmatprep.subr.mxu0 0.0
      %588 = vmatpush1.msra.mxu0 0.0
      %589 = vmatprep.subr.mxu0 0.0
      %590 = vmatpush1.msra.mxu0 0.0
      %591 = vmatprep.subr.mxu0 0.0
      %592 = vmatpush1.msra.mxu0 0.0
      %593 = vmatprep.mubr.f32.mxu0 0.0
      %v594 = vand.u32 %v94, 4294901760
      %v595 = vsub.f32 %v94, %v594
      %596 = vmatmul.mubr.f32.gmra.mrb[0].mxu0 %v595
      %v597 = vpop.f32.mrb[0].mxu0
      %v598 = vadd.f32 %v454, %v597
      %v599 = vpop.f32.mrb[0].mxu0
      %v600 = vadd.f32 %v456, %v599
      %601 = vmatprep.mubr.f32.mxu0 0.0
      %v602 = vand.u32 %v95, 4294901760
      %v603 = vsub.f32 %v95, %v602
      %604 = vmatmul.mubr.f32.gmra.mrb[0].mxu0 %v603
      %v605 = vpop.f32.mrb[0].mxu0
      %v606 = vadd.f32 %v461, %v605
      %v607 = vpop.f32.mrb[0].mxu0
      %v608 = vadd.f32 %v463, %v607
      %609 = vdwg.mxu0
      %v610 = vand.u32 %v62, 4294901760
      %611 = vmatprep.subr.mxu0 %v610
      %v612 = vand.u32 %v61, 4294901760
      %613 = vmatpush1.msra.mxu0 %v612
      %v614 = vand.u32 %v64, 4294901760
      %615 = vmatprep.subr.mxu0 %v614
      %v616 = vand.u32 %v63, 4294901760
      %617 = vmatpush1.msra.mxu0 %v616
      %v618 = vand.u32 %v66, 4294901760
      %619 = vmatprep.subr.mxu0 %v618
      %v620 = vand.u32 %v65, 4294901760
      %621 = vmatpush1.msra.mxu0 %v620
      %v622 = vand.u32 %v68, 4294901760
      %623 = vmatprep.subr.mxu0 %v622
      %v624 = vand.u32 %v67, 4294901760
      %625 = vmatpush1.msra.mxu0 %v624
      %v626 = vand.u32 %v70, 4294901760
      %627 = vmatprep.subr.mxu0 %v626
      %v628 = vand.u32 %v69, 4294901760
      %629 = vmatpush1.msra.mxu0 %v628
      %v630 = vand.u32 %v72, 4294901760
      %631 = vmatprep.subr.mxu0 %v630
      %v632 = vand.u32 %v71, 4294901760
      %633 = vmatpush1.msra.mxu0 %v632
      %v634 = vand.u32 %v74, 4294901760
      %635 = vmatprep.subr.mxu0 %v634
      %v636 = vand.u32 %v73, 4294901760
      %637 = vmatpush1.msra.mxu0 %v636
      %v638 = vand.u32 %v76, 4294901760
      %639 = vmatprep.subr.mxu0 %v638
      %v640 = vand.u32 %v75, 4294901760
      %641 = vmatpush1.msra.mxu0 %v640
      %v642 = vand.u32 %v78, 4294901760
      %643 = vmatprep.subr.mxu0 %v642
      %v644 = vand.u32 %v77, 4294901760
      %645 = vmatpush1.msra.mxu0 %v644
      %v646 = vand.u32 %v80, 4294901760
      %647 = vmatprep.subr.mxu0 %v646
      %v648 = vand.u32 %v79, 4294901760
      %649 = vmatpush1.msra.mxu0 %v648
      %v650 = vand.u32 %v82, 4294901760
      %651 = vmatprep.subr.mxu0 %v650
      %v652 = vand.u32 %v81, 4294901760
      %653 = vmatpush1.msra.mxu0 %v652
      %v654 = vand.u32 %v84, 4294901760
      %655 = vmatprep.subr.mxu0 %v654
      %v656 = vand.u32 %v83, 4294901760
      %657 = vmatpush1.msra.mxu0 %v656
      %v658 = vand.u32 %v86, 4294901760
      %659 = vmatprep.subr.mxu0 %v658
      %v660 = vand.u32 %v85, 4294901760
      %661 = vmatpush1.msra.mxu0 %v660
      %v662 = vand.u32 %v88, 4294901760
      %663 = vmatprep.subr.mxu0 %v662
      %v664 = vand.u32 %v87, 4294901760
      %665 = vmatpush1.msra.mxu0 %v664
      %v666 = vand.u32 %v90, 4294901760
      %667 = vmatprep.subr.mxu0 %v666
      %v668 = vand.u32 %v89, 4294901760
      %669 = vmatpush1.msra.mxu0 %v668
      %v670 = vand.u32 %v92, 4294901760
      %671 = vmatprep.subr.mxu0 %v670
      %v672 = vand.u32 %v91, 4294901760
      %673 = vmatpush1.msra.mxu0 %v672
      %674 = vmatprep.subr.mxu0 0.0
      %675 = vmatpush1.msra.mxu0 0.0
      %676 = vmatprep.subr.mxu0 0.0
      %677 = vmatpush1.msra.mxu0 0.0
      %678 = vmatprep.subr.mxu0 0.0
      %679 = vmatpush1.msra.mxu0 0.0
      %680 = vmatprep.subr.mxu0 0.0
      %681 = vmatpush1.msra.mxu0 0.0
      %682 = vmatprep.subr.mxu0 0.0
      %683 = vmatpush1.msra.mxu0 0.0
      %684 = vmatprep.subr.mxu0 0.0
      %685 = vmatpush1.msra.mxu0 0.0
      %686 = vmatprep.subr.mxu0 0.0
      %687 = vmatpush1.msra.mxu0 0.0
      %688 = vmatprep.subr.mxu0 0.0
      %689 = vmatpush1.msra.mxu0 0.0
      %690 = vmatprep.subr.mxu0 0.0
      %691 = vmatpush1.msra.mxu0 0.0
      %692 = vmatprep.subr.mxu0 0.0
      %693 = vmatpush1.msra.mxu0 0.0
      %694 = vmatprep.subr.mxu0 0.0
      %695 = vmatpush1.msra.mxu0 0.0
      %696 = vmatprep.subr.mxu0 0.0
      %697 = vmatpush1.msra.mxu0 0.0
      %698 = vmatprep.subr.mxu0 0.0
      %699 = vmatpush1.msra.mxu0 0.0
      %700 = vmatprep.subr.mxu0 0.0
      %701 = vmatpush1.msra.mxu0 0.0
      %702 = vmatprep.subr.mxu0 0.0
      %703 = vmatpush1.msra.mxu0 0.0
      %704 = vmatprep.subr.mxu0 0.0
      %705 = vmatpush1.msra.mxu0 0.0
      %706 = vmatprep.mubr.f32.mxu0 0.0
      %v707 = vand.u32 %v94, 4294901760
      %v708 = vsub.f32 %v94, %v707
      %v709 = vand.u32 %v708, 4294901760
      %710 = vmatmul.mubr.f32.gmra.mrb[0].mxu0 %v709
      %v711 = vpop.f32.mrb[0].mxu0
      %v712 = vadd.f32 %v598, %v711
      %v713 = vpop.f32.mrb[0].mxu0
      %v714 = vadd.f32 %v600, %v713
      %715 = vmatprep.mubr.f32.mxu0 0.0
      %v716 = vand.u32 %v95, 4294901760
      %v717 = vsub.f32 %v95, %v716
      %v718 = vand.u32 %v717, 4294901760
      %719 = vmatmul.mubr.f32.gmra.mrb[0].mxu0 %v718
      %v720 = vpop.f32.mrb[0].mxu0
      %v721 = vadd.f32 %v606, %v720
      %v722 = vpop.f32.mrb[0].mxu0
      %v723 = vadd.f32 %v608, %v722
      %724 = vdwg.mxu0
      %v725 = vand.u32 %v62, 4294901760
      %v726 = vsub.f32 %v62, %v725
      %v727 = vand.u32 %v726, 4294901760
      %728 = vmatprep.subr.mxu0 %v727
      %v729 = vand.u32 %v61, 4294901760
      %v730 = vsub.f32 %v61, %v729
      %v731 = vand.u32 %v730, 4294901760
      %732 = vmatpush1.msra.mxu0 %v731
      %v733 = vand.u32 %v64, 4294901760
      %v734 = vsub.f32 %v64, %v733
      %v735 = vand.u32 %v734, 4294901760
      %736 = vmatprep.subr.mxu0 %v735
      %v737 = vand.u32 %v63, 4294901760
      %v738 = vsub.f32 %v63, %v737
      %v739 = vand.u32 %v738, 4294901760
      %740 = vmatpush1.msra.mxu0 %v739
      %v741 = vand.u32 %v66, 4294901760
      %v742 = vsub.f32 %v66, %v741
      %v743 = vand.u32 %v742, 4294901760
      %744 = vmatprep.subr.mxu0 %v743
      %v745 = vand.u32 %v65, 4294901760
      %v746 = vsub.f32 %v65, %v745
      %v747 = vand.u32 %v746, 4294901760
      %748 = vmatpush1.msra.mxu0 %v747
      %v749 = vand.u32 %v68, 4294901760
      %v750 = vsub.f32 %v68, %v749
      %v751 = vand.u32 %v750, 4294901760
      %752 = vmatprep.subr.mxu0 %v751
      %v753 = vand.u32 %v67, 4294901760
      %v754 = vsub.f32 %v67, %v753
      %v755 = vand.u32 %v754, 4294901760
      %756 = vmatpush1.msra.mxu0 %v755
      %v757 = vand.u32 %v70, 4294901760
      %v758 = vsub.f32 %v70, %v757
      %v759 = vand.u32 %v758, 4294901760
      %760 = vmatprep.subr.mxu0 %v759
      %v761 = vand.u32 %v69, 4294901760
      %v762 = vsub.f32 %v69, %v761
      %v763 = vand.u32 %v762, 4294901760
      %764 = vmatpush1.msra.mxu0 %v763
      %v765 = vand.u32 %v72, 4294901760
      %v766 = vsub.f32 %v72, %v765
      %v767 = vand.u32 %v766, 4294901760
      %768 = vmatprep.subr.mxu0 %v767
      %v769 = vand.u32 %v71, 4294901760
      %v770 = vsub.f32 %v71, %v769
      %v771 = vand.u32 %v770, 4294901760
      %772 = vmatpush1.msra.mxu0 %v771
      %v773 = vand.u32 %v74, 4294901760
      %v774 = vsub.f32 %v74, %v773
      %v775 = vand.u32 %v774, 4294901760
      %776 = vmatprep.subr.mxu0 %v775
      %v777 = vand.u32 %v73, 4294901760
      %v778 = vsub.f32 %v73, %v777
      %v779 = vand.u32 %v778, 4294901760
      %780 = vmatpush1.msra.mxu0 %v779
      %v781 = vand.u32 %v76, 4294901760
      %v782 = vsub.f32 %v76, %v781
      %v783 = vand.u32 %v782, 4294901760
      %784 = vmatprep.subr.mxu0 %v783
      %v785 = vand.u32 %v75, 4294901760
      %v786 = vsub.f32 %v75, %v785
      %v787 = vand.u32 %v786, 4294901760
      %788 = vmatpush1.msra.mxu0 %v787
      %v789 = vand.u32 %v78, 4294901760
      %v790 = vsub.f32 %v78, %v789
      %v791 = vand.u32 %v790, 4294901760
      %792 = vmatprep.subr.mxu0 %v791
      %v793 = vand.u32 %v77, 4294901760
      %v794 = vsub.f32 %v77, %v793
      %v795 = vand.u32 %v794, 4294901760
      %796 = vmatpush1.msra.mxu0 %v795
      %v797 = vand.u32 %v80, 4294901760
      %v798 = vsub.f32 %v80, %v797
      %v799 = vand.u32 %v798, 4294901760
      %800 = vmatprep.subr.mxu0 %v799
      %v801 = vand.u32 %v79, 4294901760
      %v802 = vsub.f32 %v79, %v801
      %v803 = vand.u32 %v802, 4294901760
      %804 = vmatpush1.msra.mxu0 %v803
      %v805 = vand.u32 %v82, 4294901760
      %v806 = vsub.f32 %v82, %v805
      %v807 = vand.u32 %v806, 4294901760
      %808 = vmatprep.subr.mxu0 %v807
      %v809 = vand.u32 %v81, 4294901760
      %v810 = vsub.f32 %v81, %v809
      %v811 = vand.u32 %v810, 4294901760
      %812 = vmatpush1.msra.mxu0 %v811
      %v813 = vand.u32 %v84, 4294901760
      %v814 = vsub.f32 %v84, %v813
      %v815 = vand.u32 %v814, 4294901760
      %816 = vmatprep.subr.mxu0 %v815
      %v817 = vand.u32 %v83, 4294901760
      %v818 = vsub.f32 %v83, %v817
      %v819 = vand.u32 %v818, 4294901760
      %820 = vmatpush1.msra.mxu0 %v819
      %v821 = vand.u32 %v86, 4294901760
      %v822 = vsub.f32 %v86, %v821
      %v823 = vand.u32 %v822, 4294901760
      %824 = vmatprep.subr.mxu0 %v823
      %v825 = vand.u32 %v85, 4294901760
      %v826 = vsub.f32 %v85, %v825
      %v827 = vand.u32 %v826, 4294901760
      %828 = vmatpush1.msra.mxu0 %v827
      %v829 = vand.u32 %v88, 4294901760
      %v830 = vsub.f32 %v88, %v829
      %v831 = vand.u32 %v830, 4294901760
      %832 = vmatprep.subr.mxu0 %v831
      %v833 = vand.u32 %v87, 4294901760
      %v834 = vsub.f32 %v87, %v833
      %v835 = vand.u32 %v834, 4294901760
      %836 = vmatpush1.msra.mxu0 %v835
      %v837 = vand.u32 %v90, 4294901760
      %v838 = vsub.f32 %v90, %v837
      %v839 = vand.u32 %v838, 4294901760
      %840 = vmatprep.subr.mxu0 %v839
      %v841 = vand.u32 %v89, 4294901760
      %v842 = vsub.f32 %v89, %v841
      %v843 = vand.u32 %v842, 4294901760
      %844 = vmatpush1.msra.mxu0 %v843
      %v845 = vand.u32 %v92, 4294901760
      %v846 = vsub.f32 %v92, %v845
      %v847 = vand.u32 %v846, 4294901760
      %848 = vmatprep.subr.mxu0 %v847
      %v849 = vand.u32 %v91, 4294901760
      %v850 = vsub.f32 %v91, %v849
      %v851 = vand.u32 %v850, 4294901760
      %852 = vmatpush1.msra.mxu0 %v851
      %853 = vmatprep.subr.mxu0 0.0
      %854 = vmatpush1.msra.mxu0 0.0
      %855 = vmatprep.subr.mxu0 0.0
      %856 = vmatpush1.msra.mxu0 0.0
      %857 = vmatprep.subr.mxu0 0.0
      %858 = vmatpush1.msra.mxu0 0.0
      %859 = vmatprep.subr.mxu0 0.0
      %860 = vmatpush1.msra.mxu0 0.0
      %861 = vmatprep.subr.mxu0 0.0
      %862 = vmatpush1.msra.mxu0 0.0
      %863 = vmatprep.subr.mxu0 0.0
      %864 = vmatpush1.msra.mxu0 0.0
      %865 = vmatprep.subr.mxu0 0.0
      %866 = vmatpush1.msra.mxu0 0.0
      %867 = vmatprep.subr.mxu0 0.0
      %868 = vmatpush1.msra.mxu0 0.0
      %869 = vmatprep.subr.mxu0 0.0
      %870 = vmatpush1.msra.mxu0 0.0
      %871 = vmatprep.subr.mxu0 0.0
      %872 = vmatpush1.msra.mxu0 0.0
      %873 = vmatprep.subr.mxu0 0.0
      %874 = vmatpush1.msra.mxu0 0.0
      %875 = vmatprep.subr.mxu0 0.0
      %876 = vmatpush1.msra.mxu0 0.0
      %877 = vmatprep.subr.mxu0 0.0
      %878 = vmatpush1.msra.mxu0 0.0
      %879 = vmatprep.subr.mxu0 0.0
      %880 = vmatpush1.msra.mxu0 0.0
      %881 = vmatprep.subr.mxu0 0.0
      %882 = vmatpush1.msra.mxu0 0.0
      %883 = vmatprep.subr.mxu0 0.0
      %884 = vmatpush1.msra.mxu0 0.0
      %885 = vmatprep.mubr.f32.mxu0 0.0
      %v886 = vand.u32 %v94, 4294901760
      %887 = vmatmul.mubr.f32.gmra.mrb[0].mxu0 %v886
      %v888 = vpop.f32.mrb[0].mxu0
      %v889 = vadd.f32 %v712, %v888
      %v890 = vpop.f32.mrb[0].mxu0
      %v891 = vadd.f32 %v714, %v890
      %892 = vmatprep.mubr.f32.mxu0 0.0
      %v893 = vand.u32 %v95, 4294901760
      %894 = vmatmul.mubr.f32.gmra.mrb[0].mxu0 %v893
      %v895 = vpop.f32.mrb[0].mxu0
      %v896 = vadd.f32 %v721, %v895
      %v897 = vpop.f32.mrb[0].mxu0
      %v898 = vadd.f32 %v723, %v897
      %899 = vdwg.mxu0
      %v900 = vand.u32 %v62, 4294901760
      %901 = vmatprep.subr.mxu0 %v900
      %v902 = vand.u32 %v61, 4294901760
      %903 = vmatpush1.msra.mxu0 %v902
      %v904 = vand.u32 %v64, 4294901760
      %905 = vmatprep.subr.mxu0 %v904
      %v906 = vand.u32 %v63, 4294901760
      %907 = vmatpush1.msra.mxu0 %v906
      %v908 = vand.u32 %v66, 4294901760
      %909 = vmatprep.subr.mxu0 %v908
      %v910 = vand.u32 %v65, 4294901760
      %911 = vmatpush1.msra.mxu0 %v910
      %v912 = vand.u32 %v68, 4294901760
      %913 = vmatprep.subr.mxu0 %v912
      %v914 = vand.u32 %v67, 4294901760
      %915 = vmatpush1.msra.mxu0 %v914
      %v916 = vand.u32 %v70, 4294901760
      %917 = vmatprep.subr.mxu0 %v916
      %v918 = vand.u32 %v69, 4294901760
      %919 = vmatpush1.msra.mxu0 %v918
      %v920 = vand.u32 %v72, 4294901760
      %921 = vmatprep.subr.mxu0 %v920
      %v922 = vand.u32 %v71, 4294901760
      %923 = vmatpush1.msra.mxu0 %v922
      %v924 = vand.u32 %v74, 4294901760
      %925 = vmatprep.subr.mxu0 %v924
      %v926 = vand.u32 %v73, 4294901760
      %927 = vmatpush1.msra.mxu0 %v926
      %v928 = vand.u32 %v76, 4294901760
      %929 = vmatprep.subr.mxu0 %v928
      %v930 = vand.u32 %v75, 4294901760
      %931 = vmatpush1.msra.mxu0 %v930
      %v932 = vand.u32 %v78, 4294901760
      %933 = vmatprep.subr.mxu0 %v932
      %v934 = vand.u32 %v77, 4294901760
      %935 = vmatpush1.msra.mxu0 %v934
      %v936 = vand.u32 %v80, 4294901760
      %937 = vmatprep.subr.mxu0 %v936
      %v938 = vand.u32 %v79, 4294901760
      %939 = vmatpush1.msra.mxu0 %v938
      %v940 = vand.u32 %v82, 4294901760
      %941 = vmatprep.subr.mxu0 %v940
      %v942 = vand.u32 %v81, 4294901760
      %943 = vmatpush1.msra.mxu0 %v942
      %v944 = vand.u32 %v84, 4294901760
      %945 = vmatprep.subr.mxu0 %v944
      %v946 = vand.u32 %v83, 4294901760
      %947 = vmatpush1.msra.mxu0 %v946
      %v948 = vand.u32 %v86, 4294901760
      %949 = vmatprep.subr.mxu0 %v948
      %v950 = vand.u32 %v85, 4294901760
      %951 = vmatpush1.msra.mxu0 %v950
      %v952 = vand.u32 %v88, 4294901760
      %953 = vmatprep.subr.mxu0 %v952
      %v954 = vand.u32 %v87, 4294901760
      %955 = vmatpush1.msra.mxu0 %v954
      %v956 = vand.u32 %v90, 4294901760
      %957 = vmatprep.subr.mxu0 %v956
      %v958 = vand.u32 %v89, 4294901760
      %959 = vmatpush1.msra.mxu0 %v958
      %v960 = vand.u32 %v92, 4294901760
      %961 = vmatprep.subr.mxu0 %v960
      %v962 = vand.u32 %v91, 4294901760
      %963 = vmatpush1.msra.mxu0 %v962
      %964 = vmatprep.subr.mxu0 0.0
      %965 = vmatpush1.msra.mxu0 0.0
      %966 = vmatprep.subr.mxu0 0.0
      %967 = vmatpush1.msra.mxu0 0.0
      %968 = vmatprep.subr.mxu0 0.0
      %969 = vmatpush1.msra.mxu0 0.0
      %970 = vmatprep.subr.mxu0 0.0
      %971 = vmatpush1.msra.mxu0 0.0
      %972 = vmatprep.subr.mxu0 0.0
      %973 = vmatpush1.msra.mxu0 0.0
      %974 = vmatprep.subr.mxu0 0.0
      %975 = vmatpush1.msra.mxu0 0.0
      %976 = vmatprep.subr.mxu0 0.0
      %977 = vmatpush1.msra.mxu0 0.0
      %978 = vmatprep.subr.mxu0 0.0
      %979 = vmatpush1.msra.mxu0 0.0
      %980 = vmatprep.subr.mxu0 0.0
      %981 = vmatpush1.msra.mxu0 0.0
      %982 = vmatprep.subr.mxu0 0.0
      %983 = vmatpush1.msra.mxu0 0.0
      %984 = vmatprep.subr.mxu0 0.0
      %985 = vmatpush1.msra.mxu0 0.0
      %986 = vmatprep.subr.mxu0 0.0
      %987 = vmatpush1.msra.mxu0 0.0
      %988 = vmatprep.subr.mxu0 0.0
      %989 = vmatpush1.msra.mxu0 0.0
      %990 = vmatprep.subr.mxu0 0.0
      %991 = vmatpush1.msra.mxu0 0.0
      %992 = vmatprep.subr.mxu0 0.0
      %993 = vmatpush1.msra.mxu0 0.0
      %994 = vmatprep.subr.mxu0 0.0
      %995 = vmatpush1.msra.mxu0 0.0
      %996 = vmatprep.mubr.f32.mxu0 0.0
      %v997 = vand.u32 %v94, 4294901760
      %998 = vmatmul.mubr.f32.gmra.mrb[0].mxu0 %v997
      %v999 = vpop.f32.mrb[0].mxu0
      %v1000 = vadd.f32 %v889, %v999
      %v1001 = vpop.f32.mrb[0].mxu0
      %v1002 = vadd.f32 %v891, %v1001
      %1003 = vmatprep.mubr.f32.mxu0 0.0
      %v1004 = vand.u32 %v95, 4294901760
      %1005 = vmatmul.mubr.f32.gmra.mrb[0].mxu0 %v1004
      %v1006 = vpop.f32.mrb[0].mxu0
      %v1007 = vadd.f32 %v896, %v1006
      %v1008 = vpop.f32.mrb[0].mxu0
      %v1009 = vadd.f32 %v898, %v1008
      %1010 = vdwg.mxu0
      %v1011 = vld [vmem:[%s2] sm:$0xff]
      %v1012 = vld [vmem:[%s2 + $0x8] sm:$0xff]
      %v1013 = vld [vmem:[%s3] sm:$0xff]
      %v1014 = vld [vmem:[%s3 + $0x8] sm:$0xff]
      %1016 = vset.pattern.permute.xlu0 0
      %1017 = vperm.xlu0 %1016, %v1013
      %v1018 = vpop.permute.xlu0 %1017
      %1021 = vset.pattern.permute.xlu0 0
      %1022 = vperm.xlu0 %1021, %v1014
      %v1023 = vpop.permute.xlu0 %1022
      %v1025 = vmul.f32 %v1018, %v1002
      %v1026 = vmul.f32 %v1023, %v1009
      %vm1027 = vcmask 130048
      %v1029 = vsel %vm1027, %v1011, 0
      %v1032 = vsel %vm1027, %v1012, 0
      %1034 = vmatprep.subr.mxu0 0.0
      %v1035 = vand.u32 %v1000, 4294901760
      %1036 = vmatpush1.msra.mxu0 %v1035
      %1037 = vmatprep.subr.mxu0 0.0
      %v1038 = vand.u32 %v1007, 4294901760
      %1039 = vmatpush1.msra.mxu0 %v1038
      %1040 = vmatprep.subr.mxu0 0.0
      %1041 = vmatpush1.msra.mxu0 0.0
      %1042 = vmatprep.subr.mxu0 0.0
      %1043 = vmatpush1.msra.mxu0 0.0
      %1044 = vmatprep.subr.mxu0 0.0
      %1045 = vmatpush1.msra.mxu0 0.0
      %1046 = vmatprep.subr.mxu0 0.0
      %1047 = vmatpush1.msra.mxu0 0.0
      %1048 = vmatprep.subr.mxu0 0.0
      %1049 = vmatpush1.msra.mxu0 0.0
      %1050 = vmatprep.subr.mxu0 0.0
      %1051 = vmatpush1.msra.mxu0 0.0
      %1052 = vmatprep.subr.mxu0 0.0
      %1053 = vmatpush1.msra.mxu0 0.0
      %1054 = vmatprep.subr.mxu0 0.0
      %1055 = vmatpush1.msra.mxu0 0.0
      %1056 = vmatprep.subr.mxu0 0.0
      %1057 = vmatpush1.msra.mxu0 0.0
      %1058 = vmatprep.subr.mxu0 0.0
      %1059 = vmatpush1.msra.mxu0 0.0
      %1060 = vmatprep.subr.mxu0 0.0
      %1061 = vmatpush1.msra.mxu0 0.0
      %1062 = vmatprep.subr.mxu0 0.0
      %1063 = vmatpush1.msra.mxu0 0.0
      %1064 = vmatprep.subr.mxu0 0.0
      %1065 = vmatpush1.msra.mxu0 0.0
      %1066 = vmatprep.subr.mxu0 0.0
      %1067 = vmatpush1.msra.mxu0 0.0
      %1068 = vmatprep.subr.mxu0 0.0
      %1069 = vmatpush1.msra.mxu0 0.0
      %1070 = vmatprep.subr.mxu0 0.0
      %1071 = vmatpush1.msra.mxu0 0.0
      %1072 = vmatprep.subr.mxu0 0.0
      %1073 = vmatpush1.msra.mxu0 0.0
      %1074 = vmatprep.subr.mxu0 0.0
      %1075 = vmatpush1.msra.mxu0 0.0
      %1076 = vmatprep.subr.mxu0 0.0
      %1077 = vmatpush1.msra.mxu0 0.0
      %1078 = vmatprep.subr.mxu0 0.0
      %1079 = vmatpush1.msra.mxu0 0.0
      %1080 = vmatprep.subr.mxu0 0.0
      %1081 = vmatpush1.msra.mxu0 0.0
      %1082 = vmatprep.subr.mxu0 0.0
      %1083 = vmatpush1.msra.mxu0 0.0
      %1084 = vmatprep.subr.mxu0 0.0
      %1085 = vmatpush1.msra.mxu0 0.0
      %1086 = vmatprep.subr.mxu0 0.0
      %1087 = vmatpush1.msra.mxu0 0.0
      %1088 = vmatprep.subr.mxu0 0.0
      %1089 = vmatpush1.msra.mxu0 0.0
      %1090 = vmatprep.subr.mxu0 0.0
      %1091 = vmatpush1.msra.mxu0 0.0
      %1092 = vmatprep.subr.mxu0 0.0
      %1093 = vmatpush1.msra.mxu0 0.0
      %1094 = vmatprep.subr.mxu0 0.0
      %1095 = vmatpush1.msra.mxu0 0.0
      %1096 = vmatprep.subr.mxu0 0.0
      %1097 = vmatpush1.msra.mxu0 0.0
      %1098 = vmatprep.subr.mxu0 0.0
      %1099 = vmatpush1.msra.mxu0 0.0
      %1100 = vmatprep.mubr.f32.mxu0 0.0
      %v1101 = vand.u32 %v1029, 4294901760
      %v1102 = vsub.f32 %v1029, %v1101
      %v1103 = vand.u32 %v1102, 4294901760
      %v1104 = vsub.f32 %v1102, %v1103
      %v1105 = vand.u32 %v1104, 4294901760
      %1106 = vmatmul.mubr.f32.gmra.mrb[0].mxu0 %v1105
      %v1107 = vpop.f32.mrb[0].mxu0
      %v1108 = vadd.f32 %v1025, %v1107
      %v1109 = vpop.f32.mrb[0].mxu0
      %1110 = vmatprep.mubr.f32.mxu0 0.0
      %v1111 = vand.u32 %v1032, 4294901760
      %v1112 = vsub.f32 %v1032, %v1111
      %v1113 = vand.u32 %v1112, 4294901760
      %v1114 = vsub.f32 %v1112, %v1113
      %v1115 = vand.u32 %v1114, 4294901760
      %1116 = vmatmul.mubr.f32.gmra.mrb[0].mxu0 %v1115
      %v1117 = vpop.f32.mrb[0].mxu0
      %v1118 = vadd.f32 %v1026, %v1117
      %v1119 = vpop.f32.mrb[0].mxu0
      %1120 = vdwg.mxu0
      %1121 = vmatprep.subr.mxu0 0.0
      %v1122 = vand.u32 %v1000, 4294901760
      %v1123 = vsub.f32 %v1000, %v1122
      %v1124 = vand.u32 %v1123, 4294901760
      %v1125 = vsub.f32 %v1123, %v1124
      %v1126 = vand.u32 %v1125, 4294901760
      %1127 = vmatpush1.msra.mxu0 %v1126
      %1128 = vmatprep.subr.mxu0 0.0
      %v1129 = vand.u32 %v1007, 4294901760
      %v1130 = vsub.f32 %v1007, %v1129
      %v1131 = vand.u32 %v1130, 4294901760
      %v1132 = vsub.f32 %v1130, %v1131
      %v1133 = vand.u32 %v1132, 4294901760
      %1134 = vmatpush1.msra.mxu0 %v1133
      %1135 = vmatprep.subr.mxu0 0.0
      %1136 = vmatpush1.msra.mxu0 0.0
      %1137 = vmatprep.subr.mxu0 0.0
      %1138 = vmatpush1.msra.mxu0 0.0
      %1139 = vmatprep.subr.mxu0 0.0
      %1140 = vmatpush1.msra.mxu0 0.0
      %1141 = vmatprep.subr.mxu0 0.0
      %1142 = vmatpush1.msra.mxu0 0.0
      %1143 = vmatprep.subr.mxu0 0.0
      %1144 = vmatpush1.msra.mxu0 0.0
      %1145 = vmatprep.subr.mxu0 0.0
      %1146 = vmatpush1.msra.mxu0 0.0
      %1147 = vmatprep.subr.mxu0 0.0
      %1148 = vmatpush1.msra.mxu0 0.0
      %1149 = vmatprep.subr.mxu0 0.0
      %1150 = vmatpush1.msra.mxu0 0.0
      %1151 = vmatprep.subr.mxu0 0.0
      %1152 = vmatpush1.msra.mxu0 0.0
      %1153 = vmatprep.subr.mxu0 0.0
      %1154 = vmatpush1.msra.mxu0 0.0
      %1155 = vmatprep.subr.mxu0 0.0
      %1156 = vmatpush1.msra.mxu0 0.0
      %1157 = vmatprep.subr.mxu0 0.0
      %1158 = vmatpush1.msra.mxu0 0.0
      %1159 = vmatprep.subr.mxu0 0.0
      %1160 = vmatpush1.msra.mxu0 0.0
      %1161 = vmatprep.subr.mxu0 0.0
      %1162 = vmatpush1.msra.mxu0 0.0
      %1163 = vmatprep.subr.mxu0 0.0
      %1164 = vmatpush1.msra.mxu0 0.0
      %1165 = vmatprep.subr.mxu0 0.0
      %1166 = vmatpush1.msra.mxu0 0.0
      %1167 = vmatprep.subr.mxu0 0.0
      %1168 = vmatpush1.msra.mxu0 0.0
      %1169 = vmatprep.subr.mxu0 0.0
      %1170 = vmatpush1.msra.mxu0 0.0
      %1171 = vmatprep.subr.mxu0 0.0
      %1172 = vmatpush1.msra.mxu0 0.0
      %1173 = vmatprep.subr.mxu0 0.0
      %1174 = vmatpush1.msra.mxu0 0.0
      %1175 = vmatprep.subr.mxu0 0.0
      %1176 = vmatpush1.msra.mxu0 0.0
      %1177 = vmatprep.subr.mxu0 0.0
      %1178 = vmatpush1.msra.mxu0 0.0
      %1179 = vmatprep.subr.mxu0 0.0
      %1180 = vmatpush1.msra.mxu0 0.0
      %1181 = vmatprep.subr.mxu0 0.0
      %1182 = vmatpush1.msra.mxu0 0.0
      %1183 = vmatprep.subr.mxu0 0.0
      %1184 = vmatpush1.msra.mxu0 0.0
      %1185 = vmatprep.subr.mxu0 0.0
      %1186 = vmatpush1.msra.mxu0 0.0
      %1187 = vmatprep.subr.mxu0 0.0
      %1188 = vmatpush1.msra.mxu0 0.0
      %1189 = vmatprep.subr.mxu0 0.0
      %1190 = vmatpush1.msra.mxu0 0.0
      %1191 = vmatprep.subr.mxu0 0.0
      %1192 = vmatpush1.msra.mxu0 0.0
      %1193 = vmatprep.subr.mxu0 0.0
      %1194 = vmatpush1.msra.mxu0 0.0
      %1195 = vmatprep.mubr.f32.mxu0 0.0
      %v1196 = vand.u32 %v1029, 4294901760
      %1197 = vmatmul.mubr.f32.gmra.mrb[0].mxu0 %v1196
      %v1198 = vpop.f32.mrb[0].mxu0
      %v1199 = vadd.f32 %v1108, %v1198
      %v1200 = vpop.f32.mrb[0].mxu0
      %1201 = vmatprep.mubr.f32.mxu0 0.0
      %v1202 = vand.u32 %v1032, 4294901760
      %1203 = vmatmul.mubr.f32.gmra.mrb[0].mxu0 %v1202
      %v1204 = vpop.f32.mrb[0].mxu0
      %v1205 = vadd.f32 %v1118, %v1204
      %v1206 = vpop.f32.mrb[0].mxu0
      %1207 = vdwg.mxu0
      %1208 = vmatprep.subr.mxu0 0.0
      %v1209 = vand.u32 %v1000, 4294901760
      %v1210 = vsub.f32 %v1000, %v1209
      %1211 = vmatpush1.msra.mxu0 %v1210
      %1212 = vmatprep.subr.mxu0 0.0
      %v1213 = vand.u32 %v1007, 4294901760
      %v1214 = vsub.f32 %v1007, %v1213
      %1215 = vmatpush1.msra.mxu0 %v1214
      %1216 = vmatprep.subr.mxu0 0.0
      %1217 = vmatpush1.msra.mxu0 0.0
      %1218 = vmatprep.subr.mxu0 0.0
      %1219 = vmatpush1.msra.mxu0 0.0
      %1220 = vmatprep.subr.mxu0 0.0
      %1221 = vmatpush1.msra.mxu0 0.0
      %1222 = vmatprep.subr.mxu0 0.0
      %1223 = vmatpush1.msra.mxu0 0.0
      %1224 = vmatprep.subr.mxu0 0.0
      %1225 = vmatpush1.msra.mxu0 0.0
      %1226 = vmatprep.subr.mxu0 0.0
      %1227 = vmatpush1.msra.mxu0 0.0
      %1228 = vmatprep.subr.mxu0 0.0
      %1229 = vmatpush1.msra.mxu0 0.0
      %1230 = vmatprep.subr.mxu0 0.0
      %1231 = vmatpush1.msra.mxu0 0.0
      %1232 = vmatprep.subr.mxu0 0.0
      %1233 = vmatpush1.msra.mxu0 0.0
      %1234 = vmatprep.subr.mxu0 0.0
      %1235 = vmatpush1.msra.mxu0 0.0
      %1236 = vmatprep.subr.mxu0 0.0
      %1237 = vmatpush1.msra.mxu0 0.0
      %1238 = vmatprep.subr.mxu0 0.0
      %1239 = vmatpush1.msra.mxu0 0.0
      %1240 = vmatprep.subr.mxu0 0.0
      %1241 = vmatpush1.msra.mxu0 0.0
      %1242 = vmatprep.subr.mxu0 0.0
      %1243 = vmatpush1.msra.mxu0 0.0
      %1244 = vmatprep.subr.mxu0 0.0
      %1245 = vmatpush1.msra.mxu0 0.0
      %1246 = vmatprep.subr.mxu0 0.0
      %1247 = vmatpush1.msra.mxu0 0.0
      %1248 = vmatprep.subr.mxu0 0.0
      %1249 = vmatpush1.msra.mxu0 0.0
      %1250 = vmatprep.subr.mxu0 0.0
      %1251 = vmatpush1.msra.mxu0 0.0
      %1252 = vmatprep.subr.mxu0 0.0
      %1253 = vmatpush1.msra.mxu0 0.0
      %1254 = vmatprep.subr.mxu0 0.0
      %1255 = vmatpush1.msra.mxu0 0.0
      %1256 = vmatprep.subr.mxu0 0.0
      %1257 = vmatpush1.msra.mxu0 0.0
      %1258 = vmatprep.subr.mxu0 0.0
      %1259 = vmatpush1.msra.mxu0 0.0
      %1260 = vmatprep.subr.mxu0 0.0
      %1261 = vmatpush1.msra.mxu0 0.0
      %1262 = vmatprep.subr.mxu0 0.0
      %1263 = vmatpush1.msra.mxu0 0.0
      %1264 = vmatprep.subr.mxu0 0.0
      %1265 = vmatpush1.msra.mxu0 0.0
      %1266 = vmatprep.subr.mxu0 0.0
      %1267 = vmatpush1.msra.mxu0 0.0
      %1268 = vmatprep.subr.mxu0 0.0
      %1269 = vmatpush1.msra.mxu0 0.0
      %1270 = vmatprep.subr.mxu0 0.0
      %1271 = vmatpush1.msra.mxu0 0.0
      %1272 = vmatprep.subr.mxu0 0.0
      %1273 = vmatpush1.msra.mxu0 0.0
      %1274 = vmatprep.subr.mxu0 0.0
      %1275 = vmatpush1.msra.mxu0 0.0
      %1276 = vmatprep.mubr.f32.mxu0 0.0
      %v1277 = vand.u32 %v1029, 4294901760
      %v1278 = vsub.f32 %v1029, %v1277
      %1279 = vmatmul.mubr.f32.gmra.mrb[0].mxu0 %v1278
      %v1280 = vpop.f32.mrb[0].mxu0
      %v1281 = vadd.f32 %v1199, %v1280
      %v1282 = vpop.f32.mrb[0].mxu0
      %1283 = vmatprep.mubr.f32.mxu0 0.0
      %v1284 = vand.u32 %v1032, 4294901760
      %v1285 = vsub.f32 %v1032, %v1284
      %1286 = vmatmul.mubr.f32.gmra.mrb[0].mxu0 %v1285
      %v1287 = vpop.f32.mrb[0].mxu0
      %v1288 = vadd.f32 %v1205, %v1287
      %v1289 = vpop.f32.mrb[0].mxu0
      %1290 = vdwg.mxu0
      %1291 = vmatprep.subr.mxu0 0.0
      %v1292 = vand.u32 %v1000, 4294901760
      %1293 = vmatpush1.msra.mxu0 %v1292
      %1294 = vmatprep.subr.mxu0 0.0
      %v1295 = vand.u32 %v1007, 4294901760
      %1296 = vmatpush1.msra.mxu0 %v1295
      %1297 = vmatprep.subr.mxu0 0.0
      %1298 = vmatpush1.msra.mxu0 0.0
      %1299 = vmatprep.subr.mxu0 0.0
      %1300 = vmatpush1.msra.mxu0 0.0
      %1301 = vmatprep.subr.mxu0 0.0
      %1302 = vmatpush1.msra.mxu0 0.0
      %1303 = vmatprep.subr.mxu0 0.0
      %1304 = vmatpush1.msra.mxu0 0.0
      %1305 = vmatprep.subr.mxu0 0.0
      %1306 = vmatpush1.msra.mxu0 0.0
      %1307 = vmatprep.subr.mxu0 0.0
      %1308 = vmatpush1.msra.mxu0 0.0
      %1309 = vmatprep.subr.mxu0 0.0
      %1310 = vmatpush1.msra.mxu0 0.0
      %1311 = vmatprep.subr.mxu0 0.0
      %1312 = vmatpush1.msra.mxu0 0.0
      %1313 = vmatprep.subr.mxu0 0.0
      %1314 = vmatpush1.msra.mxu0 0.0
      %1315 = vmatprep.subr.mxu0 0.0
      %1316 = vmatpush1.msra.mxu0 0.0
      %1317 = vmatprep.subr.mxu0 0.0
      %1318 = vmatpush1.msra.mxu0 0.0
      %1319 = vmatprep.subr.mxu0 0.0
      %1320 = vmatpush1.msra.mxu0 0.0
      %1321 = vmatprep.subr.mxu0 0.0
      %1322 = vmatpush1.msra.mxu0 0.0
      %1323 = vmatprep.subr.mxu0 0.0
      %1324 = vmatpush1.msra.mxu0 0.0
      %1325 = vmatprep.subr.mxu0 0.0
      %1326 = vmatpush1.msra.mxu0 0.0
      %1327 = vmatprep.subr.mxu0 0.0
      %1328 = vmatpush1.msra.mxu0 0.0
      %1329 = vmatprep.subr.mxu0 0.0
      %1330 = vmatpush1.msra.mxu0 0.0
      %1331 = vmatprep.subr.mxu0 0.0
      %1332 = vmatpush1.msra.mxu0 0.0
      %1333 = vmatprep.subr.mxu0 0.0
      %1334 = vmatpush1.msra.mxu0 0.0
      %1335 = vmatprep.subr.mxu0 0.0
      %1336 = vmatpush1.msra.mxu0 0.0
      %1337 = vmatprep.subr.mxu0 0.0
      %1338 = vmatpush1.msra.mxu0 0.0
      %1339 = vmatprep.subr.mxu0 0.0
      %1340 = vmatpush1.msra.mxu0 0.0
      %1341 = vmatprep.subr.mxu0 0.0
      %1342 = vmatpush1.msra.mxu0 0.0
      %1343 = vmatprep.subr.mxu0 0.0
      %1344 = vmatpush1.msra.mxu0 0.0
      %1345 = vmatprep.subr.mxu0 0.0
      %1346 = vmatpush1.msra.mxu0 0.0
      %1347 = vmatprep.subr.mxu0 0.0
      %1348 = vmatpush1.msra.mxu0 0.0
      %1349 = vmatprep.subr.mxu0 0.0
      %1350 = vmatpush1.msra.mxu0 0.0
      %1351 = vmatprep.subr.mxu0 0.0
      %1352 = vmatpush1.msra.mxu0 0.0
      %1353 = vmatprep.subr.mxu0 0.0
      %1354 = vmatpush1.msra.mxu0 0.0
      %1355 = vmatprep.subr.mxu0 0.0
      %1356 = vmatpush1.msra.mxu0 0.0
      %1357 = vmatprep.mubr.f32.mxu0 0.0
      %v1358 = vand.u32 %v1029, 4294901760
      %v1359 = vsub.f32 %v1029, %v1358
      %v1360 = vand.u32 %v1359, 4294901760
      %1361 = vmatmul.mubr.f32.gmra.mrb[0].mxu0 %v1360
      %v1362 = vpop.f32.mrb[0].mxu0
      %v1363 = vadd.f32 %v1281, %v1362
      %v1364 = vpop.f32.mrb[0].mxu0
      %1365 = vmatprep.mubr.f32.mxu0 0.0
      %v1366 = vand.u32 %v1032, 4294901760
      %v1367 = vsub.f32 %v1032, %v1366
      %v1368 = vand.u32 %v1367, 4294901760
      %1369 = vmatmul.mubr.f32.gmra.mrb[0].mxu0 %v1368
      %v1370 = vpop.f32.mrb[0].mxu0
      %v1371 = vadd.f32 %v1288, %v1370
      %v1372 = vpop.f32.mrb[0].mxu0
      %1373 = vdwg.mxu0
      %1374 = vmatprep.subr.mxu0 0.0
      %v1375 = vand.u32 %v1000, 4294901760
      %v1376 = vsub.f32 %v1000, %v1375
      %v1377 = vand.u32 %v1376, 4294901760
      %1378 = vmatpush1.msra.mxu0 %v1377
      %1379 = vmatprep.subr.mxu0 0.0
      %v1380 = vand.u32 %v1007, 4294901760
      %v1381 = vsub.f32 %v1007, %v1380
      %v1382 = vand.u32 %v1381, 4294901760
      %1383 = vmatpush1.msra.mxu0 %v1382
      %1384 = vmatprep.subr.mxu0 0.0
      %1385 = vmatpush1.msra.mxu0 0.0
      %1386 = vmatprep.subr.mxu0 0.0
      %1387 = vmatpush1.msra.mxu0 0.0
      %1388 = vmatprep.subr.mxu0 0.0
      %1389 = vmatpush1.msra.mxu0 0.0
      %1390 = vmatprep.subr.mxu0 0.0
      %1391 = vmatpush1.msra.mxu0 0.0
      %1392 = vmatprep.subr.mxu0 0.0
      %1393 = vmatpush1.msra.mxu0 0.0
      %1394 = vmatprep.subr.mxu0 0.0
      %1395 = vmatpush1.msra.mxu0 0.0
      %1396 = vmatprep.subr.mxu0 0.0
      %1397 = vmatpush1.msra.mxu0 0.0
      %1398 = vmatprep.subr.mxu0 0.0
      %1399 = vmatpush1.msra.mxu0 0.0
      %1400 = vmatprep.subr.mxu0 0.0
      %1401 = vmatpush1.msra.mxu0 0.0
      %1402 = vmatprep.subr.mxu0 0.0
      %1403 = vmatpush1.msra.mxu0 0.0
      %1404 = vmatprep.subr.mxu0 0.0
      %1405 = vmatpush1.msra.mxu0 0.0
      %1406 = vmatprep.subr.mxu0 0.0
      %1407 = vmatpush1.msra.mxu0 0.0
      %1408 = vmatprep.subr.mxu0 0.0
      %1409 = vmatpush1.msra.mxu0 0.0
      %1410 = vmatprep.subr.mxu0 0.0
      %1411 = vmatpush1.msra.mxu0 0.0
      %1412 = vmatprep.subr.mxu0 0.0
      %1413 = vmatpush1.msra.mxu0 0.0
      %1414 = vmatprep.subr.mxu0 0.0
      %1415 = vmatpush1.msra.mxu0 0.0
      %1416 = vmatprep.subr.mxu0 0.0
      %1417 = vmatpush1.msra.mxu0 0.0
      %1418 = vmatprep.subr.mxu0 0.0
      %1419 = vmatpush1.msra.mxu0 0.0
      %1420 = vmatprep.subr.mxu0 0.0
      %1421 = vmatpush1.msra.mxu0 0.0
      %1422 = vmatprep.subr.mxu0 0.0
      %1423 = vmatpush1.msra.mxu0 0.0
      %1424 = vmatprep.subr.mxu0 0.0
      %1425 = vmatpush1.msra.mxu0 0.0
      %1426 = vmatprep.subr.mxu0 0.0
      %1427 = vmatpush1.msra.mxu0 0.0
      %1428 = vmatprep.subr.mxu0 0.0
      %1429 = vmatpush1.msra.mxu0 0.0
      %1430 = vmatprep.subr.mxu0 0.0
      %1431 = vmatpush1.msra.mxu0 0.0
      %1432 = vmatprep.subr.mxu0 0.0
      %1433 = vmatpush1.msra.mxu0 0.0
      %1434 = vmatprep.subr.mxu0 0.0
      %1435 = vmatpush1.msra.mxu0 0.0
      %1436 = vmatprep.subr.mxu0 0.0
      %1437 = vmatpush1.msra.mxu0 0.0
      %1438 = vmatprep.subr.mxu0 0.0
      %1439 = vmatpush1.msra.mxu0 0.0
      %1440 = vmatprep.subr.mxu0 0.0
      %1441 = vmatpush1.msra.mxu0 0.0
      %1442 = vmatprep.subr.mxu0 0.0
      %1443 = vmatpush1.msra.mxu0 0.0
      %1444 = vmatprep.mubr.f32.mxu0 0.0
      %v1445 = vand.u32 %v1029, 4294901760
      %1446 = vmatmul.mubr.f32.gmra.mrb[0].mxu0 %v1445
      %v1447 = vpop.f32.mrb[0].mxu0
      %v1448 = vadd.f32 %v1363, %v1447
      %v1449 = vpop.f32.mrb[0].mxu0
      %1450 = vmatprep.mubr.f32.mxu0 0.0
      %v1451 = vand.u32 %v1032, 4294901760
      %1452 = vmatmul.mubr.f32.gmra.mrb[0].mxu0 %v1451
      %v1453 = vpop.f32.mrb[0].mxu0
      %v1454 = vadd.f32 %v1371, %v1453
      %v1455 = vpop.f32.mrb[0].mxu0
      %1456 = vdwg.mxu0
      %1457 = vmatprep.subr.mxu0 0.0
      %v1458 = vand.u32 %v1000, 4294901760
      %1459 = vmatpush1.msra.mxu0 %v1458
      %1460 = vmatprep.subr.mxu0 0.0
      %v1461 = vand.u32 %v1007, 4294901760
      %1462 = vmatpush1.msra.mxu0 %v1461
      %1463 = vmatprep.subr.mxu0 0.0
      %1464 = vmatpush1.msra.mxu0 0.0
      %1465 = vmatprep.subr.mxu0 0.0
      %1466 = vmatpush1.msra.mxu0 0.0
      %1467 = vmatprep.subr.mxu0 0.0
      %1468 = vmatpush1.msra.mxu0 0.0
      %1469 = vmatprep.subr.mxu0 0.0
      %1470 = vmatpush1.msra.mxu0 0.0
      %1471 = vmatprep.subr.mxu0 0.0
      %1472 = vmatpush1.msra.mxu0 0.0
      %1473 = vmatprep.subr.mxu0 0.0
      %1474 = vmatpush1.msra.mxu0 0.0
      %1475 = vmatprep.subr.mxu0 0.0
      %1476 = vmatpush1.msra.mxu0 0.0
      %1477 = vmatprep.subr.mxu0 0.0
      %1478 = vmatpush1.msra.mxu0 0.0
      %1479 = vmatprep.subr.mxu0 0.0
      %1480 = vmatpush1.msra.mxu0 0.0
      %1481 = vmatprep.subr.mxu0 0.0
      %1482 = vmatpush1.msra.mxu0 0.0
      %1483 = vmatprep.subr.mxu0 0.0
      %1484 = vmatpush1.msra.mxu0 0.0
      %1485 = vmatprep.subr.mxu0 0.0
      %1486 = vmatpush1.msra.mxu0 0.0
      %1487 = vmatprep.subr.mxu0 0.0
      %1488 = vmatpush1.msra.mxu0 0.0
      %1489 = vmatprep.subr.mxu0 0.0
      %1490 = vmatpush1.msra.mxu0 0.0
      %1491 = vmatprep.subr.mxu0 0.0
      %1492 = vmatpush1.msra.mxu0 0.0
      %1493 = vmatprep.subr.mxu0 0.0
      %1494 = vmatpush1.msra.mxu0 0.0
      %1495 = vmatprep.subr.mxu0 0.0
      %1496 = vmatpush1.msra.mxu0 0.0
      %1497 = vmatprep.subr.mxu0 0.0
      %1498 = vmatpush1.msra.mxu0 0.0
      %1499 = vmatprep.subr.mxu0 0.0
      %1500 = vmatpush1.msra.mxu0 0.0
      %1501 = vmatprep.subr.mxu0 0.0
      %1502 = vmatpush1.msra.mxu0 0.0
      %1503 = vmatprep.subr.mxu0 0.0
      %1504 = vmatpush1.msra.mxu0 0.0
      %1505 = vmatprep.subr.mxu0 0.0
      %1506 = vmatpush1.msra.mxu0 0.0
      %1507 = vmatprep.subr.mxu0 0.0
      %1508 = vmatpush1.msra.mxu0 0.0
      %1509 = vmatprep.subr.mxu0 0.0
      %1510 = vmatpush1.msra.mxu0 0.0
      %1511 = vmatprep.subr.mxu0 0.0
      %1512 = vmatpush1.msra.mxu0 0.0
      %1513 = vmatprep.subr.mxu0 0.0
      %1514 = vmatpush1.msra.mxu0 0.0
      %1515 = vmatprep.subr.mxu0 0.0
      %1516 = vmatpush1.msra.mxu0 0.0
      %1517 = vmatprep.subr.mxu0 0.0
      %1518 = vmatpush1.msra.mxu0 0.0
      %1519 = vmatprep.subr.mxu0 0.0
      %1520 = vmatpush1.msra.mxu0 0.0
      %1521 = vmatprep.subr.mxu0 0.0
      %1522 = vmatpush1.msra.mxu0 0.0
      %1523 = vmatprep.mubr.f32.mxu0 0.0
      %v1524 = vand.u32 %v1029, 4294901760
      %1525 = vmatmul.mubr.f32.gmra.mrb[0].mxu0 %v1524
      %v1526 = vpop.f32.mrb[0].mxu0
      %v1527 = vadd.f32 %v1448, %v1526
      %v1528 = vpop.f32.mrb[0].mxu0
      %1529 = vmatprep.mubr.f32.mxu0 0.0
      %v1530 = vand.u32 %v1032, 4294901760
      %1531 = vmatmul.mubr.f32.gmra.mrb[0].mxu0 %v1530
      %v1532 = vpop.f32.mrb[0].mxu0
      %v1533 = vadd.f32 %v1454, %v1532
      %v1534 = vpop.f32.mrb[0].mxu0
      %1535 = vdwg.mxu0
      %v1536 = vld [vmem:[#allocation5] sm:$0xff]
      %v1537 = vld [vmem:[#allocation5 + $0x8] sm:$0xff]
      %v1538 = vld [vmem:[#allocation5 + $0x10] sm:$0xff]
      %v1539 = vld [vmem:[#allocation5 + $0x18] sm:$0xff]
      %v1540 = vld [vmem:[#allocation5 + $0x20] sm:$0xff]
      %v1541 = vld [vmem:[#allocation5 + $0x28] sm:$0xff]
      %v1542 = vld [vmem:[#allocation5 + $0x30] sm:$0xff]
      %v1543 = vld [vmem:[#allocation5 + $0x38] sm:$0xff]
      %v1544 = vld [vmem:[#allocation5 + $0x40] sm:$0xff]
      %v1545 = vld [vmem:[#allocation5 + $0x48] sm:$0xff]
      %v1546 = vld [vmem:[#allocation5 + $0x50] sm:$0xff]
      %v1547 = vld [vmem:[#allocation5 + $0x58] sm:$0xff]
      %v1548 = vld [vmem:[#allocation5 + $0x60] sm:$0xff]
      %v1549 = vld [vmem:[#allocation5 + $0x68] sm:$0xff]
      %v1550 = vld [vmem:[#allocation5 + $0x70] sm:$0xff]
      %v1551 = vld [vmem:[#allocation5 + $0x78] sm:$0xff]
      %v1552 = vld [vmem:[%s7] sm:$0x1]
      %v1554 = vlaneseq
      %v1555 = vshrl.u32 %v1554, 7
      %v1556 = vsub.s32 0, %v1555
      %v1557 = vrot.slane %v1552, %v1556
      %1559 = vmatprep.subr.mxu0 0.0
      %v1560 = vand.u32 %v1536, 4294901760
      %1561 = vmatpush1.msra.mxu0 %v1560
      %1562 = vmatprep.subr.mxu0 0.0
      %v1563 = vand.u32 %v1537, 4294901760
      %1564 = vmatpush1.msra.mxu0 %v1563
      %1565 = vmatprep.subr.mxu0 0.0
      %v1566 = vand.u32 %v1538, 4294901760
      %1567 = vmatpush1.msra.mxu0 %v1566
      %1568 = vmatprep.subr.mxu0 0.0
      %v1569 = vand.u32 %v1539, 4294901760
      %1570 = vmatpush1.msra.mxu0 %v1569
      %1571 = vmatprep.subr.mxu0 0.0
      %v1572 = vand.u32 %v1540, 4294901760
      %1573 = vmatpush1.msra.mxu0 %v1572
      %1574 = vmatprep.subr.mxu0 0.0
      %v1575 = vand.u32 %v1541, 4294901760
      %1576 = vmatpush1.msra.mxu0 %v1575
      %1577 = vmatprep.subr.mxu0 0.0
      %v1578 = vand.u32 %v1542, 4294901760
      %1579 = vmatpush1.msra.mxu0 %v1578
      %1580 = vmatprep.subr.mxu0 0.0
      %v1581 = vand.u32 %v1543, 4294901760
      %1582 = vmatpush1.msra.mxu0 %v1581
      %1583 = vmatprep.subr.mxu0 0.0
      %v1584 = vand.u32 %v1544, 4294901760
      %1585 = vmatpush1.msra.mxu0 %v1584
      %1586 = vmatprep.subr.mxu0 0.0
      %v1587 = vand.u32 %v1545, 4294901760
      %1588 = vmatpush1.msra.mxu0 %v1587
      %1589 = vmatprep.subr.mxu0 0.0
      %v1590 = vand.u32 %v1546, 4294901760
      %1591 = vmatpush1.msra.mxu0 %v1590
      %1592 = vmatprep.subr.mxu0 0.0
      %v1593 = vand.u32 %v1547, 4294901760
      %1594 = vmatpush1.msra.mxu0 %v1593
      %1595 = vmatprep.subr.mxu0 0.0
      %v1596 = vand.u32 %v1548, 4294901760
      %1597 = vmatpush1.msra.mxu0 %v1596
      %1598 = vmatprep.subr.mxu0 0.0
      %v1599 = vand.u32 %v1549, 4294901760
      %1600 = vmatpush1.msra.mxu0 %v1599
      %1601 = vmatprep.subr.mxu0 0.0
      %v1602 = vand.u32 %v1550, 4294901760
      %1603 = vmatpush1.msra.mxu0 %v1602
      %1604 = vmatprep.subr.mxu0 0.0
      %v1605 = vand.u32 %v1551, 4294901760
      %1606 = vmatpush1.msra.mxu0 %v1605
      %1607 = vmatprep.subr.mxu0 0.0
      %1608 = vmatpush1.msra.mxu0 0.0
      %1609 = vmatprep.subr.mxu0 0.0
      %1610 = vmatpush1.msra.mxu0 0.0
      %1611 = vmatprep.subr.mxu0 0.0
      %1612 = vmatpush1.msra.mxu0 0.0
      %1613 = vmatprep.subr.mxu0 0.0
      %1614 = vmatpush1.msra.mxu0 0.0
      %1615 = vmatprep.subr.mxu0 0.0
      %1616 = vmatpush1.msra.mxu0 0.0
      %1617 = vmatprep.subr.mxu0 0.0
      %1618 = vmatpush1.msra.mxu0 0.0
      %1619 = vmatprep.subr.mxu0 0.0
      %1620 = vmatpush1.msra.mxu0 0.0
      %1621 = vmatprep.subr.mxu0 0.0
      %1622 = vmatpush1.msra.mxu0 0.0
      %1623 = vmatprep.subr.mxu0 0.0
      %1624 = vmatpush1.msra.mxu0 0.0
      %1625 = vmatprep.subr.mxu0 0.0
      %1626 = vmatpush1.msra.mxu0 0.0
      %1627 = vmatprep.subr.mxu0 0.0
      %1628 = vmatpush1.msra.mxu0 0.0
      %1629 = vmatprep.subr.mxu0 0.0
      %1630 = vmatpush1.msra.mxu0 0.0
      %1631 = vmatprep.subr.mxu0 0.0
      %1632 = vmatpush1.msra.mxu0 0.0
      %1633 = vmatprep.subr.mxu0 0.0
      %1634 = vmatpush1.msra.mxu0 0.0
      %1635 = vmatprep.subr.mxu0 0.0
      %1636 = vmatpush1.msra.mxu0 0.0
      %1637 = vmatprep.subr.mxu0 0.0
      %1638 = vmatpush1.msra.mxu0 0.0
      %1639 = vmatprep.mubr.f32.mxu0 0.0
      %v1640 = vand.u32 %v1527, 4294901760
      %v1641 = vsub.f32 %v1527, %v1640
      %v1642 = vand.u32 %v1641, 4294901760
      %v1643 = vsub.f32 %v1641, %v1642
      %v1644 = vand.u32 %v1643, 4294901760
      %1645 = vmatmul.mubr.f32.gmra.mrb[0].mxu0 %v1644
      %v1646 = vpop.f32.mrb[0].mxu0
      %v1647 = vadd.f32 %v1557, %v1646
      %v1648 = vpop.f32.mrb[0].mxu0
      %1649 = vmatprep.mubr.f32.mxu0 0.0
      %v1650 = vand.u32 %v1533, 4294901760
      %v1651 = vsub.f32 %v1533, %v1650
      %v1652 = vand.u32 %v1651, 4294901760
      %v1653 = vsub.f32 %v1651, %v1652
      %v1654 = vand.u32 %v1653, 4294901760
      %1655 = vmatmul.mubr.f32.gmra.mrb[0].mxu0 %v1654
      %v1656 = vpop.f32.mrb[0].mxu0
      %v1657 = vadd.f32 %v1557, %v1656
      %v1658 = vpop.f32.mrb[0].mxu0
      %1659 = vdwg.mxu0
      %1660 = vmatprep.subr.mxu0 0.0
      %v1661 = vand.u32 %v1536, 4294901760
      %v1662 = vsub.f32 %v1536, %v1661
      %v1663 = vand.u32 %v1662, 4294901760
      %v1664 = vsub.f32 %v1662, %v1663
      %v1665 = vand.u32 %v1664, 4294901760
      %1666 = vmatpush1.msra.mxu0 %v1665
      %1667 = vmatprep.subr.mxu0 0.0
      %v1668 = vand.u32 %v1537, 4294901760
      %v1669 = vsub.f32 %v1537, %v1668
      %v1670 = vand.u32 %v1669, 4294901760
      %v1671 = vsub.f32 %v1669, %v1670
      %v1672 = vand.u32 %v1671, 4294901760
      %1673 = vmatpush1.msra.mxu0 %v1672
      %1674 = vmatprep.subr.mxu0 0.0
      %v1675 = vand.u32 %v1538, 4294901760
      %v1676 = vsub.f32 %v1538, %v1675
      %v1677 = vand.u32 %v1676, 4294901760
      %v1678 = vsub.f32 %v1676, %v1677
      %v1679 = vand.u32 %v1678, 4294901760
      %1680 = vmatpush1.msra.mxu0 %v1679
      %1681 = vmatprep.subr.mxu0 0.0
      %v1682 = vand.u32 %v1539, 4294901760
      %v1683 = vsub.f32 %v1539, %v1682
      %v1684 = vand.u32 %v1683, 4294901760
      %v1685 = vsub.f32 %v1683, %v1684
      %v1686 = vand.u32 %v1685, 4294901760
      %1687 = vmatpush1.msra.mxu0 %v1686
      %1688 = vmatprep.subr.mxu0 0.0
      %v1689 = vand.u32 %v1540, 4294901760
      %v1690 = vsub.f32 %v1540, %v1689
      %v1691 = vand.u32 %v1690, 4294901760
      %v1692 = vsub.f32 %v1690, %v1691
      %v1693 = vand.u32 %v1692, 4294901760
      %1694 = vmatpush1.msra.mxu0 %v1693
      %1695 = vmatprep.subr.mxu0 0.0
      %v1696 = vand.u32 %v1541, 4294901760
      %v1697 = vsub.f32 %v1541, %v1696
      %v1698 = vand.u32 %v1697, 4294901760
      %v1699 = vsub.f32 %v1697, %v1698
      %v1700 = vand.u32 %v1699, 4294901760
      %1701 = vmatpush1.msra.mxu0 %v1700
      %1702 = vmatprep.subr.mxu0 0.0
      %v1703 = vand.u32 %v1542, 4294901760
      %v1704 = vsub.f32 %v1542, %v1703
      %v1705 = vand.u32 %v1704, 4294901760
      %v1706 = vsub.f32 %v1704, %v1705
      %v1707 = vand.u32 %v1706, 4294901760
      %1708 = vmatpush1.msra.mxu0 %v1707
      %1709 = vmatprep.subr.mxu0 0.0
      %v1710 = vand.u32 %v1543, 4294901760
      %v1711 = vsub.f32 %v1543, %v1710
      %v1712 = vand.u32 %v1711, 4294901760
      %v1713 = vsub.f32 %v1711, %v1712
      %v1714 = vand.u32 %v1713, 4294901760
      %1715 = vmatpush1.msra.mxu0 %v1714
      %1716 = vmatprep.subr.mxu0 0.0
      %v1717 = vand.u32 %v1544, 4294901760
      %v1718 = vsub.f32 %v1544, %v1717
      %v1719 = vand.u32 %v1718, 4294901760
      %v1720 = vsub.f32 %v1718, %v1719
      %v1721 = vand.u32 %v1720, 4294901760
      %1722 = vmatpush1.msra.mxu0 %v1721
      %1723 = vmatprep.subr.mxu0 0.0
      %v1724 = vand.u32 %v1545, 4294901760
      %v1725 = vsub.f32 %v1545, %v1724
      %v1726 = vand.u32 %v1725, 4294901760
      %v1727 = vsub.f32 %v1725, %v1726
      %v1728 = vand.u32 %v1727, 4294901760
      %1729 = vmatpush1.msra.mxu0 %v1728
      %1730 = vmatprep.subr.mxu0 0.0
      %v1731 = vand.u32 %v1546, 4294901760
      %v1732 = vsub.f32 %v1546, %v1731
      %v1733 = vand.u32 %v1732, 4294901760
      %v1734 = vsub.f32 %v1732, %v1733
      %v1735 = vand.u32 %v1734, 4294901760
      %1736 = vmatpush1.msra.mxu0 %v1735
      %1737 = vmatprep.subr.mxu0 0.0
      %v1738 = vand.u32 %v1547, 4294901760
      %v1739 = vsub.f32 %v1547, %v1738
      %v1740 = vand.u32 %v1739, 4294901760
      %v1741 = vsub.f32 %v1739, %v1740
      %v1742 = vand.u32 %v1741, 4294901760
      %1743 = vmatpush1.msra.mxu0 %v1742
      %1744 = vmatprep.subr.mxu0 0.0
      %v1745 = vand.u32 %v1548, 4294901760
      %v1746 = vsub.f32 %v1548, %v1745
      %v1747 = vand.u32 %v1746, 4294901760
      %v1748 = vsub.f32 %v1746, %v1747
      %v1749 = vand.u32 %v1748, 4294901760
      %1750 = vmatpush1.msra.mxu0 %v1749
      %1751 = vmatprep.subr.mxu0 0.0
      %v1752 = vand.u32 %v1549, 4294901760
      %v1753 = vsub.f32 %v1549, %v1752
      %v1754 = vand.u32 %v1753, 4294901760
      %v1755 = vsub.f32 %v1753, %v1754
      %v1756 = vand.u32 %v1755, 4294901760
      %1757 = vmatpush1.msra.mxu0 %v1756
      %1758 = vmatprep.subr.mxu0 0.0
      %v1759 = vand.u32 %v1550, 4294901760
      %v1760 = vsub.f32 %v1550, %v1759
      %v1761 = vand.u32 %v1760, 4294901760
      %v1762 = vsub.f32 %v1760, %v1761
      %v1763 = vand.u32 %v1762, 4294901760
      %1764 = vmatpush1.msra.mxu0 %v1763
      %1765 = vmatprep.subr.mxu0 0.0
      %v1766 = vand.u32 %v1551, 4294901760
      %v1767 = vsub.f32 %v1551, %v1766
      %v1768 = vand.u32 %v1767, 4294901760
      %v1769 = vsub.f32 %v1767, %v1768
      %v1770 = vand.u32 %v1769, 4294901760
      %1771 = vmatpush1.msra.mxu0 %v1770
      %1772 = vmatprep.subr.mxu0 0.0
      %1773 = vmatpush1.msra.mxu0 0.0
      %1774 = vmatprep.subr.mxu0 0.0
      %1775 = vmatpush1.msra.mxu0 0.0
      %1776 = vmatprep.subr.mxu0 0.0
      %1777 = vmatpush1.msra.mxu0 0.0
      %1778 = vmatprep.subr.mxu0 0.0
      %1779 = vmatpush1.msra.mxu0 0.0
      %1780 = vmatprep.subr.mxu0 0.0
      %1781 = vmatpush1.msra.mxu0 0.0
      %1782 = vmatprep.subr.mxu0 0.0
      %1783 = vmatpush1.msra.mxu0 0.0
      %1784 = vmatprep.subr.mxu0 0.0
      %1785 = vmatpush1.msra.mxu0 0.0
      %1786 = vmatprep.subr.mxu0 0.0
      %1787 = vmatpush1.msra.mxu0 0.0
      %1788 = vmatprep.subr.mxu0 0.0
      %1789 = vmatpush1.msra.mxu0 0.0
      %1790 = vmatprep.subr.mxu0 0.0
      %1791 = vmatpush1.msra.mxu0 0.0
      %1792 = vmatprep.subr.mxu0 0.0
      %1793 = vmatpush1.msra.mxu0 0.0
      %1794 = vmatprep.subr.mxu0 0.0
      %1795 = vmatpush1.msra.mxu0 0.0
      %1796 = vmatprep.subr.mxu0 0.0
      %1797 = vmatpush1.msra.mxu0 0.0
      %1798 = vmatprep.subr.mxu0 0.0
      %1799 = vmatpush1.msra.mxu0 0.0
      %1800 = vmatprep.subr.mxu0 0.0
      %1801 = vmatpush1.msra.mxu0 0.0
      %1802 = vmatprep.subr.mxu0 0.0
      %1803 = vmatpush1.msra.mxu0 0.0
      %1804 = vmatprep.mubr.f32.mxu0 0.0
      %v1805 = vand.u32 %v1527, 4294901760
      %1806 = vmatmul.mubr.f32.gmra.mrb[0].mxu0 %v1805
      %v1807 = vpop.f32.mrb[0].mxu0
      %v1808 = vadd.f32 %v1647, %v1807
      %v1809 = vpop.f32.mrb[0].mxu0
      %1810 = vmatprep.mubr.f32.mxu0 0.0
      %v1811 = vand.u32 %v1533, 4294901760
      %1812 = vmatmul.mubr.f32.gmra.mrb[0].mxu0 %v1811
      %v1813 = vpop.f32.mrb[0].mxu0
      %v1814 = vadd.f32 %v1657, %v1813
      %v1815 = vpop.f32.mrb[0].mxu0
      %1816 = vdwg.mxu0
      %1817 = vmatprep.subr.mxu0 0.0
      %v1818 = vand.u32 %v1536, 4294901760
      %v1819 = vsub.f32 %v1536, %v1818
      %1820 = vmatpush1.msra.mxu0 %v1819
      %1821 = vmatprep.subr.mxu0 0.0
      %v1822 = vand.u32 %v1537, 4294901760
      %v1823 = vsub.f32 %v1537, %v1822
      %1824 = vmatpush1.msra.mxu0 %v1823
      %1825 = vmatprep.subr.mxu0 0.0
      %v1826 = vand.u32 %v1538, 4294901760
      %v1827 = vsub.f32 %v1538, %v1826
      %1828 = vmatpush1.msra.mxu0 %v1827
      %1829 = vmatprep.subr.mxu0 0.0
      %v1830 = vand.u32 %v1539, 4294901760
      %v1831 = vsub.f32 %v1539, %v1830
      %1832 = vmatpush1.msra.mxu0 %v1831
      %1833 = vmatprep.subr.mxu0 0.0
      %v1834 = vand.u32 %v1540, 4294901760
      %v1835 = vsub.f32 %v1540, %v1834
      %1836 = vmatpush1.msra.mxu0 %v1835
      %1837 = vmatprep.subr.mxu0 0.0
      %v1838 = vand.u32 %v1541, 4294901760
      %v1839 = vsub.f32 %v1541, %v1838
      %1840 = vmatpush1.msra.mxu0 %v1839
      %1841 = vmatprep.subr.mxu0 0.0
      %v1842 = vand.u32 %v1542, 4294901760
      %v1843 = vsub.f32 %v1542, %v1842
      %1844 = vmatpush1.msra.mxu0 %v1843
      %1845 = vmatprep.subr.mxu0 0.0
      %v1846 = vand.u32 %v1543, 4294901760
      %v1847 = vsub.f32 %v1543, %v1846
      %1848 = vmatpush1.msra.mxu0 %v1847
      %1849 = vmatprep.subr.mxu0 0.0
      %v1850 = vand.u32 %v1544, 4294901760
      %v1851 = vsub.f32 %v1544, %v1850
      %1852 = vmatpush1.msra.mxu0 %v1851
      %1853 = vmatprep.subr.mxu0 0.0
      %v1854 = vand.u32 %v1545, 4294901760
      %v1855 = vsub.f32 %v1545, %v1854
      %1856 = vmatpush1.msra.mxu0 %v1855
      %1857 = vmatprep.subr.mxu0 0.0
      %v1858 = vand.u32 %v1546, 4294901760
      %v1859 = vsub.f32 %v1546, %v1858
      %1860 = vmatpush1.msra.mxu0 %v1859
      %1861 = vmatprep.subr.mxu0 0.0
      %v1862 = vand.u32 %v1547, 4294901760
      %v1863 = vsub.f32 %v1547, %v1862
      %1864 = vmatpush1.msra.mxu0 %v1863
      %1865 = vmatprep.subr.mxu0 0.0
      %v1866 = vand.u32 %v1548, 4294901760
      %v1867 = vsub.f32 %v1548, %v1866
      %1868 = vmatpush1.msra.mxu0 %v1867
      %1869 = vmatprep.subr.mxu0 0.0
      %v1870 = vand.u32 %v1549, 4294901760
      %v1871 = vsub.f32 %v1549, %v1870
      %1872 = vmatpush1.msra.mxu0 %v1871
      %1873 = vmatprep.subr.mxu0 0.0
      %v1874 = vand.u32 %v1550, 4294901760
      %v1875 = vsub.f32 %v1550, %v1874
      %1876 = vmatpush1.msra.mxu0 %v1875
      %1877 = vmatprep.subr.mxu0 0.0
      %v1878 = vand.u32 %v1551, 4294901760
      %v1879 = vsub.f32 %v1551, %v1878
      %1880 = vmatpush1.msra.mxu0 %v1879
      %1881 = vmatprep.subr.mxu0 0.0
      %1882 = vmatpush1.msra.mxu0 0.0
      %1883 = vmatprep.subr.mxu0 0.0
      %1884 = vmatpush1.msra.mxu0 0.0
      %1885 = vmatprep.subr.mxu0 0.0
      %1886 = vmatpush1.msra.mxu0 0.0
      %1887 = vmatprep.subr.mxu0 0.0
      %1888 = vmatpush1.msra.mxu0 0.0
      %1889 = vmatprep.subr.mxu0 0.0
      %1890 = vmatpush1.msra.mxu0 0.0
      %1891 = vmatprep.subr.mxu0 0.0
      %1892 = vmatpush1.msra.mxu0 0.0
      %1893 = vmatprep.subr.mxu0 0.0
      %1894 = vmatpush1.msra.mxu0 0.0
      %1895 = vmatprep.subr.mxu0 0.0
      %1896 = vmatpush1.msra.mxu0 0.0
      %1897 = vmatprep.subr.mxu0 0.0
      %1898 = vmatpush1.msra.mxu0 0.0
      %1899 = vmatprep.subr.mxu0 0.0
      %1900 = vmatpush1.msra.mxu0 0.0
      %1901 = vmatprep.subr.mxu0 0.0
      %1902 = vmatpush1.msra.mxu0 0.0
      %1903 = vmatprep.subr.mxu0 0.0
      %1904 = vmatpush1.msra.mxu0 0.0
      %1905 = vmatprep.subr.mxu0 0.0
      %1906 = vmatpush1.msra.mxu0 0.0
      %1907 = vmatprep.subr.mxu0 0.0
      %1908 = vmatpush1.msra.mxu0 0.0
      %1909 = vmatprep.subr.mxu0 0.0
      %1910 = vmatpush1.msra.mxu0 0.0
      %1911 = vmatprep.subr.mxu0 0.0
      %1912 = vmatpush1.msra.mxu0 0.0
      %1913 = vmatprep.mubr.f32.mxu0 0.0
      %v1914 = vand.u32 %v1527, 4294901760
      %v1915 = vsub.f32 %v1527, %v1914
      %1916 = vmatmul.mubr.f32.gmra.mrb[0].mxu0 %v1915
      %v1917 = vpop.f32.mrb[0].mxu0
      %v1918 = vadd.f32 %v1808, %v1917
      %v1919 = vpop.f32.mrb[0].mxu0
      %1920 = vmatprep.mubr.f32.mxu0 0.0
      %v1921 = vand.u32 %v1533, 4294901760
      %v1922 = vsub.f32 %v1533, %v1921
      %1923 = vmatmul.mubr.f32.gmra.mrb[0].mxu0 %v1922
      %v1924 = vpop.f32.mrb[0].mxu0
      %v1925 = vadd.f32 %v1814, %v1924
      %v1926 = vpop.f32.mrb[0].mxu0
      %1927 = vdwg.mxu0
      %1928 = vmatprep.subr.mxu0 0.0
      %v1929 = vand.u32 %v1536, 4294901760
      %1930 = vmatpush1.msra.mxu0 %v1929
      %1931 = vmatprep.subr.mxu0 0.0
      %v1932 = vand.u32 %v1537, 4294901760
      %1933 = vmatpush1.msra.mxu0 %v1932
      %1934 = vmatprep.subr.mxu0 0.0
      %v1935 = vand.u32 %v1538, 4294901760
      %1936 = vmatpush1.msra.mxu0 %v1935
      %1937 = vmatprep.subr.mxu0 0.0
      %v1938 = vand.u32 %v1539, 4294901760
      %1939 = vmatpush1.msra.mxu0 %v1938
      %1940 = vmatprep.subr.mxu0 0.0
      %v1941 = vand.u32 %v1540, 4294901760
      %1942 = vmatpush1.msra.mxu0 %v1941
      %1943 = vmatprep.subr.mxu0 0.0
      %v1944 = vand.u32 %v1541, 4294901760
      %1945 = vmatpush1.msra.mxu0 %v1944
      %1946 = vmatprep.subr.mxu0 0.0
      %v1947 = vand.u32 %v1542, 4294901760
      %1948 = vmatpush1.msra.mxu0 %v1947
      %1949 = vmatprep.subr.mxu0 0.0
      %v1950 = vand.u32 %v1543, 4294901760
      %1951 = vmatpush1.msra.mxu0 %v1950
      %1952 = vmatprep.subr.mxu0 0.0
      %v1953 = vand.u32 %v1544, 4294901760
      %1954 = vmatpush1.msra.mxu0 %v1953
      %1955 = vmatprep.subr.mxu0 0.0
      %v1956 = vand.u32 %v1545, 4294901760
      %1957 = vmatpush1.msra.mxu0 %v1956
      %1958 = vmatprep.subr.mxu0 0.0
      %v1959 = vand.u32 %v1546, 4294901760
      %1960 = vmatpush1.msra.mxu0 %v1959
      %1961 = vmatprep.subr.mxu0 0.0
      %v1962 = vand.u32 %v1547, 4294901760
      %1963 = vmatpush1.msra.mxu0 %v1962
      %1964 = vmatprep.subr.mxu0 0.0
      %v1965 = vand.u32 %v1548, 4294901760
      %1966 = vmatpush1.msra.mxu0 %v1965
      %1967 = vmatprep.subr.mxu0 0.0
      %v1968 = vand.u32 %v1549, 4294901760
      %1969 = vmatpush1.msra.mxu0 %v1968
      %1970 = vmatprep.subr.mxu0 0.0
      %v1971 = vand.u32 %v1550, 4294901760
      %1972 = vmatpush1.msra.mxu0 %v1971
      %1973 = vmatprep.subr.mxu0 0.0
      %v1974 = vand.u32 %v1551, 4294901760
      %1975 = vmatpush1.msra.mxu0 %v1974
      %1976 = vmatprep.subr.mxu0 0.0
      %1977 = vmatpush1.msra.mxu0 0.0
      %1978 = vmatprep.subr.mxu0 0.0
      %1979 = vmatpush1.msra.mxu0 0.0
      %1980 = vmatprep.subr.mxu0 0.0
      %1981 = vmatpush1.msra.mxu0 0.0
      %1982 = vmatprep.subr.mxu0 0.0
      %1983 = vmatpush1.msra.mxu0 0.0
      %1984 = vmatprep.subr.mxu0 0.0
      %1985 = vmatpush1.msra.mxu0 0.0
      %1986 = vmatprep.subr.mxu0 0.0
      %1987 = vmatpush1.msra.mxu0 0.0
      %1988 = vmatprep.subr.mxu0 0.0
      %1989 = vmatpush1.msra.mxu0 0.0
      %1990 = vmatprep.subr.mxu0 0.0
      %1991 = vmatpush1.msra.mxu0 0.0
      %1992 = vmatprep.subr.mxu0 0.0
      %1993 = vmatpush1.msra.mxu0 0.0
      %1994 = vmatprep.subr.mxu0 0.0
      %1995 = vmatpush1.msra.mxu0 0.0
      %1996 = vmatprep.subr.mxu0 0.0
      %1997 = vmatpush1.msra.mxu0 0.0
      %1998 = vmatprep.subr.mxu0 0.0
      %1999 = vmatpush1.msra.mxu0 0.0
      %2000 = vmatprep.subr.mxu0 0.0
      %2001 = vmatpush1.msra.mxu0 0.0
      %2002 = vmatprep.subr.mxu0 0.0
      %2003 = vmatpush1.msra.mxu0 0.0
      %2004 = vmatprep.subr.mxu0 0.0
      %2005 = vmatpush1.msra.mxu0 0.0
      %2006 = vmatprep.subr.mxu0 0.0
      %2007 = vmatpush1.msra.mxu0 0.0
      %2008 = vmatprep.mubr.f32.mxu0 0.0
      %v2009 = vand.u32 %v1527, 4294901760
      %v2010 = vsub.f32 %v1527, %v2009
      %v2011 = vand.u32 %v2010, 4294901760
      %2012 = vmatmul.mubr.f32.gmra.mrb[0].mxu0 %v2011
      %v2013 = vpop.f32.mrb[0].mxu0
      %v2014 = vadd.f32 %v1918, %v2013
      %v2015 = vpop.f32.mrb[0].mxu0
      %2016 = vmatprep.mubr.f32.mxu0 0.0
      %v2017 = vand.u32 %v1533, 4294901760
      %v2018 = vsub.f32 %v1533, %v2017
      %v2019 = vand.u32 %v2018, 4294901760
      %2020 = vmatmul.mubr.f32.gmra.mrb[0].mxu0 %v2019
      %v2021 = vpop.f32.mrb[0].mxu0
      %v2022 = vadd.f32 %v1925, %v2021
      %v2023 = vpop.f32.mrb[0].mxu0
      %2024 = vdwg.mxu0
      %2025 = vmatprep.subr.mxu0 0.0
      %v2026 = vand.u32 %v1536, 4294901760
      %v2027 = vsub.f32 %v1536, %v2026
      %v2028 = vand.u32 %v2027, 4294901760
      %2029 = vmatpush1.msra.mxu0 %v2028
      %2030 = vmatprep.subr.mxu0 0.0
      %v2031 = vand.u32 %v1537, 4294901760
      %v2032 = vsub.f32 %v1537, %v2031
      %v2033 = vand.u32 %v2032, 4294901760
      %2034 = vmatpush1.msra.mxu0 %v2033
      %2035 = vmatprep.subr.mxu0 0.0
      %v2036 = vand.u32 %v1538, 4294901760
      %v2037 = vsub.f32 %v1538, %v2036
      %v2038 = vand.u32 %v2037, 4294901760
      %2039 = vmatpush1.msra.mxu0 %v2038
      %2040 = vmatprep.subr.mxu0 0.0
      %v2041 = vand.u32 %v1539, 4294901760
      %v2042 = vsub.f32 %v1539, %v2041
      %v2043 = vand.u32 %v2042, 4294901760
      %2044 = vmatpush1.msra.mxu0 %v2043
      %2045 = vmatprep.subr.mxu0 0.0
      %v2046 = vand.u32 %v1540, 4294901760
      %v2047 = vsub.f32 %v1540, %v2046
      %v2048 = vand.u32 %v2047, 4294901760
      %2049 = vmatpush1.msra.mxu0 %v2048
      %2050 = vmatprep.subr.mxu0 0.0
      %v2051 = vand.u32 %v1541, 4294901760
      %v2052 = vsub.f32 %v1541, %v2051
      %v2053 = vand.u32 %v2052, 4294901760
      %2054 = vmatpush1.msra.mxu0 %v2053
      %2055 = vmatprep.subr.mxu0 0.0
      %v2056 = vand.u32 %v1542, 4294901760
      %v2057 = vsub.f32 %v1542, %v2056
      %v2058 = vand.u32 %v2057, 4294901760
      %2059 = vmatpush1.msra.mxu0 %v2058
      %2060 = vmatprep.subr.mxu0 0.0
      %v2061 = vand.u32 %v1543, 4294901760
      %v2062 = vsub.f32 %v1543, %v2061
      %v2063 = vand.u32 %v2062, 4294901760
      %2064 = vmatpush1.msra.mxu0 %v2063
      %2065 = vmatprep.subr.mxu0 0.0
      %v2066 = vand.u32 %v1544, 4294901760
      %v2067 = vsub.f32 %v1544, %v2066
      %v2068 = vand.u32 %v2067, 4294901760
      %2069 = vmatpush1.msra.mxu0 %v2068
      %2070 = vmatprep.subr.mxu0 0.0
      %v2071 = vand.u32 %v1545, 4294901760
      %v2072 = vsub.f32 %v1545, %v2071
      %v2073 = vand.u32 %v2072, 4294901760
      %2074 = vmatpush1.msra.mxu0 %v2073
      %2075 = vmatprep.subr.mxu0 0.0
      %v2076 = vand.u32 %v1546, 4294901760
      %v2077 = vsub.f32 %v1546, %v2076
      %v2078 = vand.u32 %v2077, 4294901760
      %2079 = vmatpush1.msra.mxu0 %v2078
      %2080 = vmatprep.subr.mxu0 0.0
      %v2081 = vand.u32 %v1547, 4294901760
      %v2082 = vsub.f32 %v1547, %v2081
      %v2083 = vand.u32 %v2082, 4294901760
      %2084 = vmatpush1.msra.mxu0 %v2083
      %2085 = vmatprep.subr.mxu0 0.0
      %v2086 = vand.u32 %v1548, 4294901760
      %v2087 = vsub.f32 %v1548, %v2086
      %v2088 = vand.u32 %v2087, 4294901760
      %2089 = vmatpush1.msra.mxu0 %v2088
      %2090 = vmatprep.subr.mxu0 0.0
      %v2091 = vand.u32 %v1549, 4294901760
      %v2092 = vsub.f32 %v1549, %v2091
      %v2093 = vand.u32 %v2092, 4294901760
      %2094 = vmatpush1.msra.mxu0 %v2093
      %2095 = vmatprep.subr.mxu0 0.0
      %v2096 = vand.u32 %v1550, 4294901760
      %v2097 = vsub.f32 %v1550, %v2096
      %v2098 = vand.u32 %v2097, 4294901760
      %2099 = vmatpush1.msra.mxu0 %v2098
      %2100 = vmatprep.subr.mxu0 0.0
      %v2101 = vand.u32 %v1551, 4294901760
      %v2102 = vsub.f32 %v1551, %v2101
      %v2103 = vand.u32 %v2102, 4294901760
      %2104 = vmatpush1.msra.mxu0 %v2103
      %2105 = vmatprep.subr.mxu0 0.0
      %2106 = vmatpush1.msra.mxu0 0.0
      %2107 = vmatprep.subr.mxu0 0.0
      %2108 = vmatpush1.msra.mxu0 0.0
      %2109 = vmatprep.subr.mxu0 0.0
      %2110 = vmatpush1.msra.mxu0 0.0
      %2111 = vmatprep.subr.mxu0 0.0
      %2112 = vmatpush1.msra.mxu0 0.0
      %2113 = vmatprep.subr.mxu0 0.0
      %2114 = vmatpush1.msra.mxu0 0.0
      %2115 = vmatprep.subr.mxu0 0.0
      %2116 = vmatpush1.msra.mxu0 0.0
      %2117 = vmatprep.subr.mxu0 0.0
      %2118 = vmatpush1.msra.mxu0 0.0
      %2119 = vmatprep.subr.mxu0 0.0
      %2120 = vmatpush1.msra.mxu0 0.0
      %2121 = vmatprep.subr.mxu0 0.0
      %2122 = vmatpush1.msra.mxu0 0.0
      %2123 = vmatprep.subr.mxu0 0.0
      %2124 = vmatpush1.msra.mxu0 0.0
      %2125 = vmatprep.subr.mxu0 0.0
      %2126 = vmatpush1.msra.mxu0 0.0
      %2127 = vmatprep.subr.mxu0 0.0
      %2128 = vmatpush1.msra.mxu0 0.0
      %2129 = vmatprep.subr.mxu0 0.0
      %2130 = vmatpush1.msra.mxu0 0.0
      %2131 = vmatprep.subr.mxu0 0.0
      %2132 = vmatpush1.msra.mxu0 0.0
      %2133 = vmatprep.subr.mxu0 0.0
      %2134 = vmatpush1.msra.mxu0 0.0
      %2135 = vmatprep.subr.mxu0 0.0
      %2136 = vmatpush1.msra.mxu0 0.0
      %2137 = vmatprep.mubr.f32.mxu0 0.0
      %v2138 = vand.u32 %v1527, 4294901760
      %2139 = vmatmul.mubr.f32.gmra.mrb[0].mxu0 %v2138
      %v2140 = vpop.f32.mrb[0].mxu0
      %v2141 = vadd.f32 %v2014, %v2140
      %v2142 = vpop.f32.mrb[0].mxu0
      %2143 = vmatprep.mubr.f32.mxu0 0.0
      %v2144 = vand.u32 %v1533, 4294901760
      %2145 = vmatmul.mubr.f32.gmra.mrb[0].mxu0 %v2144
      %v2146 = vpop.f32.mrb[0].mxu0
      %v2147 = vadd.f32 %v2022, %v2146
      %v2148 = vpop.f32.mrb[0].mxu0
      %2149 = vdwg.mxu0
      %2150 = vmatprep.subr.mxu0 0.0
      %v2151 = vand.u32 %v1536, 4294901760
      %2152 = vmatpush1.msra.mxu0 %v2151
      %2153 = vmatprep.subr.mxu0 0.0
      %v2154 = vand.u32 %v1537, 4294901760
      %2155 = vmatpush1.msra.mxu0 %v2154
      %2156 = vmatprep.subr.mxu0 0.0
      %v2157 = vand.u32 %v1538, 4294901760
      %2158 = vmatpush1.msra.mxu0 %v2157
      %2159 = vmatprep.subr.mxu0 0.0
      %v2160 = vand.u32 %v1539, 4294901760
      %2161 = vmatpush1.msra.mxu0 %v2160
      %2162 = vmatprep.subr.mxu0 0.0
      %v2163 = vand.u32 %v1540, 4294901760
      %2164 = vmatpush1.msra.mxu0 %v2163
      %2165 = vmatprep.subr.mxu0 0.0
      %v2166 = vand.u32 %v1541, 4294901760
      %2167 = vmatpush1.msra.mxu0 %v2166
      %2168 = vmatprep.subr.mxu0 0.0
      %v2169 = vand.u32 %v1542, 4294901760
      %2170 = vmatpush1.msra.mxu0 %v2169
      %2171 = vmatprep.subr.mxu0 0.0
      %v2172 = vand.u32 %v1543, 4294901760
      %2173 = vmatpush1.msra.mxu0 %v2172
      %2174 = vmatprep.subr.mxu0 0.0
      %v2175 = vand.u32 %v1544, 4294901760
      %2176 = vmatpush1.msra.mxu0 %v2175
      %2177 = vmatprep.subr.mxu0 0.0
      %v2178 = vand.u32 %v1545, 4294901760
      %2179 = vmatpush1.msra.mxu0 %v2178
      %2180 = vmatprep.subr.mxu0 0.0
      %v2181 = vand.u32 %v1546, 4294901760
      %2182 = vmatpush1.msra.mxu0 %v2181
      %2183 = vmatprep.subr.mxu0 0.0
      %v2184 = vand.u32 %v1547, 4294901760
      %2185 = vmatpush1.msra.mxu0 %v2184
      %2186 = vmatprep.subr.mxu0 0.0
      %v2187 = vand.u32 %v1548, 4294901760
      %2188 = vmatpush1.msra.mxu0 %v2187
      %2189 = vmatprep.subr.mxu0 0.0
      %v2190 = vand.u32 %v1549, 4294901760
      %2191 = vmatpush1.msra.mxu0 %v2190
      %2192 = vmatprep.subr.mxu0 0.0
      %v2193 = vand.u32 %v1550, 4294901760
      %2194 = vmatpush1.msra.mxu0 %v2193
      %2195 = vmatprep.subr.mxu0 0.0
      %v2196 = vand.u32 %v1551, 4294901760
      %2197 = vmatpush1.msra.mxu0 %v2196
      %2198 = vmatprep.subr.mxu0 0.0
      %2199 = vmatpush1.msra.mxu0 0.0
      %2200 = vmatprep.subr.mxu0 0.0
      %2201 = vmatpush1.msra.mxu0 0.0
      %2202 = vmatprep.subr.mxu0 0.0
      %2203 = vmatpush1.msra.mxu0 0.0
      %2204 = vmatprep.subr.mxu0 0.0
      %2205 = vmatpush1.msra.mxu0 0.0
      %2206 = vmatprep.subr.mxu0 0.0
      %2207 = vmatpush1.msra.mxu0 0.0
      %2208 = vmatprep.subr.mxu0 0.0
      %2209 = vmatpush1.msra.mxu0 0.0
      %2210 = vmatprep.subr.mxu0 0.0
      %2211 = vmatpush1.msra.mxu0 0.0
      %2212 = vmatprep.subr.mxu0 0.0
      %2213 = vmatpush1.msra.mxu0 0.0
      %2214 = vmatprep.subr.mxu0 0.0
      %2215 = vmatpush1.msra.mxu0 0.0
      %2216 = vmatprep.subr.mxu0 0.0
      %2217 = vmatpush1.msra.mxu0 0.0
      %2218 = vmatprep.subr.mxu0 0.0
      %2219 = vmatpush1.msra.mxu0 0.0
      %2220 = vmatprep.subr.mxu0 0.0
      %2221 = vmatpush1.msra.mxu0 0.0
      %2222 = vmatprep.subr.mxu0 0.0
      %2223 = vmatpush1.msra.mxu0 0.0
      %2224 = vmatprep.subr.mxu0 0.0
      %2225 = vmatpush1.msra.mxu0 0.0
      %2226 = vmatprep.subr.mxu0 0.0
      %2227 = vmatpush1.msra.mxu0 0.0
      %2228 = vmatprep.subr.mxu0 0.0
      %2229 = vmatpush1.msra.mxu0 0.0
      %2230 = vmatprep.mubr.f32.mxu0 0.0
      %v2231 = vand.u32 %v1527, 4294901760
      %2232 = vmatmul.mubr.f32.gmra.mrb[0].mxu0 %v2231
      %v2233 = vpop.f32.mrb[0].mxu0
      %v2234 = vadd.f32 %v2141, %v2233
      %v2235 = vpop.f32.mrb[0].mxu0
      %2236 = vmatprep.mubr.f32.mxu0 0.0
      %v2237 = vand.u32 %v1533, 4294901760
      %2238 = vmatmul.mubr.f32.gmra.mrb[0].mxu0 %v2237
      %v2239 = vpop.f32.mrb[0].mxu0
      %v2240 = vadd.f32 %v2147, %v2239
      %v2241 = vpop.f32.mrb[0].mxu0
      %2242 = vdwg.mxu0
      %v2243 = vand.u32 %v62, 4294901760
      %2244 = vmatprep.subr.mxu0 %v2243
      %v2245 = vand.u32 %v61, 4294901760
      %2246 = vmatpush1.msra.mxu0 %v2245
      %v2247 = vand.u32 %v64, 4294901760
      %2248 = vmatprep.subr.mxu0 %v2247
      %v2249 = vand.u32 %v63, 4294901760
      %2250 = vmatpush1.msra.mxu0 %v2249
      %v2251 = vand.u32 %v66, 4294901760
      %2252 = vmatprep.subr.mxu0 %v2251
      %v2253 = vand.u32 %v65, 4294901760
      %2254 = vmatpush1.msra.mxu0 %v2253
      %v2255 = vand.u32 %v68, 4294901760
      %2256 = vmatprep.subr.mxu0 %v2255
      %v2257 = vand.u32 %v67, 4294901760
      %2258 = vmatpush1.msra.mxu0 %v2257
      %v2259 = vand.u32 %v70, 4294901760
      %2260 = vmatprep.subr.mxu0 %v2259
      %v2261 = vand.u32 %v69, 4294901760
      %2262 = vmatpush1.msra.mxu0 %v2261
      %v2263 = vand.u32 %v72, 4294901760
      %2264 = vmatprep.subr.mxu0 %v2263
      %v2265 = vand.u32 %v71, 4294901760
      %2266 = vmatpush1.msra.mxu0 %v2265
      %v2267 = vand.u32 %v74, 4294901760
      %2268 = vmatprep.subr.mxu0 %v2267
      %v2269 = vand.u32 %v73, 4294901760
      %2270 = vmatpush1.msra.mxu0 %v2269
      %v2271 = vand.u32 %v76, 4294901760
      %2272 = vmatprep.subr.mxu0 %v2271
      %v2273 = vand.u32 %v75, 4294901760
      %2274 = vmatpush1.msra.mxu0 %v2273
      %v2275 = vand.u32 %v78, 4294901760
      %2276 = vmatprep.subr.mxu0 %v2275
      %v2277 = vand.u32 %v77, 4294901760
      %2278 = vmatpush1.msra.mxu0 %v2277
      %v2279 = vand.u32 %v80, 4294901760
      %2280 = vmatprep.subr.mxu0 %v2279
      %v2281 = vand.u32 %v79, 4294901760
      %2282 = vmatpush1.msra.mxu0 %v2281
      %v2283 = vand.u32 %v82, 4294901760
      %2284 = vmatprep.subr.mxu0 %v2283
      %v2285 = vand.u32 %v81, 4294901760
      %2286 = vmatpush1.msra.mxu0 %v2285
      %v2287 = vand.u32 %v84, 4294901760
      %2288 = vmatprep.subr.mxu0 %v2287
      %v2289 = vand.u32 %v83, 4294901760
      %2290 = vmatpush1.msra.mxu0 %v2289
      %v2291 = vand.u32 %v86, 4294901760
      %2292 = vmatprep.subr.mxu0 %v2291
      %v2293 = vand.u32 %v85, 4294901760
      %2294 = vmatpush1.msra.mxu0 %v2293
      %v2295 = vand.u32 %v88, 4294901760
      %2296 = vmatprep.subr.mxu0 %v2295
      %v2297 = vand.u32 %v87, 4294901760
      %2298 = vmatpush1.msra.mxu0 %v2297
      %v2299 = vand.u32 %v90, 4294901760
      %2300 = vmatprep.subr.mxu0 %v2299
      %v2301 = vand.u32 %v89, 4294901760
      %2302 = vmatpush1.msra.mxu0 %v2301
      %v2303 = vand.u32 %v92, 4294901760
      %2304 = vmatprep.subr.mxu0 %v2303
      %v2305 = vand.u32 %v91, 4294901760
      %2306 = vmatpush1.msra.mxu0 %v2305
      %2307 = vmatprep.subr.mxu0 0.0
      %2308 = vmatpush1.msra.mxu0 0.0
      %2309 = vmatprep.subr.mxu0 0.0
      %2310 = vmatpush1.msra.mxu0 0.0
      %2311 = vmatprep.subr.mxu0 0.0
      %2312 = vmatpush1.msra.mxu0 0.0
      %2313 = vmatprep.subr.mxu0 0.0
      %2314 = vmatpush1.msra.mxu0 0.0
      %2315 = vmatprep.subr.mxu0 0.0
      %2316 = vmatpush1.msra.mxu0 0.0
      %2317 = vmatprep.subr.mxu0 0.0
      %2318 = vmatpush1.msra.mxu0 0.0
      %2319 = vmatprep.subr.mxu0 0.0
      %2320 = vmatpush1.msra.mxu0 0.0
      %2321 = vmatprep.subr.mxu0 0.0
      %2322 = vmatpush1.msra.mxu0 0.0
      %2323 = vmatprep.subr.mxu0 0.0
      %2324 = vmatpush1.msra.mxu0 0.0
      %2325 = vmatprep.subr.mxu0 0.0
      %2326 = vmatpush1.msra.mxu0 0.0
      %2327 = vmatprep.subr.mxu0 0.0
      %2328 = vmatpush1.msra.mxu0 0.0
      %2329 = vmatprep.subr.mxu0 0.0
      %2330 = vmatpush1.msra.mxu0 0.0
      %2331 = vmatprep.subr.mxu0 0.0
      %2332 = vmatpush1.msra.mxu0 0.0
      %2333 = vmatprep.subr.mxu0 0.0
      %2334 = vmatpush1.msra.mxu0 0.0
      %2335 = vmatprep.subr.mxu0 0.0
      %2336 = vmatpush1.msra.mxu0 0.0
      %2337 = vmatprep.subr.mxu0 0.0
      %2338 = vmatpush1.msra.mxu0 0.0
      %2339 = vmatprep.mubr.f32.mxu0 0.0
      %v2340 = vand.u32 %v2234, 4294901760
      %v2341 = vsub.f32 %v2234, %v2340
      %v2342 = vand.u32 %v2341, 4294901760
      %v2343 = vsub.f32 %v2341, %v2342
      %v2344 = vand.u32 %v2343, 4294901760
      %2345 = vmatmul.mubr.f32.gmra.mrb[0].mxu0 %v2344
      %v2346 = vpop.f32.mrb[0].mxu0
      %v2347 = vadd.f32 %v100, %v2346
      %v2348 = vpop.f32.mrb[0].mxu0
      %v2349 = vadd.f32 %v104, %v2348
      %2350 = vmatprep.mubr.f32.mxu0 0.0
      %v2351 = vand.u32 %v2240, 4294901760
      %v2352 = vsub.f32 %v2240, %v2351
      %v2353 = vand.u32 %v2352, 4294901760
      %v2354 = vsub.f32 %v2352, %v2353
      %v2355 = vand.u32 %v2354, 4294901760
      %2356 = vmatmul.mubr.f32.gmra.mrb[0].mxu0 %v2355
      %v2357 = vpop.f32.mrb[0].mxu0
      %v2358 = vadd.f32 %v100, %v2357
      %v2359 = vpop.f32.mrb[0].mxu0
      %v2360 = vadd.f32 %v104, %v2359
      %2361 = vdwg.mxu0
      %v2362 = vand.u32 %v62, 4294901760
      %v2363 = vsub.f32 %v62, %v2362
      %v2364 = vand.u32 %v2363, 4294901760
      %v2365 = vsub.f32 %v2363, %v2364
      %v2366 = vand.u32 %v2365, 4294901760
      %2367 = vmatprep.subr.mxu0 %v2366
      %v2368 = vand.u32 %v61, 4294901760
      %v2369 = vsub.f32 %v61, %v2368
      %v2370 = vand.u32 %v2369, 4294901760
      %v2371 = vsub.f32 %v2369, %v2370
      %v2372 = vand.u32 %v2371, 4294901760
      %2373 = vmatpush1.msra.mxu0 %v2372
      %v2374 = vand.u32 %v64, 4294901760
      %v2375 = vsub.f32 %v64, %v2374
      %v2376 = vand.u32 %v2375, 4294901760
      %v2377 = vsub.f32 %v2375, %v2376
      %v2378 = vand.u32 %v2377, 4294901760
      %2379 = vmatprep.subr.mxu0 %v2378
      %v2380 = vand.u32 %v63, 4294901760
      %v2381 = vsub.f32 %v63, %v2380
      %v2382 = vand.u32 %v2381, 4294901760
      %v2383 = vsub.f32 %v2381, %v2382
      %v2384 = vand.u32 %v2383, 4294901760
      %2385 = vmatpush1.msra.mxu0 %v2384
      %v2386 = vand.u32 %v66, 4294901760
      %v2387 = vsub.f32 %v66, %v2386
      %v2388 = vand.u32 %v2387, 4294901760
      %v2389 = vsub.f32 %v2387, %v2388
      %v2390 = vand.u32 %v2389, 4294901760
      %2391 = vmatprep.subr.mxu0 %v2390
      %v2392 = vand.u32 %v65, 4294901760
      %v2393 = vsub.f32 %v65, %v2392
      %v2394 = vand.u32 %v2393, 4294901760
      %v2395 = vsub.f32 %v2393, %v2394
      %v2396 = vand.u32 %v2395, 4294901760
      %2397 = vmatpush1.msra.mxu0 %v2396
      %v2398 = vand.u32 %v68, 4294901760
      %v2399 = vsub.f32 %v68, %v2398
      %v2400 = vand.u32 %v2399, 4294901760
      %v2401 = vsub.f32 %v2399, %v2400
      %v2402 = vand.u32 %v2401, 4294901760
      %2403 = vmatprep.subr.mxu0 %v2402
      %v2404 = vand.u32 %v67, 4294901760
      %v2405 = vsub.f32 %v67, %v2404
      %v2406 = vand.u32 %v2405, 4294901760
      %v2407 = vsub.f32 %v2405, %v2406
      %v2408 = vand.u32 %v2407, 4294901760
      %2409 = vmatpush1.msra.mxu0 %v2408
      %v2410 = vand.u32 %v70, 4294901760
      %v2411 = vsub.f32 %v70, %v2410
      %v2412 = vand.u32 %v2411, 4294901760
      %v2413 = vsub.f32 %v2411, %v2412
      %v2414 = vand.u32 %v2413, 4294901760
      %2415 = vmatprep.subr.mxu0 %v2414
      %v2416 = vand.u32 %v69, 4294901760
      %v2417 = vsub.f32 %v69, %v2416
      %v2418 = vand.u32 %v2417, 4294901760
      %v2419 = vsub.f32 %v2417, %v2418
      %v2420 = vand.u32 %v2419, 4294901760
      %2421 = vmatpush1.msra.mxu0 %v2420
      %v2422 = vand.u32 %v72, 4294901760
      %v2423 = vsub.f32 %v72, %v2422
      %v2424 = vand.u32 %v2423, 4294901760
      %v2425 = vsub.f32 %v2423, %v2424
      %v2426 = vand.u32 %v2425, 4294901760
      %2427 = vmatprep.subr.mxu0 %v2426
      %v2428 = vand.u32 %v71, 4294901760
      %v2429 = vsub.f32 %v71, %v2428
      %v2430 = vand.u32 %v2429, 4294901760
      %v2431 = vsub.f32 %v2429, %v2430
      %v2432 = vand.u32 %v2431, 4294901760
      %2433 = vmatpush1.msra.mxu0 %v2432
      %v2434 = vand.u32 %v74, 4294901760
      %v2435 = vsub.f32 %v74, %v2434
      %v2436 = vand.u32 %v2435, 4294901760
      %v2437 = vsub.f32 %v2435, %v2436
      %v2438 = vand.u32 %v2437, 4294901760
      %2439 = vmatprep.subr.mxu0 %v2438
      %v2440 = vand.u32 %v73, 4294901760
      %v2441 = vsub.f32 %v73, %v2440
      %v2442 = vand.u32 %v2441, 4294901760
      %v2443 = vsub.f32 %v2441, %v2442
      %v2444 = vand.u32 %v2443, 4294901760
      %2445 = vmatpush1.msra.mxu0 %v2444
      %v2446 = vand.u32 %v76, 4294901760
      %v2447 = vsub.f32 %v76, %v2446
      %v2448 = vand.u32 %v2447, 4294901760
      %v2449 = vsub.f32 %v2447, %v2448
      %v2450 = vand.u32 %v2449, 4294901760
      %2451 = vmatprep.subr.mxu0 %v2450
      %v2452 = vand.u32 %v75, 4294901760
      %v2453 = vsub.f32 %v75, %v2452
      %v2454 = vand.u32 %v2453, 4294901760
      %v2455 = vsub.f32 %v2453, %v2454
      %v2456 = vand.u32 %v2455, 4294901760
      %2457 = vmatpush1.msra.mxu0 %v2456
      %v2458 = vand.u32 %v78, 4294901760
      %v2459 = vsub.f32 %v78, %v2458
      %v2460 = vand.u32 %v2459, 4294901760
      %v2461 = vsub.f32 %v2459, %v2460
      %v2462 = vand.u32 %v2461, 4294901760
      %2463 = vmatprep.subr.mxu0 %v2462
      %v2464 = vand.u32 %v77, 4294901760
      %v2465 = vsub.f32 %v77, %v2464
      %v2466 = vand.u32 %v2465, 4294901760
      %v2467 = vsub.f32 %v2465, %v2466
      %v2468 = vand.u32 %v2467, 4294901760
      %2469 = vmatpush1.msra.mxu0 %v2468
      %v2470 = vand.u32 %v80, 4294901760
      %v2471 = vsub.f32 %v80, %v2470
      %v2472 = vand.u32 %v2471, 4294901760
      %v2473 = vsub.f32 %v2471, %v2472
      %v2474 = vand.u32 %v2473, 4294901760
      %2475 = vmatprep.subr.mxu0 %v2474
      %v2476 = vand.u32 %v79, 4294901760
      %v2477 = vsub.f32 %v79, %v2476
      %v2478 = vand.u32 %v2477, 4294901760
      %v2479 = vsub.f32 %v2477, %v2478
      %v2480 = vand.u32 %v2479, 4294901760
      %2481 = vmatpush1.msra.mxu0 %v2480
      %v2482 = vand.u32 %v82, 4294901760
      %v2483 = vsub.f32 %v82, %v2482
      %v2484 = vand.u32 %v2483, 4294901760
      %v2485 = vsub.f32 %v2483, %v2484
      %v2486 = vand.u32 %v2485, 4294901760
      %2487 = vmatprep.subr.mxu0 %v2486
      %v2488 = vand.u32 %v81, 4294901760
      %v2489 = vsub.f32 %v81, %v2488
      %v2490 = vand.u32 %v2489, 4294901760
      %v2491 = vsub.f32 %v2489, %v2490
      %v2492 = vand.u32 %v2491, 4294901760
      %2493 = vmatpush1.msra.mxu0 %v2492
      %v2494 = vand.u32 %v84, 4294901760
      %v2495 = vsub.f32 %v84, %v2494
      %v2496 = vand.u32 %v2495, 4294901760
      %v2497 = vsub.f32 %v2495, %v2496
      %v2498 = vand.u32 %v2497, 4294901760
      %2499 = vmatprep.subr.mxu0 %v2498
      %v2500 = vand.u32 %v83, 4294901760
      %v2501 = vsub.f32 %v83, %v2500
      %v2502 = vand.u32 %v2501, 4294901760
      %v2503 = vsub.f32 %v2501, %v2502
      %v2504 = vand.u32 %v2503, 4294901760
      %2505 = vmatpush1.msra.mxu0 %v2504
      %v2506 = vand.u32 %v86, 4294901760
      %v2507 = vsub.f32 %v86, %v2506
      %v2508 = vand.u32 %v2507, 4294901760
      %v2509 = vsub.f32 %v2507, %v2508
      %v2510 = vand.u32 %v2509, 4294901760
      %2511 = vmatprep.subr.mxu0 %v2510
      %v2512 = vand.u32 %v85, 4294901760
      %v2513 = vsub.f32 %v85, %v2512
      %v2514 = vand.u32 %v2513, 4294901760
      %v2515 = vsub.f32 %v2513, %v2514
      %v2516 = vand.u32 %v2515, 4294901760
      %2517 = vmatpush1.msra.mxu0 %v2516
      %v2518 = vand.u32 %v88, 4294901760
      %v2519 = vsub.f32 %v88, %v2518
      %v2520 = vand.u32 %v2519, 4294901760
      %v2521 = vsub.f32 %v2519, %v2520
      %v2522 = vand.u32 %v2521, 4294901760
      %2523 = vmatprep.subr.mxu0 %v2522
      %v2524 = vand.u32 %v87, 4294901760
      %v2525 = vsub.f32 %v87, %v2524
      %v2526 = vand.u32 %v2525, 4294901760
      %v2527 = vsub.f32 %v2525, %v2526
      %v2528 = vand.u32 %v2527, 4294901760
      %2529 = vmatpush1.msra.mxu0 %v2528
      %v2530 = vand.u32 %v90, 4294901760
      %v2531 = vsub.f32 %v90, %v2530
      %v2532 = vand.u32 %v2531, 4294901760
      %v2533 = vsub.f32 %v2531, %v2532
      %v2534 = vand.u32 %v2533, 4294901760
      %2535 = vmatprep.subr.mxu0 %v2534
      %v2536 = vand.u32 %v89, 4294901760
      %v2537 = vsub.f32 %v89, %v2536
      %v2538 = vand.u32 %v2537, 4294901760
      %v2539 = vsub.f32 %v2537, %v2538
      %v2540 = vand.u32 %v2539, 4294901760
      %2541 = vmatpush1.msra.mxu0 %v2540
      %v2542 = vand.u32 %v92, 4294901760
      %v2543 = vsub.f32 %v92, %v2542
      %v2544 = vand.u32 %v2543, 4294901760
      %v2545 = vsub.f32 %v2543, %v2544
      %v2546 = vand.u32 %v2545, 4294901760
      %2547 = vmatprep.subr.mxu0 %v2546
      %v2548 = vand.u32 %v91, 4294901760
      %v2549 = vsub.f32 %v91, %v2548
      %v2550 = vand.u32 %v2549, 4294901760
      %v2551 = vsub.f32 %v2549, %v2550
      %v2552 = vand.u32 %v2551, 4294901760
      %2553 = vmatpush1.msra.mxu0 %v2552
      %2554 = vmatprep.subr.mxu0 0.0
      %2555 = vmatpush1.msra.mxu0 0.0
      %2556 = vmatprep.subr.mxu0 0.0
      %2557 = vmatpush1.msra.mxu0 0.0
      %2558 = vmatprep.subr.mxu0 0.0
      %2559 = vmatpush1.msra.mxu0 0.0
      %2560 = vmatprep.subr.mxu0 0.0
      %2561 = vmatpush1.msra.mxu0 0.0
      %2562 = vmatprep.subr.mxu0 0.0
      %2563 = vmatpush1.msra.mxu0 0.0
      %2564 = vmatprep.subr.mxu0 0.0
      %2565 = vmatpush1.msra.mxu0 0.0
      %2566 = vmatprep.subr.mxu0 0.0
      %2567 = vmatpush1.msra.mxu0 0.0
      %2568 = vmatprep.subr.mxu0 0.0
      %2569 = vmatpush1.msra.mxu0 0.0
      %2570 = vmatprep.subr.mxu0 0.0
      %2571 = vmatpush1.msra.mxu0 0.0
      %2572 = vmatprep.subr.mxu0 0.0
      %2573 = vmatpush1.msra.mxu0 0.0
      %2574 = vmatprep.subr.mxu0 0.0
      %2575 = vmatpush1.msra.mxu0 0.0
      %2576 = vmatprep.subr.mxu0 0.0
      %2577 = vmatpush1.msra.mxu0 0.0
      %2578 = vmatprep.subr.mxu0 0.0
      %2579 = vmatpush1.msra.mxu0 0.0
      %2580 = vmatprep.subr.mxu0 0.0
      %2581 = vmatpush1.msra.mxu0 0.0
      %2582 = vmatprep.subr.mxu0 0.0
      %2583 = vmatpush1.msra.mxu0 0.0
      %2584 = vmatprep.subr.mxu0 0.0
      %2585 = vmatpush1.msra.mxu0 0.0
      %2586 = vmatprep.mubr.f32.mxu0 0.0
      %v2587 = vand.u32 %v2234, 4294901760
      %2588 = vmatmul.mubr.f32.gmra.mrb[0].mxu0 %v2587
      %v2589 = vpop.f32.mrb[0].mxu0
      %v2590 = vadd.f32 %v2347, %v2589
      %v2591 = vpop.f32.mrb[0].mxu0
      %v2592 = vadd.f32 %v2349, %v2591
      %2593 = vmatprep.mubr.f32.mxu0 0.0
      %v2594 = vand.u32 %v2240, 4294901760
      %2595 = vmatmul.mubr.f32.gmra.mrb[0].mxu0 %v2594
      %v2596 = vpop.f32.mrb[0].mxu0
      %v2597 = vadd.f32 %v2358, %v2596
      %v2598 = vpop.f32.mrb[0].mxu0
      %v2599 = vadd.f32 %v2360, %v2598
      %2600 = vdwg.mxu0
      %v2601 = vand.u32 %v62, 4294901760
      %v2602 = vsub.f32 %v62, %v2601
      %2603 = vmatprep.subr.mxu0 %v2602
      %v2604 = vand.u32 %v61, 4294901760
      %v2605 = vsub.f32 %v61, %v2604
      %2606 = vmatpush1.msra.mxu0 %v2605
      %v2607 = vand.u32 %v64, 4294901760
      %v2608 = vsub.f32 %v64, %v2607
      %2609 = vmatprep.subr.mxu0 %v2608
      %v2610 = vand.u32 %v63, 4294901760
      %v2611 = vsub.f32 %v63, %v2610
      %2612 = vmatpush1.msra.mxu0 %v2611
      %v2613 = vand.u32 %v66, 4294901760
      %v2614 = vsub.f32 %v66, %v2613
      %2615 = vmatprep.subr.mxu0 %v2614
      %v2616 = vand.u32 %v65, 4294901760
      %v2617 = vsub.f32 %v65, %v2616
      %2618 = vmatpush1.msra.mxu0 %v2617
      %v2619 = vand.u32 %v68, 4294901760
      %v2620 = vsub.f32 %v68, %v2619
      %2621 = vmatprep.subr.mxu0 %v2620
      %v2622 = vand.u32 %v67, 4294901760
      %v2623 = vsub.f32 %v67, %v2622
      %2624 = vmatpush1.msra.mxu0 %v2623
      %v2625 = vand.u32 %v70, 4294901760
      %v2626 = vsub.f32 %v70, %v2625
      %2627 = vmatprep.subr.mxu0 %v2626
      %v2628 = vand.u32 %v69, 4294901760
      %v2629 = vsub.f32 %v69, %v2628
      %2630 = vmatpush1.msra.mxu0 %v2629
      %v2631 = vand.u32 %v72, 4294901760
      %v2632 = vsub.f32 %v72, %v2631
      %2633 = vmatprep.subr.mxu0 %v2632
      %v2634 = vand.u32 %v71, 4294901760
      %v2635 = vsub.f32 %v71, %v2634
      %2636 = vmatpush1.msra.mxu0 %v2635
      %v2637 = vand.u32 %v74, 4294901760
      %v2638 = vsub.f32 %v74, %v2637
      %2639 = vmatprep.subr.mxu0 %v2638
      %v2640 = vand.u32 %v73, 4294901760
      %v2641 = vsub.f32 %v73, %v2640
      %2642 = vmatpush1.msra.mxu0 %v2641
      %v2643 = vand.u32 %v76, 4294901760
      %v2644 = vsub.f32 %v76, %v2643
      %2645 = vmatprep.subr.mxu0 %v2644
      %v2646 = vand.u32 %v75, 4294901760
      %v2647 = vsub.f32 %v75, %v2646
      %2648 = vmatpush1.msra.mxu0 %v2647
      %v2649 = vand.u32 %v78, 4294901760
      %v2650 = vsub.f32 %v78, %v2649
      %2651 = vmatprep.subr.mxu0 %v2650
      %v2652 = vand.u32 %v77, 4294901760
      %v2653 = vsub.f32 %v77, %v2652
      %2654 = vmatpush1.msra.mxu0 %v2653
      %v2655 = vand.u32 %v80, 4294901760
      %v2656 = vsub.f32 %v80, %v2655
      %2657 = vmatprep.subr.mxu0 %v2656
      %v2658 = vand.u32 %v79, 4294901760
      %v2659 = vsub.f32 %v79, %v2658
      %2660 = vmatpush1.msra.mxu0 %v2659
      %v2661 = vand.u32 %v82, 4294901760
      %v2662 = vsub.f32 %v82, %v2661
      %2663 = vmatprep.subr.mxu0 %v2662
      %v2664 = vand.u32 %v81, 4294901760
      %v2665 = vsub.f32 %v81, %v2664
      %2666 = vmatpush1.msra.mxu0 %v2665
      %v2667 = vand.u32 %v84, 4294901760
      %v2668 = vsub.f32 %v84, %v2667
      %2669 = vmatprep.subr.mxu0 %v2668
      %v2670 = vand.u32 %v83, 4294901760
      %v2671 = vsub.f32 %v83, %v2670
      %2672 = vmatpush1.msra.mxu0 %v2671
      %v2673 = vand.u32 %v86, 4294901760
      %v2674 = vsub.f32 %v86, %v2673
      %2675 = vmatprep.subr.mxu0 %v2674
      %v2676 = vand.u32 %v85, 4294901760
      %v2677 = vsub.f32 %v85, %v2676
      %2678 = vmatpush1.msra.mxu0 %v2677
      %v2679 = vand.u32 %v88, 4294901760
      %v2680 = vsub.f32 %v88, %v2679
      %2681 = vmatprep.subr.mxu0 %v2680
      %v2682 = vand.u32 %v87, 4294901760
      %v2683 = vsub.f32 %v87, %v2682
      %2684 = vmatpush1.msra.mxu0 %v2683
      %v2685 = vand.u32 %v90, 4294901760
      %v2686 = vsub.f32 %v90, %v2685
      %2687 = vmatprep.subr.mxu0 %v2686
      %v2688 = vand.u32 %v89, 4294901760
      %v2689 = vsub.f32 %v89, %v2688
      %2690 = vmatpush1.msra.mxu0 %v2689
      %v2691 = vand.u32 %v92, 4294901760
      %v2692 = vsub.f32 %v92, %v2691
      %2693 = vmatprep.subr.mxu0 %v2692
      %v2694 = vand.u32 %v91, 4294901760
      %v2695 = vsub.f32 %v91, %v2694
      %2696 = vmatpush1.msra.mxu0 %v2695
      %2697 = vmatprep.subr.mxu0 0.0
      %2698 = vmatpush1.msra.mxu0 0.0
      %2699 = vmatprep.subr.mxu0 0.0
      %2700 = vmatpush1.msra.mxu0 0.0
      %2701 = vmatprep.subr.mxu0 0.0
      %2702 = vmatpush1.msra.mxu0 0.0
      %2703 = vmatprep.subr.mxu0 0.0
      %2704 = vmatpush1.msra.mxu0 0.0
      %2705 = vmatprep.subr.mxu0 0.0
      %2706 = vmatpush1.msra.mxu0 0.0
      %2707 = vmatprep.subr.mxu0 0.0
      %2708 = vmatpush1.msra.mxu0 0.0
      %2709 = vmatprep.subr.mxu0 0.0
      %2710 = vmatpush1.msra.mxu0 0.0
      %2711 = vmatprep.subr.mxu0 0.0
      %2712 = vmatpush1.msra.mxu0 0.0
      %2713 = vmatprep.subr.mxu0 0.0
      %2714 = vmatpush1.msra.mxu0 0.0
      %2715 = vmatprep.subr.mxu0 0.0
      %2716 = vmatpush1.msra.mxu0 0.0
      %2717 = vmatprep.subr.mxu0 0.0
      %2718 = vmatpush1.msra.mxu0 0.0
      %2719 = vmatprep.subr.mxu0 0.0
      %2720 = vmatpush1.msra.mxu0 0.0
      %2721 = vmatprep.subr.mxu0 0.0
      %2722 = vmatpush1.msra.mxu0 0.0
      %2723 = vmatprep.subr.mxu0 0.0
      %2724 = vmatpush1.msra.mxu0 0.0
      %2725 = vmatprep.subr.mxu0 0.0
      %2726 = vmatpush1.msra.mxu0 0.0
      %2727 = vmatprep.subr.mxu0 0.0
      %2728 = vmatpush1.msra.mxu0 0.0
      %2729 = vmatprep.mubr.f32.mxu0 0.0
      %v2730 = vand.u32 %v2234, 4294901760
      %v2731 = vsub.f32 %v2234, %v2730
      %2732 = vmatmul.mubr.f32.gmra.mrb[0].mxu0 %v2731
      %v2733 = vpop.f32.mrb[0].mxu0
      %v2734 = vadd.f32 %v2590, %v2733
      %v2735 = vpop.f32.mrb[0].mxu0
      %v2736 = vadd.f32 %v2592, %v2735
      %2737 = vmatprep.mubr.f32.mxu0 0.0
      %v2738 = vand.u32 %v2240, 4294901760
      %v2739 = vsub.f32 %v2240, %v2738
      %2740 = vmatmul.mubr.f32.gmra.mrb[0].mxu0 %v2739
      %v2741 = vpop.f32.mrb[0].mxu0
      %v2742 = vadd.f32 %v2597, %v2741
      %v2743 = vpop.f32.mrb[0].mxu0
      %v2744 = vadd.f32 %v2599, %v2743
      %2745 = vdwg.mxu0
      %v2746 = vand.u32 %v62, 4294901760
      %2747 = vmatprep.subr.mxu0 %v2746
      %v2748 = vand.u32 %v61, 4294901760
      %2749 = vmatpush1.msra.mxu0 %v2748
      %v2750 = vand.u32 %v64, 4294901760
      %2751 = vmatprep.subr.mxu0 %v2750
      %v2752 = vand.u32 %v63, 4294901760
      %2753 = vmatpush1.msra.mxu0 %v2752
      %v2754 = vand.u32 %v66, 4294901760
      %2755 = vmatprep.subr.mxu0 %v2754
      %v2756 = vand.u32 %v65, 4294901760
      %2757 = vmatpush1.msra.mxu0 %v2756
      %v2758 = vand.u32 %v68, 4294901760
      %2759 = vmatprep.subr.mxu0 %v2758
      %v2760 = vand.u32 %v67, 4294901760
      %2761 = vmatpush1.msra.mxu0 %v2760
      %v2762 = vand.u32 %v70, 4294901760
      %2763 = vmatprep.subr.mxu0 %v2762
      %v2764 = vand.u32 %v69, 4294901760
      %2765 = vmatpush1.msra.mxu0 %v2764
      %v2766 = vand.u32 %v72, 4294901760
      %2767 = vmatprep.subr.mxu0 %v2766
      %v2768 = vand.u32 %v71, 4294901760
      %2769 = vmatpush1.msra.mxu0 %v2768
      %v2770 = vand.u32 %v74, 4294901760
      %2771 = vmatprep.subr.mxu0 %v2770
      %v2772 = vand.u32 %v73, 4294901760
      %2773 = vmatpush1.msra.mxu0 %v2772
      %v2774 = vand.u32 %v76, 4294901760
      %2775 = vmatprep.subr.mxu0 %v2774
      %v2776 = vand.u32 %v75, 4294901760
      %2777 = vmatpush1.msra.mxu0 %v2776
      %v2778 = vand.u32 %v78, 4294901760
      %2779 = vmatprep.subr.mxu0 %v2778
      %v2780 = vand.u32 %v77, 4294901760
      %2781 = vmatpush1.msra.mxu0 %v2780
      %v2782 = vand.u32 %v80, 4294901760
      %2783 = vmatprep.subr.mxu0 %v2782
      %v2784 = vand.u32 %v79, 4294901760
      %2785 = vmatpush1.msra.mxu0 %v2784
      %v2786 = vand.u32 %v82, 4294901760
      %2787 = vmatprep.subr.mxu0 %v2786
      %v2788 = vand.u32 %v81, 4294901760
      %2789 = vmatpush1.msra.mxu0 %v2788
      %v2790 = vand.u32 %v84, 4294901760
      %2791 = vmatprep.subr.mxu0 %v2790
      %v2792 = vand.u32 %v83, 4294901760
      %2793 = vmatpush1.msra.mxu0 %v2792
      %v2794 = vand.u32 %v86, 4294901760
      %2795 = vmatprep.subr.mxu0 %v2794
      %v2796 = vand.u32 %v85, 4294901760
      %2797 = vmatpush1.msra.mxu0 %v2796
      %v2798 = vand.u32 %v88, 4294901760
      %2799 = vmatprep.subr.mxu0 %v2798
      %v2800 = vand.u32 %v87, 4294901760
      %2801 = vmatpush1.msra.mxu0 %v2800
      %v2802 = vand.u32 %v90, 4294901760
      %2803 = vmatprep.subr.mxu0 %v2802
      %v2804 = vand.u32 %v89, 4294901760
      %2805 = vmatpush1.msra.mxu0 %v2804
      %v2806 = vand.u32 %v92, 4294901760
      %2807 = vmatprep.subr.mxu0 %v2806
      %v2808 = vand.u32 %v91, 4294901760
      %2809 = vmatpush1.msra.mxu0 %v2808
      %2810 = vmatprep.subr.mxu0 0.0
      %2811 = vmatpush1.msra.mxu0 0.0
      %2812 = vmatprep.subr.mxu0 0.0
      %2813 = vmatpush1.msra.mxu0 0.0
      %2814 = vmatprep.subr.mxu0 0.0
      %2815 = vmatpush1.msra.mxu0 0.0
      %2816 = vmatprep.subr.mxu0 0.0
      %2817 = vmatpush1.msra.mxu0 0.0
      %2818 = vmatprep.subr.mxu0 0.0
      %2819 = vmatpush1.msra.mxu0 0.0
      %2820 = vmatprep.subr.mxu0 0.0
      %2821 = vmatpush1.msra.mxu0 0.0
      %2822 = vmatprep.subr.mxu0 0.0
      %2823 = vmatpush1.msra.mxu0 0.0
      %2824 = vmatprep.subr.mxu0 0.0
      %2825 = vmatpush1.msra.mxu0 0.0
      %2826 = vmatprep.subr.mxu0 0.0
      %2827 = vmatpush1.msra.mxu0 0.0
      %2828 = vmatprep.subr.mxu0 0.0
      %2829 = vmatpush1.msra.mxu0 0.0
      %2830 = vmatprep.subr.mxu0 0.0
      %2831 = vmatpush1.msra.mxu0 0.0
      %2832 = vmatprep.subr.mxu0 0.0
      %2833 = vmatpush1.msra.mxu0 0.0
      %2834 = vmatprep.subr.mxu0 0.0
      %2835 = vmatpush1.msra.mxu0 0.0
      %2836 = vmatprep.subr.mxu0 0.0
      %2837 = vmatpush1.msra.mxu0 0.0
      %2838 = vmatprep.subr.mxu0 0.0
      %2839 = vmatpush1.msra.mxu0 0.0
      %2840 = vmatprep.subr.mxu0 0.0
      %2841 = vmatpush1.msra.mxu0 0.0
      %2842 = vmatprep.mubr.f32.mxu0 0.0
      %v2843 = vand.u32 %v2234, 4294901760
      %v2844 = vsub.f32 %v2234, %v2843
      %v2845 = vand.u32 %v2844, 4294901760
      %2846 = vmatmul.mubr.f32.gmra.mrb[0].mxu0 %v2845
      %v2847 = vpop.f32.mrb[0].mxu0
      %v2848 = vadd.f32 %v2734, %v2847
      %v2849 = vpop.f32.mrb[0].mxu0
      %v2850 = vadd.f32 %v2736, %v2849
      %2851 = vmatprep.mubr.f32.mxu0 0.0
      %v2852 = vand.u32 %v2240, 4294901760
      %v2853 = vsub.f32 %v2240, %v2852
      %v2854 = vand.u32 %v2853, 4294901760
      %2855 = vmatmul.mubr.f32.gmra.mrb[0].mxu0 %v2854
      %v2856 = vpop.f32.mrb[0].mxu0
      %v2857 = vadd.f32 %v2742, %v2856
      %v2858 = vpop.f32.mrb[0].mxu0
      %v2859 = vadd.f32 %v2744, %v2858
      %2860 = vdwg.mxu0
      %v2861 = vand.u32 %v62, 4294901760
      %v2862 = vsub.f32 %v62, %v2861
      %v2863 = vand.u32 %v2862, 4294901760
      %2864 = vmatprep.subr.mxu0 %v2863
      %v2865 = vand.u32 %v61, 4294901760
      %v2866 = vsub.f32 %v61, %v2865
      %v2867 = vand.u32 %v2866, 4294901760
      %2868 = vmatpush1.msra.mxu0 %v2867
      %v2869 = vand.u32 %v64, 4294901760
      %v2870 = vsub.f32 %v64, %v2869
      %v2871 = vand.u32 %v2870, 4294901760
      %2872 = vmatprep.subr.mxu0 %v2871
      %v2873 = vand.u32 %v63, 4294901760
      %v2874 = vsub.f32 %v63, %v2873
      %v2875 = vand.u32 %v2874, 4294901760
      %2876 = vmatpush1.msra.mxu0 %v2875
      %v2877 = vand.u32 %v66, 4294901760
      %v2878 = vsub.f32 %v66, %v2877
      %v2879 = vand.u32 %v2878, 4294901760
      %2880 = vmatprep.subr.mxu0 %v2879
      %v2881 = vand.u32 %v65, 4294901760
      %v2882 = vsub.f32 %v65, %v2881
      %v2883 = vand.u32 %v2882, 4294901760
      %2884 = vmatpush1.msra.mxu0 %v2883
      %v2885 = vand.u32 %v68, 4294901760
      %v2886 = vsub.f32 %v68, %v2885
      %v2887 = vand.u32 %v2886, 4294901760
      %2888 = vmatprep.subr.mxu0 %v2887
      %v2889 = vand.u32 %v67, 4294901760
      %v2890 = vsub.f32 %v67, %v2889
      %v2891 = vand.u32 %v2890, 4294901760
      %2892 = vmatpush1.msra.mxu0 %v2891
      %v2893 = vand.u32 %v70, 4294901760
      %v2894 = vsub.f32 %v70, %v2893
      %v2895 = vand.u32 %v2894, 4294901760
      %2896 = vmatprep.subr.mxu0 %v2895
      %v2897 = vand.u32 %v69, 4294901760
      %v2898 = vsub.f32 %v69, %v2897
      %v2899 = vand.u32 %v2898, 4294901760
      %2900 = vmatpush1.msra.mxu0 %v2899
      %v2901 = vand.u32 %v72, 4294901760
      %v2902 = vsub.f32 %v72, %v2901
      %v2903 = vand.u32 %v2902, 4294901760
      %2904 = vmatprep.subr.mxu0 %v2903
      %v2905 = vand.u32 %v71, 4294901760
      %v2906 = vsub.f32 %v71, %v2905
      %v2907 = vand.u32 %v2906, 4294901760
      %2908 = vmatpush1.msra.mxu0 %v2907
      %v2909 = vand.u32 %v74, 4294901760
      %v2910 = vsub.f32 %v74, %v2909
      %v2911 = vand.u32 %v2910, 4294901760
      %2912 = vmatprep.subr.mxu0 %v2911
      %v2913 = vand.u32 %v73, 4294901760
      %v2914 = vsub.f32 %v73, %v2913
      %v2915 = vand.u32 %v2914, 4294901760
      %2916 = vmatpush1.msra.mxu0 %v2915
      %v2917 = vand.u32 %v76, 4294901760
      %v2918 = vsub.f32 %v76, %v2917
      %v2919 = vand.u32 %v2918, 4294901760
      %2920 = vmatprep.subr.mxu0 %v2919
      %v2921 = vand.u32 %v75, 4294901760
      %v2922 = vsub.f32 %v75, %v2921
      %v2923 = vand.u32 %v2922, 4294901760
      %2924 = vmatpush1.msra.mxu0 %v2923
      %v2925 = vand.u32 %v78, 4294901760
      %v2926 = vsub.f32 %v78, %v2925
      %v2927 = vand.u32 %v2926, 4294901760
      %2928 = vmatprep.subr.mxu0 %v2927
      %v2929 = vand.u32 %v77, 4294901760
      %v2930 = vsub.f32 %v77, %v2929
      %v2931 = vand.u32 %v2930, 4294901760
      %2932 = vmatpush1.msra.mxu0 %v2931
      %v2933 = vand.u32 %v80, 4294901760
      %v2934 = vsub.f32 %v80, %v2933
      %v2935 = vand.u32 %v2934, 4294901760
      %2936 = vmatprep.subr.mxu0 %v2935
      %v2937 = vand.u32 %v79, 4294901760
      %v2938 = vsub.f32 %v79, %v2937
      %v2939 = vand.u32 %v2938, 4294901760
      %2940 = vmatpush1.msra.mxu0 %v2939
      %v2941 = vand.u32 %v82, 4294901760
      %v2942 = vsub.f32 %v82, %v2941
      %v2943 = vand.u32 %v2942, 4294901760
      %2944 = vmatprep.subr.mxu0 %v2943
      %v2945 = vand.u32 %v81, 4294901760
      %v2946 = vsub.f32 %v81, %v2945
      %v2947 = vand.u32 %v2946, 4294901760
      %2948 = vmatpush1.msra.mxu0 %v2947
      %v2949 = vand.u32 %v84, 4294901760
      %v2950 = vsub.f32 %v84, %v2949
      %v2951 = vand.u32 %v2950, 4294901760
      %2952 = vmatprep.subr.mxu0 %v2951
      %v2953 = vand.u32 %v83, 4294901760
      %v2954 = vsub.f32 %v83, %v2953
      %v2955 = vand.u32 %v2954, 4294901760
      %2956 = vmatpush1.msra.mxu0 %v2955
      %v2957 = vand.u32 %v86, 4294901760
      %v2958 = vsub.f32 %v86, %v2957
      %v2959 = vand.u32 %v2958, 4294901760
      %2960 = vmatprep.subr.mxu0 %v2959
      %v2961 = vand.u32 %v85, 4294901760
      %v2962 = vsub.f32 %v85, %v2961
      %v2963 = vand.u32 %v2962, 4294901760
      %2964 = vmatpush1.msra.mxu0 %v2963
      %v2965 = vand.u32 %v88, 4294901760
      %v2966 = vsub.f32 %v88, %v2965
      %v2967 = vand.u32 %v2966, 4294901760
      %2968 = vmatprep.subr.mxu0 %v2967
      %v2969 = vand.u32 %v87, 4294901760
      %v2970 = vsub.f32 %v87, %v2969
      %v2971 = vand.u32 %v2970, 4294901760
      %2972 = vmatpush1.msra.mxu0 %v2971
      %v2973 = vand.u32 %v90, 4294901760
      %v2974 = vsub.f32 %v90, %v2973
      %v2975 = vand.u32 %v2974, 4294901760
      %2976 = vmatprep.subr.mxu0 %v2975
      %v2977 = vand.u32 %v89, 4294901760
      %v2978 = vsub.f32 %v89, %v2977
      %v2979 = vand.u32 %v2978, 4294901760
      %2980 = vmatpush1.msra.mxu0 %v2979
      %v2981 = vand.u32 %v92, 4294901760
      %v2982 = vsub.f32 %v92, %v2981
      %v2983 = vand.u32 %v2982, 4294901760
      %2984 = vmatprep.subr.mxu0 %v2983
      %v2985 = vand.u32 %v91, 4294901760
      %v2986 = vsub.f32 %v91, %v2985
      %v2987 = vand.u32 %v2986, 4294901760
      %2988 = vmatpush1.msra.mxu0 %v2987
      %2989 = vmatprep.subr.mxu0 0.0
      %2990 = vmatpush1.msra.mxu0 0.0
      %2991 = vmatprep.subr.mxu0 0.0
      %2992 = vmatpush1.msra.mxu0 0.0
      %2993 = vmatprep.subr.mxu0 0.0
      %2994 = vmatpush1.msra.mxu0 0.0
      %2995 = vmatprep.subr.mxu0 0.0
      %2996 = vmatpush1.msra.mxu0 0.0
      %2997 = vmatprep.subr.mxu0 0.0
      %2998 = vmatpush1.msra.mxu0 0.0
      %2999 = vmatprep.subr.mxu0 0.0
      %3000 = vmatpush1.msra.mxu0 0.0
      %3001 = vmatprep.subr.mxu0 0.0
      %3002 = vmatpush1.msra.mxu0 0.0
      %3003 = vmatprep.subr.mxu0 0.0
      %3004 = vmatpush1.msra.mxu0 0.0
      %3005 = vmatprep.subr.mxu0 0.0
      %3006 = vmatpush1.msra.mxu0 0.0
      %3007 = vmatprep.subr.mxu0 0.0
      %3008 = vmatpush1.msra.mxu0 0.0
      %3009 = vmatprep.subr.mxu0 0.0
      %3010 = vmatpush1.msra.mxu0 0.0
      %3011 = vmatprep.subr.mxu0 0.0
      %3012 = vmatpush1.msra.mxu0 0.0
      %3013 = vmatprep.subr.mxu0 0.0
      %3014 = vmatpush1.msra.mxu0 0.0
      %3015 = vmatprep.subr.mxu0 0.0
      %3016 = vmatpush1.msra.mxu0 0.0
      %3017 = vmatprep.subr.mxu0 0.0
      %3018 = vmatpush1.msra.mxu0 0.0
      %3019 = vmatprep.subr.mxu0 0.0
      %3020 = vmatpush1.msra.mxu0 0.0
      %3021 = vmatprep.mubr.f32.mxu0 0.0
      %v3022 = vand.u32 %v2234, 4294901760
      %3023 = vmatmul.mubr.f32.gmra.mrb[0].mxu0 %v3022
      %v3024 = vpop.f32.mrb[0].mxu0
      %v3025 = vadd.f32 %v2848, %v3024
      %v3026 = vpop.f32.mrb[0].mxu0
      %v3027 = vadd.f32 %v2850, %v3026
      %3028 = vmatprep.mubr.f32.mxu0 0.0
      %v3029 = vand.u32 %v2240, 4294901760
      %3030 = vmatmul.mubr.f32.gmra.mrb[0].mxu0 %v3029
      %v3031 = vpop.f32.mrb[0].mxu0
      %v3032 = vadd.f32 %v2857, %v3031
      %v3033 = vpop.f32.mrb[0].mxu0
      %v3034 = vadd.f32 %v2859, %v3033
      %3035 = vdwg.mxu0
      %v3036 = vand.u32 %v62, 4294901760
      %3037 = vmatprep.subr.mxu0 %v3036
      %v3038 = vand.u32 %v61, 4294901760
      %3039 = vmatpush1.msra.mxu0 %v3038
      %v3040 = vand.u32 %v64, 4294901760
      %3041 = vmatprep.subr.mxu0 %v3040
      %v3042 = vand.u32 %v63, 4294901760
      %3043 = vmatpush1.msra.mxu0 %v3042
      %v3044 = vand.u32 %v66, 4294901760
      %3045 = vmatprep.subr.mxu0 %v3044
      %v3046 = vand.u32 %v65, 4294901760
      %3047 = vmatpush1.msra.mxu0 %v3046
      %v3048 = vand.u32 %v68, 4294901760
      %3049 = vmatprep.subr.mxu0 %v3048
      %v3050 = vand.u32 %v67, 4294901760
      %3051 = vmatpush1.msra.mxu0 %v3050
      %v3052 = vand.u32 %v70, 4294901760
      %3053 = vmatprep.subr.mxu0 %v3052
      %v3054 = vand.u32 %v69, 4294901760
      %3055 = vmatpush1.msra.mxu0 %v3054
      %v3056 = vand.u32 %v72, 4294901760
      %3057 = vmatprep.subr.mxu0 %v3056
      %v3058 = vand.u32 %v71, 4294901760
      %3059 = vmatpush1.msra.mxu0 %v3058
      %v3060 = vand.u32 %v74, 4294901760
      %3061 = vmatprep.subr.mxu0 %v3060
      %v3062 = vand.u32 %v73, 4294901760
      %3063 = vmatpush1.msra.mxu0 %v3062
      %v3064 = vand.u32 %v76, 4294901760
      %3065 = vmatprep.subr.mxu0 %v3064
      %v3066 = vand.u32 %v75, 4294901760
      %3067 = vmatpush1.msra.mxu0 %v3066
      %v3068 = vand.u32 %v78, 4294901760
      %3069 = vmatprep.subr.mxu0 %v3068
      %v3070 = vand.u32 %v77, 4294901760
      %3071 = vmatpush1.msra.mxu0 %v3070
      %v3072 = vand.u32 %v80, 4294901760
      %3073 = vmatprep.subr.mxu0 %v3072
      %v3074 = vand.u32 %v79, 4294901760
      %3075 = vmatpush1.msra.mxu0 %v3074
      %v3076 = vand.u32 %v82, 4294901760
      %3077 = vmatprep.subr.mxu0 %v3076
      %v3078 = vand.u32 %v81, 4294901760
      %3079 = vmatpush1.msra.mxu0 %v3078
      %v3080 = vand.u32 %v84, 4294901760
      %3081 = vmatprep.subr.mxu0 %v3080
      %v3082 = vand.u32 %v83, 4294901760
      %3083 = vmatpush1.msra.mxu0 %v3082
      %v3084 = vand.u32 %v86, 4294901760
      %3085 = vmatprep.subr.mxu0 %v3084
      %v3086 = vand.u32 %v85, 4294901760
      %3087 = vmatpush1.msra.mxu0 %v3086
      %v3088 = vand.u32 %v88, 4294901760
      %3089 = vmatprep.subr.mxu0 %v3088
      %v3090 = vand.u32 %v87, 4294901760
      %3091 = vmatpush1.msra.mxu0 %v3090
      %v3092 = vand.u32 %v90, 4294901760
      %3093 = vmatprep.subr.mxu0 %v3092
      %v3094 = vand.u32 %v89, 4294901760
      %3095 = vmatpush1.msra.mxu0 %v3094
      %v3096 = vand.u32 %v92, 4294901760
      %3097 = vmatprep.subr.mxu0 %v3096
      %v3098 = vand.u32 %v91, 4294901760
      %3099 = vmatpush1.msra.mxu0 %v3098
      %3100 = vmatprep.subr.mxu0 0.0
      %3101 = vmatpush1.msra.mxu0 0.0
      %3102 = vmatprep.subr.mxu0 0.0
      %3103 = vmatpush1.msra.mxu0 0.0
      %3104 = vmatprep.subr.mxu0 0.0
      %3105 = vmatpush1.msra.mxu0 0.0
      %3106 = vmatprep.subr.mxu0 0.0
      %3107 = vmatpush1.msra.mxu0 0.0
      %3108 = vmatprep.subr.mxu0 0.0
      %3109 = vmatpush1.msra.mxu0 0.0
      %3110 = vmatprep.subr.mxu0 0.0
      %3111 = vmatpush1.msra.mxu0 0.0
      %3112 = vmatprep.subr.mxu0 0.0
      %3113 = vmatpush1.msra.mxu0 0.0
      %3114 = vmatprep.subr.mxu0 0.0
      %3115 = vmatpush1.msra.mxu0 0.0
      %3116 = vmatprep.subr.mxu0 0.0
      %3117 = vmatpush1.msra.mxu0 0.0
      %3118 = vmatprep.subr.mxu0 0.0
      %3119 = vmatpush1.msra.mxu0 0.0
      %3120 = vmatprep.subr.mxu0 0.0
      %3121 = vmatpush1.msra.mxu0 0.0
      %3122 = vmatprep.subr.mxu0 0.0
      %3123 = vmatpush1.msra.mxu0 0.0
      %3124 = vmatprep.subr.mxu0 0.0
      %3125 = vmatpush1.msra.mxu0 0.0
      %3126 = vmatprep.subr.mxu0 0.0
      %3127 = vmatpush1.msra.mxu0 0.0
      %3128 = vmatprep.subr.mxu0 0.0
      %3129 = vmatpush1.msra.mxu0 0.0
      %3130 = vmatprep.subr.mxu0 0.0
      %3131 = vmatpush1.msra.mxu0 0.0
      %3132 = vmatprep.mubr.f32.mxu0 0.0
      %v3133 = vand.u32 %v2234, 4294901760
      %3134 = vmatmul.mubr.f32.gmra.mrb[0].mxu0 %v3133
      %v3135 = vpop.f32.mrb[0].mxu0
      %v3136 = vadd.f32 %v3025, %v3135
      %v3137 = vpop.f32.mrb[0].mxu0
      %v3138 = vadd.f32 %v3027, %v3137
      %3139 = vmatprep.mubr.f32.mxu0 0.0
      %v3140 = vand.u32 %v2240, 4294901760
      %3141 = vmatmul.mubr.f32.gmra.mrb[0].mxu0 %v3140
      %v3142 = vpop.f32.mrb[0].mxu0
      %v3143 = vadd.f32 %v3032, %v3142
      %v3144 = vpop.f32.mrb[0].mxu0
      %v3145 = vadd.f32 %v3034, %v3144
      %3146 = vdwg.mxu0
      %3147 = vst [vmem:[#allocation2] sm:$0xff] %v3136
      %3148 = vst [vmem:[#allocation2 + $0x8] sm:$0xff] %v3143
      %3149 = vst [vmem:[#allocation2 + $0x10] sm:$0xff] %v3138
      %3150 = vst [vmem:[#allocation2 + $0x18] sm:$0xff] %v3145
    $region45: #{tpu_custom_call.1} parent=1 // pred_fallthru
      _
    %v3151 = vld [vmem:[%s0] sm:$0xff]
    %v3152 = vld [vmem:[%s0 + $0x8] sm:$0xff]
    %v3153 = vld [vmem:[%s0 + $0x10] sm:$0xff]
    %v3154 = vld [vmem:[%s0 + $0x18] sm:$0xff]
    %v3155 = vld [vmem:[%s0 + $0x20] sm:$0xff]
    %v3156 = vld [vmem:[%s0 + $0x28] sm:$0xff]
    %v3157 = vlaneseq
    %v3158 = vand.u32 %v3157, 127
    %3159 = vset.pattern.permute.xlu0 0
    %3160 = vperm.xlu0 %3159, %v3151
    %v3161 = vpop.permute.xlu0 %3160
    %3162 = vset.pattern.permute.xlu0 0
    %3163 = vperm.xlu0 %3162, %v3152
    %v3164 = vpop.permute.xlu0 %3163
    %3165 = vset.pattern.permute.xlu0 0
    %3166 = vperm.xlu0 %3165, %v3153
    %v3167 = vpop.permute.xlu0 %3166
    %3168 = vset.pattern.permute.xlu0 0
    %3169 = vperm.xlu0 %3168, %v3154
    %v3170 = vpop.permute.xlu0 %3169
    %3171 = vset.pattern.permute.xlu0 0
    %3172 = vperm.xlu0 %3171, %v3155
    %v3173 = vpop.permute.xlu0 %3172
    %3174 = vset.pattern.permute.xlu0 0
    %3175 = vperm.xlu0 %3174, %v3156
    %v3176 = vpop.permute.xlu0 %3175
    %vm3177 = vcmp.eq.s32.totalorder %v3158, %v3161
    %vm3178 = vcmp.eq.s32.totalorder %v3158, %v3164
    %vm3179 = vcmp.eq.s32.totalorder %v3158, %v3167
    %vm3180 = vcmp.eq.s32.totalorder %v3158, %v3170
    %vm3181 = vcmp.eq.s32.totalorder %v3158, %v3173
    %vm3182 = vcmp.eq.s32.totalorder %v3158, %v3176
    %3183 = vset.pattern.permute.xlu0 1
    %3184 = vperm.xlu0 %3183, %v3151
    %v3185 = vpop.permute.xlu0 %3184
    %3186 = vset.pattern.permute.xlu0 1
    %3187 = vperm.xlu0 %3186, %v3152
    %v3188 = vpop.permute.xlu0 %3187
    %3189 = vset.pattern.permute.xlu0 1
    %3190 = vperm.xlu0 %3189, %v3153
    %v3191 = vpop.permute.xlu0 %3190
    %3192 = vset.pattern.permute.xlu0 1
    %3193 = vperm.xlu0 %3192, %v3154
    %v3194 = vpop.permute.xlu0 %3193
    %3195 = vset.pattern.permute.xlu0 1
    %3196 = vperm.xlu0 %3195, %v3155
    %v3197 = vpop.permute.xlu0 %3196
    %3198 = vset.pattern.permute.xlu0 1
    %3199 = vperm.xlu0 %3198, %v3156
    %v3200 = vpop.permute.xlu0 %3199
    %vm3201 = vcmp.eq.s32.totalorder %v3158, %v3185
    %vm3202 = vcmp.eq.s32.totalorder %v3158, %v3188
    %vm3203 = vcmp.eq.s32.totalorder %v3158, %v3191
    %vm3204 = vcmp.eq.s32.totalorder %v3158, %v3194
    %vm3205 = vcmp.eq.s32.totalorder %v3158, %v3197
    %vm3206 = vcmp.eq.s32.totalorder %v3158, %v3200
    %vm3207 = vmor %vm3177, %vm3201
    %vm3208 = vmor %vm3178, %vm3202
    %vm3209 = vmor %vm3179, %vm3203
    %vm3210 = vmor %vm3180, %vm3204
    %vm3211 = vmor %vm3181, %vm3205
    %vm3212 = vmor %vm3182, %vm3206
    %v3213 = vsel %vm3207, 1, 0
    %v3214 = vsel %vm3208, 1, 0
    %v3215 = vsel %vm3209, 1, 0
    %v3216 = vsel %vm3210, 1, 0
    %v3217 = vsel %vm3211, 1, 0
    %v3218 = vsel %vm3212, 1, 0
    %v3219 = vcvt.s32.f32 %v3213
    %v3220 = vcvt.s32.f32 %v3214
    %v3221 = vcvt.s32.f32 %v3215
    %v3222 = vcvt.s32.f32 %v3216
    %v3223 = vcvt.s32.f32 %v3217
    %v3224 = vcvt.s32.f32 %v3218
    %v3225 = vld [vmem:[#allocation2] sm:$0xff]
    %v3226 = vld [vmem:[#allocation2 + $0x8] sm:$0xff]
    %v3227 = vld [vmem:[#allocation2 + $0x10] sm:$0xff]
    %v3228 = vld [vmem:[#allocation2 + $0x18] sm:$0xff]
    %vm3229 = vcmask 261120
    %v3231 = vsel %vm3229, %v3219, 0
    %v3234 = vsel %vm3229, %v3220, 0
    %v3237 = vsel %vm3229, %v3221, 0
    %v3240 = vsel %vm3229, %v3222, 0
    %v3243 = vsel %vm3229, %v3223, 0
    %v3246 = vsel %vm3229, %v3224, 0
    %3248 = vmatprep.subr.mxu0 0.0
    %v3249 = vand.u32 %v3225, 4294901760
    %3250 = vmatpush1.msra.mxu0 %v3249
    %3251 = vmatprep.subr.mxu0 0.0
    %v3252 = vand.u32 %v3226, 4294901760
    %3253 = vmatpush1.msra.mxu0 %v3252
    %3254 = vmatprep.subr.mxu0 0.0
    %v3255 = vand.u32 %v3227, 4294901760
    %3256 = vmatpush1.msra.mxu0 %v3255
    %3257 = vmatprep.subr.mxu0 0.0
    %v3258 = vand.u32 %v3228, 4294901760
    %3259 = vmatpush1.msra.mxu0 %v3258
    %3260 = vmatprep.subr.mxu0 0.0
    %3261 = vmatpush1.msra.mxu0 0.0
    %3262 = vmatprep.subr.mxu0 0.0
    %3263 = vmatpush1.msra.mxu0 0.0
    %3264 = vmatprep.subr.mxu0 0.0
    %3265 = vmatpush1.msra.mxu0 0.0
    %3266 = vmatprep.subr.mxu0 0.0
    %3267 = vmatpush1.msra.mxu0 0.0
    %3268 = vmatprep.subr.mxu0 0.0
    %3269 = vmatpush1.msra.mxu0 0.0
    %3270 = vmatprep.subr.mxu0 0.0
    %3271 = vmatpush1.msra.mxu0 0.0
    %3272 = vmatprep.subr.mxu0 0.0
    %3273 = vmatpush1.msra.mxu0 0.0
    %3274 = vmatprep.subr.mxu0 0.0
    %3275 = vmatpush1.msra.mxu0 0.0
    %3276 = vmatprep.subr.mxu0 0.0
    %3277 = vmatpush1.msra.mxu0 0.0
    %3278 = vmatprep.subr.mxu0 0.0
    %3279 = vmatpush1.msra.mxu0 0.0
    %3280 = vmatprep.subr.mxu0 0.0
    %3281 = vmatpush1.msra.mxu0 0.0
    %3282 = vmatprep.subr.mxu0 0.0
    %3283 = vmatpush1.msra.mxu0 0.0
    %3284 = vmatprep.subr.mxu0 0.0
    %3285 = vmatpush1.msra.mxu0 0.0
    %3286 = vmatprep.subr.mxu0 0.0
    %3287 = vmatpush1.msra.mxu0 0.0
    %3288 = vmatprep.subr.mxu0 0.0
    %3289 = vmatpush1.msra.mxu0 0.0
    %3290 = vmatprep.subr.mxu0 0.0
    %3291 = vmatpush1.msra.mxu0 0.0
    %3292 = vmatprep.subr.mxu0 0.0
    %3293 = vmatpush1.msra.mxu0 0.0
    %3294 = vmatprep.subr.mxu0 0.0
    %3295 = vmatpush1.msra.mxu0 0.0
    %3296 = vmatprep.subr.mxu0 0.0
    %3297 = vmatpush1.msra.mxu0 0.0
    %3298 = vmatprep.subr.mxu0 0.0
    %3299 = vmatpush1.msra.mxu0 0.0
    %3300 = vmatprep.subr.mxu0 0.0
    %3301 = vmatpush1.msra.mxu0 0.0
    %3302 = vmatprep.subr.mxu0 0.0
    %3303 = vmatpush1.msra.mxu0 0.0
    %3304 = vmatprep.subr.mxu0 0.0
    %3305 = vmatpush1.msra.mxu0 0.0
    %3306 = vmatprep.subr.mxu0 0.0
    %3307 = vmatpush1.msra.mxu0 0.0
    %3308 = vmatprep.subr.mxu0 0.0
    %3309 = vmatpush1.msra.mxu0 0.0
    %3310 = vmatprep.subr.mxu0 0.0
    %3311 = vmatpush1.msra.mxu0 0.0
    %3312 = vmatprep.subr.mxu0 0.0
    %3313 = vmatpush1.msra.mxu0 0.0
    %3314 = vmatprep.subr.mxu0 0.0
    %3315 = vmatpush1.msra.mxu0 0.0
    %3316 = vmatprep.mubr.f32.mxu0 0.0
    %v3317 = vand.u32 %v3231, 4294901760
    %v3318 = vsub.f32 %v3231, %v3317
    %v3319 = vand.u32 %v3318, 4294901760
    %v3320 = vsub.f32 %v3318, %v3319
    %v3321 = vand.u32 %v3320, 4294901760
    %3322 = vmatmul.mubr.f32.gmra.mrb[0].mxu0 %v3321
    %v3323 = vpop.f32.mrb[0].mxu0
    %v3324 = vadd.f32 0.0, %v3323
    %v3325 = vpop.f32.mrb[0].mxu0
    %3326 = vmatprep.mubr.f32.mxu0 0.0
    %v3327 = vand.u32 %v3234, 4294901760
    %v3328 = vsub.f32 %v3234, %v3327
    %v3329 = vand.u32 %v3328, 4294901760
    %v3330 = vsub.f32 %v3328, %v3329
    %v3331 = vand.u32 %v3330, 4294901760
    %3332 = vmatmul.mubr.f32.gmra.mrb[0].mxu0 %v3331
    %v3333 = vpop.f32.mrb[0].mxu0
    %v3334 = vadd.f32 0.0, %v3333
    %v3335 = vpop.f32.mrb[0].mxu0
    %3336 = vmatprep.mubr.f32.mxu0 0.0
    %v3337 = vand.u32 %v3237, 4294901760
    %v3338 = vsub.f32 %v3237, %v3337
    %v3339 = vand.u32 %v3338, 4294901760
    %v3340 = vsub.f32 %v3338, %v3339
    %v3341 = vand.u32 %v3340, 4294901760
    %3342 = vmatmul.mubr.f32.gmra.mrb[0].mxu0 %v3341
    %v3343 = vpop.f32.mrb[0].mxu0
    %v3344 = vadd.f32 0.0, %v3343
    %v3345 = vpop.f32.mrb[0].mxu0
    %3346 = vmatprep.mubr.f32.mxu0 0.0
    %v3347 = vand.u32 %v3240, 4294901760
    %v3348 = vsub.f32 %v3240, %v3347
    %v3349 = vand.u32 %v3348, 4294901760
    %v3350 = vsub.f32 %v3348, %v3349
    %v3351 = vand.u32 %v3350, 4294901760
    %3352 = vmatmul.mubr.f32.gmra.mrb[0].mxu0 %v3351
    %v3353 = vpop.f32.mrb[0].mxu0
    %v3354 = vadd.f32 0.0, %v3353
    %v3355 = vpop.f32.mrb[0].mxu0
    %3356 = vmatprep.mubr.f32.mxu0 0.0
    %v3357 = vand.u32 %v3243, 4294901760
    %v3358 = vsub.f32 %v3243, %v3357
    %v3359 = vand.u32 %v3358, 4294901760
    %v3360 = vsub.f32 %v3358, %v3359
    %v3361 = vand.u32 %v3360, 4294901760
    %3362 = vmatmul.mubr.f32.gmra.mrb[0].mxu0 %v3361
    %v3363 = vpop.f32.mrb[0].mxu0
    %v3364 = vadd.f32 0.0, %v3363
    %v3365 = vpop.f32.mrb[0].mxu0
    %3366 = vmatprep.mubr.f32.mxu0 0.0
    %v3367 = vand.u32 %v3246, 4294901760
    %v3368 = vsub.f32 %v3246, %v3367
    %v3369 = vand.u32 %v3368, 4294901760
    %v3370 = vsub.f32 %v3368, %v3369
    %v3371 = vand.u32 %v3370, 4294901760
    %3372 = vmatmul.mubr.f32.gmra.mrb[0].mxu0 %v3371
    %v3373 = vpop.f32.mrb[0].mxu0
    %v3374 = vadd.f32 0.0, %v3373
    %v3375 = vpop.f32.mrb[0].mxu0
    %3376 = vdwg.mxu0
    %3377 = vmatprep.subr.mxu0 0.0
    %v3378 = vand.u32 %v3225, 4294901760
    %v3379 = vsub.f32 %v3225, %v3378
    %v3380 = vand.u32 %v3379, 4294901760
    %v3381 = vsub.f32 %v3379, %v3380
    %v3382 = vand.u32 %v3381, 4294901760
    %3383 = vmatpush1.msra.mxu0 %v3382
    %3384 = vmatprep.subr.mxu0 0.0
    %v3385 = vand.u32 %v3226, 4294901760
    %v3386 = vsub.f32 %v3226, %v3385
    %v3387 = vand.u32 %v3386, 4294901760
    %v3388 = vsub.f32 %v3386, %v3387
    %v3389 = vand.u32 %v3388, 4294901760
    %3390 = vmatpush1.msra.mxu0 %v3389
    %3391 = vmatprep.subr.mxu0 0.0
    %v3392 = vand.u32 %v3227, 4294901760
    %v3393 = vsub.f32 %v3227, %v3392
    %v3394 = vand.u32 %v3393, 4294901760
    %v3395 = vsub.f32 %v3393, %v3394
    %v3396 = vand.u32 %v3395, 4294901760
    %3397 = vmatpush1.msra.mxu0 %v3396
    %3398 = vmatprep.subr.mxu0 0.0
    %v3399 = vand.u32 %v3228, 4294901760
    %v3400 = vsub.f32 %v3228, %v3399
    %v3401 = vand.u32 %v3400, 4294901760
    %v3402 = vsub.f32 %v3400, %v3401
    %v3403 = vand.u32 %v3402, 4294901760
    %3404 = vmatpush1.msra.mxu0 %v3403
    %3405 = vmatprep.subr.mxu0 0.0
    %3406 = vmatpush1.msra.mxu0 0.0
    %3407 = vmatprep.subr.mxu0 0.0
    %3408 = vmatpush1.msra.mxu0 0.0
    %3409 = vmatprep.subr.mxu0 0.0
    %3410 = vmatpush1.msra.mxu0 0.0
    %3411 = vmatprep.subr.mxu0 0.0
    %3412 = vmatpush1.msra.mxu0 0.0
    %3413 = vmatprep.subr.mxu0 0.0
    %3414 = vmatpush1.msra.mxu0 0.0
    %3415 = vmatprep.subr.mxu0 0.0
    %3416 = vmatpush1.msra.mxu0 0.0
    %3417 = vmatprep.subr.mxu0 0.0
    %3418 = vmatpush1.msra.mxu0 0.0
    %3419 = vmatprep.subr.mxu0 0.0
    %3420 = vmatpush1.msra.mxu0 0.0
    %3421 = vmatprep.subr.mxu0 0.0
    %3422 = vmatpush1.msra.mxu0 0.0
    %3423 = vmatprep.subr.mxu0 0.0
    %3424 = vmatpush1.msra.mxu0 0.0
    %3425 = vmatprep.subr.mxu0 0.0
    %3426 = vmatpush1.msra.mxu0 0.0
    %3427 = vmatprep.subr.mxu0 0.0
    %3428 = vmatpush1.msra.mxu0 0.0
    %3429 = vmatprep.subr.mxu0 0.0
    %3430 = vmatpush1.msra.mxu0 0.0
    %3431 = vmatprep.subr.mxu0 0.0
    %3432 = vmatpush1.msra.mxu0 0.0
    %3433 = vmatprep.subr.mxu0 0.0
    %3434 = vmatpush1.msra.mxu0 0.0
    %3435 = vmatprep.subr.mxu0 0.0
    %3436 = vmatpush1.msra.mxu0 0.0
    %3437 = vmatprep.subr.mxu0 0.0
    %3438 = vmatpush1.msra.mxu0 0.0
    %3439 = vmatprep.subr.mxu0 0.0
    %3440 = vmatpush1.msra.mxu0 0.0
    %3441 = vmatprep.subr.mxu0 0.0
    %3442 = vmatpush1.msra.mxu0 0.0
    %3443 = vmatprep.subr.mxu0 0.0
    %3444 = vmatpush1.msra.mxu0 0.0
    %3445 = vmatprep.subr.mxu0 0.0
    %3446 = vmatpush1.msra.mxu0 0.0
    %3447 = vmatprep.subr.mxu0 0.0
    %3448 = vmatpush1.msra.mxu0 0.0
    %3449 = vmatprep.subr.mxu0 0.0
    %3450 = vmatpush1.msra.mxu0 0.0
    %3451 = vmatprep.subr.mxu0 0.0
    %3452 = vmatpush1.msra.mxu0 0.0
    %3453 = vmatprep.subr.mxu0 0.0
    %3454 = vmatpush1.msra.mxu0 0.0
    %3455 = vmatprep.subr.mxu0 0.0
    %3456 = vmatpush1.msra.mxu0 0.0
    %3457 = vmatprep.subr.mxu0 0.0
    %3458 = vmatpush1.msra.mxu0 0.0
    %3459 = vmatprep.subr.mxu0 0.0
    %3460 = vmatpush1.msra.mxu0 0.0
    %3461 = vmatprep.mubr.f32.mxu0 0.0
    %v3462 = vand.u32 %v3231, 4294901760
    %3463 = vmatmul.mubr.f32.gmra.mrb[0].mxu0 %v3462
    %v3464 = vpop.f32.mrb[0].mxu0
    %v3465 = vadd.f32 %v3324, %v3464
    %v3466 = vpop.f32.mrb[0].mxu0
    %3467 = vmatprep.mubr.f32.mxu0 0.0
    %v3468 = vand.u32 %v3234, 4294901760
    %3469 = vmatmul.mubr.f32.gmra.mrb[0].mxu0 %v3468
    %v3470 = vpop.f32.mrb[0].mxu0
    %v3471 = vadd.f32 %v3334, %v3470
    %v3472 = vpop.f32.mrb[0].mxu0
    %3473 = vmatprep.mubr.f32.mxu0 0.0
    %v3474 = vand.u32 %v3237, 4294901760
    %3475 = vmatmul.mubr.f32.gmra.mrb[0].mxu0 %v3474
    %v3476 = vpop.f32.mrb[0].mxu0
    %v3477 = vadd.f32 %v3344, %v3476
    %v3478 = vpop.f32.mrb[0].mxu0
    %3479 = vmatprep.mubr.f32.mxu0 0.0
    %v3480 = vand.u32 %v3240, 4294901760
    %3481 = vmatmul.mubr.f32.gmra.mrb[0].mxu0 %v3480
    %v3482 = vpop.f32.mrb[0].mxu0
    %v3483 = vadd.f32 %v3354, %v3482
    %v3484 = vpop.f32.mrb[0].mxu0
    %3485 = vmatprep.mubr.f32.mxu0 0.0
    %v3486 = vand.u32 %v3243, 4294901760
    %3487 = vmatmul.mubr.f32.gmra.mrb[0].mxu0 %v3486
    %v3488 = vpop.f32.mrb[0].mxu0
    %v3489 = vadd.f32 %v3364, %v3488
    %v3490 = vpop.f32.mrb[0].mxu0
    %3491 = vmatprep.mubr.f32.mxu0 0.0
    %v3492 = vand.u32 %v3246, 4294901760
    %3493 = vmatmul.mubr.f32.gmra.mrb[0].mxu0 %v3492
    %v3494 = vpop.f32.mrb[0].mxu0
    %v3495 = vadd.f32 %v3374, %v3494
    %v3496 = vpop.f32.mrb[0].mxu0
    %3497 = vdwg.mxu0
    %3498 = vmatprep.subr.mxu0 0.0
    %v3499 = vand.u32 %v3225, 4294901760
    %v3500 = vsub.f32 %v3225, %v3499
    %3501 = vmatpush1.msra.mxu0 %v3500
    %3502 = vmatprep.subr.mxu0 0.0
    %v3503 = vand.u32 %v3226, 4294901760
    %v3504 = vsub.f32 %v3226, %v3503
    %3505 = vmatpush1.msra.mxu0 %v3504
    %3506 = vmatprep.subr.mxu0 0.0
    %v3507 = vand.u32 %v3227, 4294901760
    %v3508 = vsub.f32 %v3227, %v3507
    %3509 = vmatpush1.msra.mxu0 %v3508
    %3510 = vmatprep.subr.mxu0 0.0
    %v3511 = vand.u32 %v3228, 4294901760
    %v3512 = vsub.f32 %v3228, %v3511
    %3513 = vmatpush1.msra.mxu0 %v3512
    %3514 = vmatprep.subr.mxu0 0.0
    %3515 = vmatpush1.msra.mxu0 0.0
    %3516 = vmatprep.subr.mxu0 0.0
    %3517 = vmatpush1.msra.mxu0 0.0
    %3518 = vmatprep.subr.mxu0 0.0
    %3519 = vmatpush1.msra.mxu0 0.0
    %3520 = vmatprep.subr.mxu0 0.0
    %3521 = vmatpush1.msra.mxu0 0.0
    %3522 = vmatprep.subr.mxu0 0.0
    %3523 = vmatpush1.msra.mxu0 0.0
    %3524 = vmatprep.subr.mxu0 0.0
    %3525 = vmatpush1.msra.mxu0 0.0
    %3526 = vmatprep.subr.mxu0 0.0
    %3527 = vmatpush1.msra.mxu0 0.0
    %3528 = vmatprep.subr.mxu0 0.0
    %3529 = vmatpush1.msra.mxu0 0.0
    %3530 = vmatprep.subr.mxu0 0.0
    %3531 = vmatpush1.msra.mxu0 0.0
    %3532 = vmatprep.subr.mxu0 0.0
    %3533 = vmatpush1.msra.mxu0 0.0
    %3534 = vmatprep.subr.mxu0 0.0
    %3535 = vmatpush1.msra.mxu0 0.0
    %3536 = vmatprep.subr.mxu0 0.0
    %3537 = vmatpush1.msra.mxu0 0.0
    %3538 = vmatprep.subr.mxu0 0.0
    %3539 = vmatpush1.msra.mxu0 0.0
    %3540 = vmatprep.subr.mxu0 0.0
    %3541 = vmatpush1.msra.mxu0 0.0
    %3542 = vmatprep.subr.mxu0 0.0
    %3543 = vmatpush1.msra.mxu0 0.0
    %3544 = vmatprep.subr.mxu0 0.0
    %3545 = vmatpush1.msra.mxu0 0.0
    %3546 = vmatprep.subr.mxu0 0.0
    %3547 = vmatpush1.msra.mxu0 0.0
    %3548 = vmatprep.subr.mxu0 0.0
    %3549 = vmatpush1.msra.mxu0 0.0
    %3550 = vmatprep.subr.mxu0 0.0
    %3551 = vmatpush1.msra.mxu0 0.0
    %3552 = vmatprep.subr.mxu0 0.0
    %3553 = vmatpush1.msra.mxu0 0.0
    %3554 = vmatprep.subr.mxu0 0.0
    %3555 = vmatpush1.msra.mxu0 0.0
    %3556 = vmatprep.subr.mxu0 0.0
    %3557 = vmatpush1.msra.mxu0 0.0
    %3558 = vmatprep.subr.mxu0 0.0
    %3559 = vmatpush1.msra.mxu0 0.0
    %3560 = vmatprep.subr.mxu0 0.0
    %3561 = vmatpush1.msra.mxu0 0.0
    %3562 = vmatprep.subr.mxu0 0.0
    %3563 = vmatpush1.msra.mxu0 0.0
    %3564 = vmatprep.subr.mxu0 0.0
    %3565 = vmatpush1.msra.mxu0 0.0
    %3566 = vmatprep.subr.mxu0 0.0
    %3567 = vmatpush1.msra.mxu0 0.0
    %3568 = vmatprep.subr.mxu0 0.0
    %3569 = vmatpush1.msra.mxu0 0.0
    %3570 = vmatprep.mubr.f32.mxu0 0.0
    %v3571 = vand.u32 %v3231, 4294901760
    %v3572 = vsub.f32 %v3231, %v3571
    %3573 = vmatmul.mubr.f32.gmra.mrb[0].mxu0 %v3572
    %v3574 = vpop.f32.mrb[0].mxu0
    %v3575 = vadd.f32 %v3465, %v3574
    %v3576 = vpop.f32.mrb[0].mxu0
    %3577 = vmatprep.mubr.f32.mxu0 0.0
    %v3578 = vand.u32 %v3234, 4294901760
    %v3579 = vsub.f32 %v3234, %v3578
    %3580 = vmatmul.mubr.f32.gmra.mrb[0].mxu0 %v3579
    %v3581 = vpop.f32.mrb[0].mxu0
    %v3582 = vadd.f32 %v3471, %v3581
    %v3583 = vpop.f32.mrb[0].mxu0
    %3584 = vmatprep.mubr.f32.mxu0 0.0
    %v3585 = vand.u32 %v3237, 4294901760
    %v3586 = vsub.f32 %v3237, %v3585
    %3587 = vmatmul.mubr.f32.gmra.mrb[0].mxu0 %v3586
    %v3588 = vpop.f32.mrb[0].mxu0
    %v3589 = vadd.f32 %v3477, %v3588
    %v3590 = vpop.f32.mrb[0].mxu0
    %3591 = vmatprep.mubr.f32.mxu0 0.0
    %v3592 = vand.u32 %v3240, 4294901760
    %v3593 = vsub.f32 %v3240, %v3592
    %3594 = vmatmul.mubr.f32.gmra.mrb[0].mxu0 %v3593
    %v3595 = vpop.f32.mrb[0].mxu0
    %v3596 = vadd.f32 %v3483, %v3595
    %v3597 = vpop.f32.mrb[0].mxu0
    %3598 = vmatprep.mubr.f32.mxu0 0.0
    %v3599 = vand.u32 %v3243, 4294901760
    %v3600 = vsub.f32 %v3243, %v3599
    %3601 = vmatmul.mubr.f32.gmra.mrb[0].mxu0 %v3600
    %v3602 = vpop.f32.mrb[0].mxu0
    %v3603 = vadd.f32 %v3489, %v3602
    %v3604 = vpop.f32.mrb[0].mxu0
    %3605 = vmatprep.mubr.f32.mxu0 0.0
    %v3606 = vand.u32 %v3246, 4294901760
    %v3607 = vsub.f32 %v3246, %v3606
    %3608 = vmatmul.mubr.f32.gmra.mrb[0].mxu0 %v3607
    %v3609 = vpop.f32.mrb[0].mxu0
    %v3610 = vadd.f32 %v3495, %v3609
    %v3611 = vpop.f32.mrb[0].mxu0
    %3612 = vdwg.mxu0
    %3613 = vmatprep.subr.mxu0 0.0
    %v3614 = vand.u32 %v3225, 4294901760
    %3615 = vmatpush1.msra.mxu0 %v3614
    %3616 = vmatprep.subr.mxu0 0.0
    %v3617 = vand.u32 %v3226, 4294901760
    %3618 = vmatpush1.msra.mxu0 %v3617
    %3619 = vmatprep.subr.mxu0 0.0
    %v3620 = vand.u32 %v3227, 4294901760
    %3621 = vmatpush1.msra.mxu0 %v3620
    %3622 = vmatprep.subr.mxu0 0.0
    %v3623 = vand.u32 %v3228, 4294901760
    %3624 = vmatpush1.msra.mxu0 %v3623
    %3625 = vmatprep.subr.mxu0 0.0
    %3626 = vmatpush1.msra.mxu0 0.0
    %3627 = vmatprep.subr.mxu0 0.0
    %3628 = vmatpush1.msra.mxu0 0.0
    %3629 = vmatprep.subr.mxu0 0.0
    %3630 = vmatpush1.msra.mxu0 0.0
    %3631 = vmatprep.subr.mxu0 0.0
    %3632 = vmatpush1.msra.mxu0 0.0
    %3633 = vmatprep.subr.mxu0 0.0
    %3634 = vmatpush1.msra.mxu0 0.0
    %3635 = vmatprep.subr.mxu0 0.0
    %3636 = vmatpush1.msra.mxu0 0.0
    %3637 = vmatprep.subr.mxu0 0.0
    %3638 = vmatpush1.msra.mxu0 0.0
    %3639 = vmatprep.subr.mxu0 0.0
    %3640 = vmatpush1.msra.mxu0 0.0
    %3641 = vmatprep.subr.mxu0 0.0
    %3642 = vmatpush1.msra.mxu0 0.0
    %3643 = vmatprep.subr.mxu0 0.0
    %3644 = vmatpush1.msra.mxu0 0.0
    %3645 = vmatprep.subr.mxu0 0.0
    %3646 = vmatpush1.msra.mxu0 0.0
    %3647 = vmatprep.subr.mxu0 0.0
    %3648 = vmatpush1.msra.mxu0 0.0
    %3649 = vmatprep.subr.mxu0 0.0
    %3650 = vmatpush1.msra.mxu0 0.0
    %3651 = vmatprep.subr.mxu0 0.0
    %3652 = vmatpush1.msra.mxu0 0.0
    %3653 = vmatprep.subr.mxu0 0.0
    %3654 = vmatpush1.msra.mxu0 0.0
    %3655 = vmatprep.subr.mxu0 0.0
    %3656 = vmatpush1.msra.mxu0 0.0
    %3657 = vmatprep.subr.mxu0 0.0
    %3658 = vmatpush1.msra.mxu0 0.0
    %3659 = vmatprep.subr.mxu0 0.0
    %3660 = vmatpush1.msra.mxu0 0.0
    %3661 = vmatprep.subr.mxu0 0.0
    %3662 = vmatpush1.msra.mxu0 0.0
    %3663 = vmatprep.subr.mxu0 0.0
    %3664 = vmatpush1.msra.mxu0 0.0
    %3665 = vmatprep.subr.mxu0 0.0
    %3666 = vmatpush1.msra.mxu0 0.0
    %3667 = vmatprep.subr.mxu0 0.0
    %3668 = vmatpush1.msra.mxu0 0.0
    %3669 = vmatprep.subr.mxu0 0.0
    %3670 = vmatpush1.msra.mxu0 0.0
    %3671 = vmatprep.subr.mxu0 0.0
    %3672 = vmatpush1.msra.mxu0 0.0
    %3673 = vmatprep.subr.mxu0 0.0
    %3674 = vmatpush1.msra.mxu0 0.0
    %3675 = vmatprep.subr.mxu0 0.0
    %3676 = vmatpush1.msra.mxu0 0.0
    %3677 = vmatprep.subr.mxu0 0.0
    %3678 = vmatpush1.msra.mxu0 0.0
    %3679 = vmatprep.subr.mxu0 0.0
    %3680 = vmatpush1.msra.mxu0 0.0
    %3681 = vmatprep.mubr.f32.mxu0 0.0
    %v3682 = vand.u32 %v3231, 4294901760
    %v3683 = vsub.f32 %v3231, %v3682
    %v3684 = vand.u32 %v3683, 4294901760
    %3685 = vmatmul.mubr.f32.gmra.mrb[0].mxu0 %v3684
    %v3686 = vpop.f32.mrb[0].mxu0
    %v3687 = vadd.f32 %v3575, %v3686
    %v3688 = vpop.f32.mrb[0].mxu0
    %3689 = vmatprep.mubr.f32.mxu0 0.0
    %v3690 = vand.u32 %v3234, 4294901760
    %v3691 = vsub.f32 %v3234, %v3690
    %v3692 = vand.u32 %v3691, 4294901760
    %3693 = vmatmul.mubr.f32.gmra.mrb[0].mxu0 %v3692
    %v3694 = vpop.f32.mrb[0].mxu0
    %v3695 = vadd.f32 %v3582, %v3694
    %v3696 = vpop.f32.mrb[0].mxu0
    %3697 = vmatprep.mubr.f32.mxu0 0.0
    %v3698 = vand.u32 %v3237, 4294901760
    %v3699 = vsub.f32 %v3237, %v3698
    %v3700 = vand.u32 %v3699, 4294901760
    %3701 = vmatmul.mubr.f32.gmra.mrb[0].mxu0 %v3700
    %v3702 = vpop.f32.mrb[0].mxu0
    %v3703 = vadd.f32 %v3589, %v3702
    %v3704 = vpop.f32.mrb[0].mxu0
    %3705 = vmatprep.mubr.f32.mxu0 0.0
    %v3706 = vand.u32 %v3240, 4294901760
    %v3707 = vsub.f32 %v3240, %v3706
    %v3708 = vand.u32 %v3707, 4294901760
    %3709 = vmatmul.mubr.f32.gmra.mrb[0].mxu0 %v3708
    %v3710 = vpop.f32.mrb[0].mxu0
    %v3711 = vadd.f32 %v3596, %v3710
    %v3712 = vpop.f32.mrb[0].mxu0
    %3713 = vmatprep.mubr.f32.mxu0 0.0
    %v3714 = vand.u32 %v3243, 4294901760
    %v3715 = vsub.f32 %v3243, %v3714
    %v3716 = vand.u32 %v3715, 4294901760
    %3717 = vmatmul.mubr.f32.gmra.mrb[0].mxu0 %v3716
    %v3718 = vpop.f32.mrb[0].mxu0
    %v3719 = vadd.f32 %v3603, %v3718
    %v3720 = vpop.f32.mrb[0].mxu0
    %3721 = vmatprep.mubr.f32.mxu0 0.0
    %v3722 = vand.u32 %v3246, 4294901760
    %v3723 = vsub.f32 %v3246, %v3722
    %v3724 = vand.u32 %v3723, 4294901760
    %3725 = vmatmul.mubr.f32.gmra.mrb[0].mxu0 %v3724
    %v3726 = vpop.f32.mrb[0].mxu0
    %v3727 = vadd.f32 %v3610, %v3726
    %v3728 = vpop.f32.mrb[0].mxu0
    %3729 = vdwg.mxu0
    %3730 = vmatprep.subr.mxu0 0.0
    %v3731 = vand.u32 %v3225, 4294901760
    %v3732 = vsub.f32 %v3225, %v3731
    %v3733 = vand.u32 %v3732, 4294901760
    %3734 = vmatpush1.msra.mxu0 %v3733
    %3735 = vmatprep.subr.mxu0 0.0
    %v3736 = vand.u32 %v3226, 4294901760
    %v3737 = vsub.f32 %v3226, %v3736
    %v3738 = vand.u32 %v3737, 4294901760
    %3739 = vmatpush1.msra.mxu0 %v3738
    %3740 = vmatprep.subr.mxu0 0.0
    %v3741 = vand.u32 %v3227, 4294901760
    %v3742 = vsub.f32 %v3227, %v3741
    %v3743 = vand.u32 %v3742, 4294901760
    %3744 = vmatpush1.msra.mxu0 %v3743
    %3745 = vmatprep.subr.mxu0 0.0
    %v3746 = vand.u32 %v3228, 4294901760
    %v3747 = vsub.f32 %v3228, %v3746
    %v3748 = vand.u32 %v3747, 4294901760
    %3749 = vmatpush1.msra.mxu0 %v3748
    %3750 = vmatprep.subr.mxu0 0.0
    %3751 = vmatpush1.msra.mxu0 0.0
    %3752 = vmatprep.subr.mxu0 0.0
    %3753 = vmatpush1.msra.mxu0 0.0
    %3754 = vmatprep.subr.mxu0 0.0
    %3755 = vmatpush1.msra.mxu0 0.0
    %3756 = vmatprep.subr.mxu0 0.0
    %3757 = vmatpush1.msra.mxu0 0.0
    %3758 = vmatprep.subr.mxu0 0.0
    %3759 = vmatpush1.msra.mxu0 0.0
    %3760 = vmatprep.subr.mxu0 0.0
    %3761 = vmatpush1.msra.mxu0 0.0
    %3762 = vmatprep.subr.mxu0 0.0
    %3763 = vmatpush1.msra.mxu0 0.0
    %3764 = vmatprep.subr.mxu0 0.0
    %3765 = vmatpush1.msra.mxu0 0.0
    %3766 = vmatprep.subr.mxu0 0.0
    %3767 = vmatpush1.msra.mxu0 0.0
    %3768 = vmatprep.subr.mxu0 0.0
    %3769 = vmatpush1.msra.mxu0 0.0
    %3770 = vmatprep.subr.mxu0 0.0
    %3771 = vmatpush1.msra.mxu0 0.0
    %3772 = vmatprep.subr.mxu0 0.0
    %3773 = vmatpush1.msra.mxu0 0.0
    %3774 = vmatprep.subr.mxu0 0.0
    %3775 = vmatpush1.msra.mxu0 0.0
    %3776 = vmatprep.subr.mxu0 0.0
    %3777 = vmatpush1.msra.mxu0 0.0
    %3778 = vmatprep.subr.mxu0 0.0
    %3779 = vmatpush1.msra.mxu0 0.0
    %3780 = vmatprep.subr.mxu0 0.0
    %3781 = vmatpush1.msra.mxu0 0.0
    %3782 = vmatprep.subr.mxu0 0.0
    %3783 = vmatpush1.msra.mxu0 0.0
    %3784 = vmatprep.subr.mxu0 0.0
    %3785 = vmatpush1.msra.mxu0 0.0
    %3786 = vmatprep.subr.mxu0 0.0
    %3787 = vmatpush1.msra.mxu0 0.0
    %3788 = vmatprep.subr.mxu0 0.0
    %3789 = vmatpush1.msra.mxu0 0.0
    %3790 = vmatprep.subr.mxu0 0.0
    %3791 = vmatpush1.msra.mxu0 0.0
    %3792 = vmatprep.subr.mxu0 0.0
    %3793 = vmatpush1.msra.mxu0 0.0
    %3794 = vmatprep.subr.mxu0 0.0
    %3795 = vmatpush1.msra.mxu0 0.0
    %3796 = vmatprep.subr.mxu0 0.0
    %3797 = vmatpush1.msra.mxu0 0.0
    %3798 = vmatprep.subr.mxu0 0.0
    %3799 = vmatpush1.msra.mxu0 0.0
    %3800 = vmatprep.subr.mxu0 0.0
    %3801 = vmatpush1.msra.mxu0 0.0
    %3802 = vmatprep.subr.mxu0 0.0
    %3803 = vmatpush1.msra.mxu0 0.0
    %3804 = vmatprep.subr.mxu0 0.0
    %3805 = vmatpush1.msra.mxu0 0.0
    %3806 = vmatprep.mubr.f32.mxu0 0.0
    %v3807 = vand.u32 %v3231, 4294901760
    %3808 = vmatmul.mubr.f32.gmra.mrb[0].mxu0 %v3807
    %v3809 = vpop.f32.mrb[0].mxu0
    %v3810 = vadd.f32 %v3687, %v3809
    %v3811 = vpop.f32.mrb[0].mxu0
    %3812 = vmatprep.mubr.f32.mxu0 0.0
    %v3813 = vand.u32 %v3234, 4294901760
    %3814 = vmatmul.mubr.f32.gmra.mrb[0].mxu0 %v3813
    %v3815 = vpop.f32.mrb[0].mxu0
    %v3816 = vadd.f32 %v3695, %v3815
    %v3817 = vpop.f32.mrb[0].mxu0
    %3818 = vmatprep.mubr.f32.mxu0 0.0
    %v3819 = vand.u32 %v3237, 4294901760
    %3820 = vmatmul.mubr.f32.gmra.mrb[0].mxu0 %v3819
    %v3821 = vpop.f32.mrb[0].mxu0
    %v3822 = vadd.f32 %v3703, %v3821
    %v3823 = vpop.f32.mrb[0].mxu0
    %3824 = vmatprep.mubr.f32.mxu0 0.0
    %v3825 = vand.u32 %v3240, 4294901760
    %3826 = vmatmul.mubr.f32.gmra.mrb[0].mxu0 %v3825
    %v3827 = vpop.f32.mrb[0].mxu0
    %v3828 = vadd.f32 %v3711, %v3827
    %v3829 = vpop.f32.mrb[0].mxu0
    %3830 = vmatprep.mubr.f32.mxu0 0.0
    %v3831 = vand.u32 %v3243, 4294901760
    %3832 = vmatmul.mubr.f32.gmra.mrb[0].mxu0 %v3831
    %v3833 = vpop.f32.mrb[0].mxu0
    %v3834 = vadd.f32 %v3719, %v3833
    %v3835 = vpop.f32.mrb[0].mxu0
    %3836 = vmatprep.mubr.f32.mxu0 0.0
    %v3837 = vand.u32 %v3246, 4294901760
    %3838 = vmatmul.mubr.f32.gmra.mrb[0].mxu0 %v3837
    %v3839 = vpop.f32.mrb[0].mxu0
    %v3840 = vadd.f32 %v3727, %v3839
    %v3841 = vpop.f32.mrb[0].mxu0
    %3842 = vdwg.mxu0
    %3843 = vmatprep.subr.mxu0 0.0
    %v3844 = vand.u32 %v3225, 4294901760
    %3845 = vmatpush1.msra.mxu0 %v3844
    %3846 = vmatprep.subr.mxu0 0.0
    %v3847 = vand.u32 %v3226, 4294901760
    %3848 = vmatpush1.msra.mxu0 %v3847
    %3849 = vmatprep.subr.mxu0 0.0
    %v3850 = vand.u32 %v3227, 4294901760
    %3851 = vmatpush1.msra.mxu0 %v3850
    %3852 = vmatprep.subr.mxu0 0.0
    %v3853 = vand.u32 %v3228, 4294901760
    %3854 = vmatpush1.msra.mxu0 %v3853
    %3855 = vmatprep.subr.mxu0 0.0
    %3856 = vmatpush1.msra.mxu0 0.0
    %3857 = vmatprep.subr.mxu0 0.0
    %3858 = vmatpush1.msra.mxu0 0.0
    %3859 = vmatprep.subr.mxu0 0.0
    %3860 = vmatpush1.msra.mxu0 0.0
    %3861 = vmatprep.subr.mxu0 0.0
    %3862 = vmatpush1.msra.mxu0 0.0
    %3863 = vmatprep.subr.mxu0 0.0
    %3864 = vmatpush1.msra.mxu0 0.0
    %3865 = vmatprep.subr.mxu0 0.0
    %3866 = vmatpush1.msra.mxu0 0.0
    %3867 = vmatprep.subr.mxu0 0.0
    %3868 = vmatpush1.msra.mxu0 0.0
    %3869 = vmatprep.subr.mxu0 0.0
    %3870 = vmatpush1.msra.mxu0 0.0
    %3871 = vmatprep.subr.mxu0 0.0
    %3872 = vmatpush1.msra.mxu0 0.0
    %3873 = vmatprep.subr.mxu0 0.0
    %3874 = vmatpush1.msra.mxu0 0.0
    %3875 = vmatprep.subr.mxu0 0.0
    %3876 = vmatpush1.msra.mxu0 0.0
    %3877 = vmatprep.subr.mxu0 0.0
    %3878 = vmatpush1.msra.mxu0 0.0
    %3879 = vmatprep.subr.mxu0 0.0
    %3880 = vmatpush1.msra.mxu0 0.0
    %3881 = vmatprep.subr.mxu0 0.0
    %3882 = vmatpush1.msra.mxu0 0.0
    %3883 = vmatprep.subr.mxu0 0.0
    %3884 = vmatpush1.msra.mxu0 0.0
    %3885 = vmatprep.subr.mxu0 0.0
    %3886 = vmatpush1.msra.mxu0 0.0
    %3887 = vmatprep.subr.mxu0 0.0
    %3888 = vmatpush1.msra.mxu0 0.0
    %3889 = vmatprep.subr.mxu0 0.0
    %3890 = vmatpush1.msra.mxu0 0.0
    %3891 = vmatprep.subr.mxu0 0.0
    %3892 = vmatpush1.msra.mxu0 0.0
    %3893 = vmatprep.subr.mxu0 0.0
    %3894 = vmatpush1.msra.mxu0 0.0
    %3895 = vmatprep.subr.mxu0 0.0
    %3896 = vmatpush1.msra.mxu0 0.0
    %3897 = vmatprep.subr.mxu0 0.0
    %3898 = vmatpush1.msra.mxu0 0.0
    %3899 = vmatprep.subr.mxu0 0.0
    %3900 = vmatpush1.msra.mxu0 0.0
    %3901 = vmatprep.subr.mxu0 0.0
    %3902 = vmatpush1.msra.mxu0 0.0
    %3903 = vmatprep.subr.mxu0 0.0
    %3904 = vmatpush1.msra.mxu0 0.0
    %3905 = vmatprep.subr.mxu0 0.0
    %3906 = vmatpush1.msra.mxu0 0.0
    %3907 = vmatprep.subr.mxu0 0.0
    %3908 = vmatpush1.msra.mxu0 0.0
    %3909 = vmatprep.subr.mxu0 0.0
    %3910 = vmatpush1.msra.mxu0 0.0
    %3911 = vmatprep.mubr.f32.mxu0 0.0
    %v3912 = vand.u32 %v3231, 4294901760
    %3913 = vmatmul.mubr.f32.gmra.mrb[0].mxu0 %v3912
    %v3914 = vpop.f32.mrb[0].mxu0
    %v3915 = vadd.f32 %v3810, %v3914
    %v3916 = vpop.f32.mrb[0].mxu0
    %3917 = vmatprep.mubr.f32.mxu0 0.0
    %v3918 = vand.u32 %v3234, 4294901760
    %3919 = vmatmul.mubr.f32.gmra.mrb[0].mxu0 %v3918
    %v3920 = vpop.f32.mrb[0].mxu0
    %v3921 = vadd.f32 %v3816, %v3920
    %v3922 = vpop.f32.mrb[0].mxu0
    %3923 = vmatprep.mubr.f32.mxu0 0.0
    %v3924 = vand.u32 %v3237, 4294901760
    %3925 = vmatmul.mubr.f32.gmra.mrb[0].mxu0 %v3924
    %v3926 = vpop.f32.mrb[0].mxu0
    %v3927 = vadd.f32 %v3822, %v3926
    %v3928 = vpop.f32.mrb[0].mxu0
    %3929 = vmatprep.mubr.f32.mxu0 0.0
    %v3930 = vand.u32 %v3240, 4294901760
    %3931 = vmatmul.mubr.f32.gmra.mrb[0].mxu0 %v3930
    %v3932 = vpop.f32.mrb[0].mxu0
    %v3933 = vadd.f32 %v3828, %v3932
    %v3934 = vpop.f32.mrb[0].mxu0
    %3935 = vmatprep.mubr.f32.mxu0 0.0
    %v3936 = vand.u32 %v3243, 4294901760
    %3937 = vmatmul.mubr.f32.gmra.mrb[0].mxu0 %v3936
    %v3938 = vpop.f32.mrb[0].mxu0
    %v3939 = vadd.f32 %v3834, %v3938
    %v3940 = vpop.f32.mrb[0].mxu0
    %3941 = vmatprep.mubr.f32.mxu0 0.0
    %v3942 = vand.u32 %v3246, 4294901760
    %3943 = vmatmul.mubr.f32.gmra.mrb[0].mxu0 %v3942
    %v3944 = vpop.f32.mrb[0].mxu0
    %v3945 = vadd.f32 %v3840, %v3944
    %v3946 = vpop.f32.mrb[0].mxu0
    %3947 = vdwg.mxu0
    %3948 = vst.msk [vmem:[%s8] sm:$0xff] %vm3229, %v3915
    %3949 = vst.msk [vmem:[%s8 + $0x8] sm:$0xff] %vm3229, %v3921
    %3950 = vst.msk [vmem:[%s8 + $0x10] sm:$0xff] %vm3229, %v3927
    %3951 = vst.msk [vmem:[%s8 + $0x18] sm:$0xff] %vm3229, %v3933
    %3952 = vst.msk [vmem:[%s8 + $0x20] sm:$0xff] %vm3229, %v3939
    %3953 = vst.msk [vmem:[%s8 + $0x28] sm:$0xff] %vm3229, %v3945
    // Predicated region
    $region46: #{tpu_custom_call.1} parent=1 // pred_check
      _
    $region47: #{tpu_custom_call.1} parent=1 // pred_check_branch
      %3955 = sbr.rel (0) target = $region49
    $region48: #{tpu_custom_call.1} parent=1 // pred_region
      _
    $region49: #{tpu_custom_call.1} parent=1 // pred_fallthru
      _
    // Predicated region
    $region50: #{tpu_custom_call.1} parent=1 // pred_check
      _
    $region51: #{tpu_custom_call.1} parent=1 // pred_check_branch
      %3957 = sbr.rel (0) target = $region53
    $region52: #{tpu_custom_call.1} parent=1 // pred_region
      _
    $region53: #{tpu_custom_call.1} parent=1 // pred_fallthru
      _
    %3958 = vsyncpa [#allocation4], 1
    %3959 = vsyncpa [#allocation6], 1

</llo_original>
